<compile_context>
chip_gen: v7x
topology: tpu7x:2x2x1
jax: 0.10.0
libtpu: 0.0.40
codegen_flags: <defaults>
</compile_context>

<pallas_src>
import numpy as np

import jax
import jax.numpy as jnp
from jax.experimental import pallas as pl
from jax.experimental.pallas import tpu as pltpu


# --------------------------------------------------------------------------
# small in-kernel helpers
# --------------------------------------------------------------------------
def _lane_roll(x, s):
    """result[:, p] = x[:, (p + s) mod n] for a static integer shift s."""
    n = x.shape[-1]
    s = s % n
    if s == 0:
        return x
    return jnp.concatenate([x[:, s:], x[:, :s]], axis=-1)


# --------------------------------------------------------------------------
# The single fused forward kernel
# --------------------------------------------------------------------------
def _make_forward_kernel(slope, K, cg_iters, unc_map, tap_shifts):
    f32 = jnp.float32
    eps = 1e-20  # guard for alpha/beta divisions in CG

    def kernel(w_ref, u_ref, lam_ref, kre_ref, kim_ref, cre_ref, cim_ref,
               ffr_ref, ffi_ref, ffs_ref, far_ref, fai_ref, fas_ref,
               tap_ref, w1_ref, b1_ref, w2_ref, b2_ref, w3_ref, b3_ref,
               xs_ref, *unc_refs):
        lam = lam_ref[0, 0]

        # ---- Pmask = sigmoid(slope * w);  mask = Bernoulli(Pmask) ----------
        # (forward of the straight-through estimator; custom backward is
        #  training-only.  rescale / passSigmoid / fixed_mask default branches)
        pmask = 1.0 / (1.0 + jnp.exp(-slope * w_ref[...]))        # (1, P)
        mask = (u_ref[...] < pmask).astype(f32)                   # (1, P)

        cre = cre_ref[0]                                          # (C, P)
        cim = cim_ref[0]
        ffr = ffr_ref[...]; ffi = ffi_ref[...]; ffs = ffs_ref[...]
        far = far_ref[...]; fai = fai_ref[...]; fas = fas_ref[...]
        taps = tap_ref[...]                                       # (9, P)

        def cmm(zr, zi, mr, mi, ms):
            # complex right-matmul (Gauss 3-multiply):  (zr + i zi) @ (mr + i mi)
            t1 = jnp.dot(zr, mr, preferred_element_type=f32)
            t2 = jnp.dot(zi, mi, preferred_element_type=f32)
            t3 = jnp.dot(zr + zi, ms, preferred_element_type=f32)
            return t1 - t2, t3 - t1 - t2

        def adjoint(kr, ki):
            # IDFT2 + fft_shift_row + checkerboard flip (folded into far/fai),
            # then conj(csm) multiply and coil sum.
            yr, yi = cmm(kr, ki, far, fai, fas)                   # (C, P)
            o_re = jnp.sum(yr * cre + yi * cim, axis=0, keepdims=True)
            o_im = jnp.sum(yi * cre - yr * cim, axis=0, keepdims=True)
            return o_re, o_im                                      # (1, P)

        def normal_op(xr, xi):
            # AtA(x) + lambda * x   (Back_forward normal operator)
            zr = cre * xr - cim * xi                               # coil expand
            zi = cre * xi + cim * xr
            kr, ki = cmm(zr, zi, ffr, ffi, ffs)                    # flip/shift/FFT2
            o_re, o_im = adjoint(kr * mask, ki * mask)             # k-space mask + At
            return o_re + lam * xr, o_im + lam * xi

        # ---- x_start = At(mask * kdata, csm) -------------------------------
        x0r, x0i = adjoint(kre_ref[0] * mask, kim_ref[0] * mask)

        # ---- denoiser block (im2col 3x3 convs) -----------------------------
        # TODO(synk): exact ResBlock(input_channels, filter_channels, use_norm=2)
        # source is not in the provided snippet; using a deterministic 3-layer
        # 3x3 CNN (in -> F -> F -> out, ReLU, no norm) as the denoiser block.
        def conv3x3(act, wm, bv, relu):
            pieces = []
            for t, s in enumerate(tap_shifts):
                pieces.append(_lane_roll(act, s) * taps[t:t + 1, :])
            patches = jnp.concatenate(pieces, axis=0)              # (9*Cin, P)
            out = jnp.dot(wm, patches, preferred_element_type=f32) + bv
            return jnp.maximum(out, 0.0) if relu else out

        def resnet(xr, xi):
            act = jnp.concatenate([xr, xi], axis=0)                # (2, P)
            act = conv3x3(act, w1_ref[...], b1_ref[...], True)
            act = conv3x3(act, w2_ref[...], b2_ref[...], True)
            act = conv3x3(act, w3_ref[...], b3_ref[...], False)
            return act                                             # (out_ch, P)

        def ip2(ar, ai, br, bi):
            return jnp.sum(ar * br + ai * bi, keepdims=True)       # (1, 1)

        def cg_solve(rhr, rhi):
            # TODO(synk): DC_layer.CG_iter source not provided; standard CG on
            # (AtA + lambda*I) x = rhs from x0 = 0 with a fixed iteration count.
            def body(_, carry):
                xr, xi, rr, ri, pr, pi, rtr = carry
                apr, api = normal_op(pr, pi)
                pap = ip2(pr, pi, apr, api)
                alpha = rtr / (pap + eps)
                xr = xr + alpha * pr
                xi = xi + alpha * pi
                rr = rr - alpha * apr
                ri = ri - alpha * api
                rtr_new = ip2(rr, ri, rr, ri)
                beta = rtr_new / (rtr + eps)
                pr = rr + beta * pr
                pi = ri + beta * pi
                return xr, xi, rr, ri, pr, pi, rtr_new

            zr = jnp.zeros_like(rhr)
            init = (zr, zr, rhr, rhi, rhr, rhi, ip2(rhr, rhi, rhr, rhi))
            out = jax.lax.fori_loop(0, cg_iters, body, init)
            return out[0], out[1]

        # ---- K unrolled outer iterations ------------------------------------
        xr, xi = x0r, x0i
        for i in range(K):
            xb = resnet(xr, xi)                                    # (out_ch, P)
            rhr = x0r + lam * (xr - xb[0:1, :])
            rhi = x0i + lam * (xi - xb[1:2, :])
            xr, xi = cg_solve(rhr, rhi)
            xs_ref[0, i, :, :] = jnp.concatenate([xr, xi], axis=0)
            if unc_map:
                unc_refs[0][0, i, :, :] = xb[2:4, :]

    return kernel


# --------------------------------------------------------------------------
# Module wrapper
# --------------------------------------------------------------------------
class DCWithStraightThroughPmaskPallas:
    """Forward pass of DC_with_Straight_Through_Pmask (default config)."""

    def __init__(self, input_channels=2, filter_channels=8, lambda_dll2=0.01,
                 ncoil=4, nrow=16, ncol=16, K=1, unc_map=False, slope=0.25,
                 samplingRatio=0.1, cg_iters=10, key=None):
        if key is None:
            key = jax.random.PRNGKey(0)
        ks = jax.random.split(key, 4)
        f32 = jnp.float32

        self.K = K
        self.unc_map = unc_map
        self.slope = slope
        self.cg_iters = cg_iters
        self.ncoil = ncoil
        self.nrow = nrow
        self.ncol = ncol
        self.samplingRatio = samplingRatio        # used only by rescale branch
        self.lambda_dll2 = jnp.full((1, 1), lambda_dll2, dtype=f32)

        # weight_parameters = (rand(1,nrow,ncol,1) - 0.5) * 30, center block 15.
        # NOTE: for nrow=16 the slice start is negative and wraps to row 11,
        # matching PyTorch negative-slice semantics of the reference.
        temp = (jax.random.uniform(ks[0], (1, nrow, ncol, 1), f32) - 0.5) * 30.0
        temp = temp.at[:, nrow // 2 - 13:nrow // 2 + 12,
                       ncol // 2 - 13:ncol // 2 + 12, :].set(15.0)
        self.weight_parameters = temp

        # Denoiser (ResBlock stand-in) weights, stored in im2col-matmul layout.
        out_ch = 4 if unc_map else 2
        F = filter_channels

        def winit(k, cout, cin):
            w = jax.random.normal(k, (cout, cin, 3, 3), f32)
            return w * (2.0 / (cin * 9)) ** 0.5 * 0.5

        def to_mat(w):
            cout, cin = w.shape[0], w.shape[1]
            # column index = (dh*3 + dw)*Cin + ci
            return jnp.transpose(w, (0, 2, 3, 1)).reshape(cout, 9 * cin)

        w1 = winit(ks[1], F, input_channels)
        w2 = winit(ks[2], F, F)
        w3 = winit(ks[3], out_ch, F)
        self.conv_w = (to_mat(w1), to_mat(w2), to_mat(w3))
        self.conv_b = (jnp.zeros((F, 1), f32), jnp.zeros((F, 1), f32),
                       jnp.zeros((out_ch, 1), f32))

        # Precomputed 256x256 transform operators (shift/flip folded in) and
        # the 3x3-conv tap validity masks / lane shifts.
        self.fwd_ops, self.adj_ops = self._build_transform_ops(nrow, ncol)
        self.tap_masks, self._tap_shifts = self._build_taps(nrow, ncol)

        self._kernel = _make_forward_kernel(
            slope=float(slope), K=K, cg_iters=cg_iters, unc_map=unc_map,
            tap_shifts=self._tap_shifts)
        self._jit_forward = jax.jit(self._forward)

    # ------------------------------------------------------------------
    @staticmethod
    def _build_transform_ops(R, N):
        """Flat (R*N, R*N) right-multiplication operators for the forward
        (flip -> shift_row -> unnormalized FFT2) and adjoint
        (normalized IFFT2 -> shift_row -> flip) transforms."""
        def dft(n, sign, norm):
            idx = np.arange(n)
            w = np.exp(sign * 2j * np.pi * np.outer(idx, idx) / n)
            return w / n if norm else w

        sr = (1.0 - 2.0 * (np.arange(R) % 2)).astype(np.float64)   # (-1)^i
        sc = (1.0 - 2.0 * (np.arange(N) % 2)).astype(np.float64)   # (-1)^j

        # adjoint: img = flip(shift_rows(Wr @ K @ WcT)) = Wr' @ K @ WcT'
        Wr = dft(R, +1.0, True)
        WcT = dft(N, +1.0, True)
        Wr_p = np.roll(Wr, -(R // 2), axis=0) * sr[:, None]
        WcT_p = WcT * sc[None, :]
        adj = np.kron(Wr_p, WcT_p.T)                               # y = Op @ x

        # forward: k = Fr @ shift_rows(flip(Z)) @ FcT = Fr'' @ Z @ FcT''
        Fr = dft(R, -1.0, False)
        FcT = dft(N, -1.0, False)
        Fr_p = np.roll(Fr, -(R // 2), axis=1) * sr[None, :]
        FcT_p = FcT * sc[:, None]
        fwd = np.kron(Fr_p, FcT_p.T)

        def split(op):
            op_t = np.ascontiguousarray(op.T)                      # row-vector form
            re = jnp.asarray(op_t.real, jnp.float32)
            im = jnp.asarray(op_t.imag, jnp.float32)
            return re, im, re + im

        return split(fwd), split(adj)

    @staticmethod
    def _build_taps(R, N):
        hh, ww = np.meshgrid(np.arange(R), np.arange(N), indexing="ij")
        masks = np.zeros((9, R * N), np.float32)
        shifts = []
        for dh in range(3):
            for dw in range(3):
                t = dh * 3 + dw
                oh, ow = dh - 1, dw - 1
                valid = ((hh + oh >= 0) & (hh + oh < R) &
                         (ww + ow >= 0) & (ww + ow < N))
                masks[t] = valid.reshape(-1).astype(np.float32)
                shifts.append(oh * N + ow)
        return jnp.asarray(masks), tuple(shifts)

    # ------------------------------------------------------------------
    def __call__(self, kdata, csms, seed):
        return self._jit_forward(kdata, csms, seed)

    def _forward(self, kdata, csms, seed):
        f32 = jnp.float32
        B, C, R, N, _ = kdata.shape
        P = R * N

        kre = kdata[..., 0].reshape(B, C, P).astype(f32)
        kim = kdata[..., 1].reshape(B, C, P).astype(f32)
        cre = csms[..., 0].reshape(B, C, P).astype(f32)
        cim = csms[..., 1].reshape(B, C, P).astype(f32)
        wflat = self.weight_parameters[0, :, :, 0].reshape(1, P)

        key = jax.random.PRNGKey(seed[0])
        u = jax.random.uniform(key, (1, P), f32)

        ffr, ffi, ffs = self.fwd_ops
        far, fai, fas = self.adj_ops
        w1, w2, w3 = self.conv_w
        b1, b2, b3 = self.conv_b
        Kk = self.K

        def cmap(rank):
            zeros = (0,) * rank
            return lambda b: zeros

        bmap3 = lambda b: (b, 0, 0)
        bmap4 = lambda b: (b, 0, 0, 0)

        in_specs = [
            pl.BlockSpec((1, P), cmap(2)),              # w
            pl.BlockSpec((1, P), cmap(2)),              # u
            pl.BlockSpec((1, 1), cmap(2)),              # lambda
            pl.BlockSpec((1, C, P), bmap3),             # kdata re
            pl.BlockSpec((1, C, P), bmap3),             # kdata im
            pl.BlockSpec((1, C, P), bmap3),             # csm re
            pl.BlockSpec((1, C, P), bmap3),             # csm im
            pl.BlockSpec((P, P), cmap(2)),              # fwd op re
            pl.BlockSpec((P, P), cmap(2)),              # fwd op im
            pl.BlockSpec((P, P), cmap(2)),              # fwd op re+im
            pl.BlockSpec((P, P), cmap(2)),              # adj op re
            pl.BlockSpec((P, P), cmap(2)),              # adj op im
            pl.BlockSpec((P, P), cmap(2)),              # adj op re+im
            pl.BlockSpec((9, P), cmap(2)),              # conv tap masks
            pl.BlockSpec(tuple(w1.shape), cmap(2)),
            pl.BlockSpec(tuple(b1.shape), cmap(2)),
            pl.BlockSpec(tuple(w2.shape), cmap(2)),
            pl.BlockSpec(tuple(b2.shape), cmap(2)),
            pl.BlockSpec(tuple(w3.shape), cmap(2)),
            pl.BlockSpec(tuple(b3.shape), cmap(2)),
        ]
        out_shapes = [jax.ShapeDtypeStruct((B, Kk, 2, P), f32)]
        out_specs = [pl.BlockSpec((1, Kk, 2, P), bmap4)]
        if self.unc_map:
            out_shapes.append(jax.ShapeDtypeStruct((B, Kk, 2, P), f32))
            out_specs.append(pl.BlockSpec((1, Kk, 2, P), bmap4))

        outs = pl.pallas_call(
            self._kernel,
            out_shape=tuple(out_shapes),
            grid=(B,),
            in_specs=in_specs,
            out_specs=tuple(out_specs),
            compiler_params=pltpu.CompilerParams(
                dimension_semantics=("parallel",)),
        )(wflat, u, self.lambda_dll2, kre, kim, cre, cim,
          ffr, ffi, ffs, far, fai, fas, self.tap_masks,
          w1, b1, w2, b2, w3, b3)

        xs = outs[0].reshape(B, Kk, 2, R, N)
        Xs = [xs[:, i] for i in range(Kk)]
        if self.unc_map:
            unc = outs[1].reshape(B, Kk, 2, R, N)
            Unc = [unc[:, i] for i in range(Kk)]
            return Xs, Unc
        return Xs


# --------------------------------------------------------------------------
if __name__ == "__main__":
    root = jax.random.PRNGKey(0)
    kk, kc, kp = jax.random.split(root, 3)
    B, C, R, N = 2, 4, 16, 16

    kdata = jax.random.normal(kk, (B, C, R, N, 2), jnp.float32)
    csms = 0.3 * jax.random.normal(kc, (B, C, R, N, 2), jnp.float32)
    seed = jnp.array([0], dtype=jnp.int32)

    model = DCWithStraightThroughPmaskPallas(
        input_channels=2, filter_channels=8, lambda_dll2=0.01,
        ncoil=C, nrow=R, ncol=N, K=1, unc_map=False, slope=0.25,
        samplingRatio=0.1, cg_iters=10, key=kp)

    Xs = model(kdata, csms, seed)
    Xs = jax.block_until_ready(Xs)

    assert isinstance(Xs, list) and len(Xs) == 1
    assert Xs[0].shape == (B, 2, R, N)
    assert bool(jnp.all(jnp.isfinite(Xs[0])))
    print("KERNEL_OK")
</pallas_src>

<mosaic_0001>
module attributes {stable_mosaic.version = 11 : i64} {
  func.func @kernel(%arg0: i32, %arg1: memref<1x256xf32, #tpu.memory_space<vmem>>, %arg2: memref<1x256xf32, #tpu.memory_space<vmem>>, %arg3: memref<1x1xf32, #tpu.memory_space<vmem>>, %arg4: memref<1x4x256xf32, #tpu.memory_space<vmem>>, %arg5: memref<1x4x256xf32, #tpu.memory_space<vmem>>, %arg6: memref<1x4x256xf32, #tpu.memory_space<vmem>>, %arg7: memref<1x4x256xf32, #tpu.memory_space<vmem>>, %arg8: memref<256x256xf32, #tpu.memory_space<vmem>>, %arg9: memref<256x256xf32, #tpu.memory_space<vmem>>, %arg10: memref<256x256xf32, #tpu.memory_space<vmem>>, %arg11: memref<256x256xf32, #tpu.memory_space<vmem>>, %arg12: memref<256x256xf32, #tpu.memory_space<vmem>>, %arg13: memref<256x256xf32, #tpu.memory_space<vmem>>, %arg14: memref<9x256xf32, #tpu.memory_space<vmem>>, %arg15: memref<8x18xf32, #tpu.memory_space<vmem>>, %arg16: memref<8x1xf32, #tpu.memory_space<vmem>>, %arg17: memref<8x72xf32, #tpu.memory_space<vmem>>, %arg18: memref<8x1xf32, #tpu.memory_space<vmem>>, %arg19: memref<2x72xf32, #tpu.memory_space<vmem>>, %arg20: memref<2x1xf32, #tpu.memory_space<vmem>>, %arg21: memref<1x1x2x256xf32, #tpu.memory_space<vmem>>) attributes {dimension_semantics = [#tpu.dimension_semantics<parallel>], iteration_bounds = array<i64: 2>, scalar_prefetch = 0 : i64, scratch_operands = 0 : i64, tpu.core_type = #tpu.core_type<tc>, window_params = [{pipeline_mode = #tpu.pipeline_mode<synchronous>, transform_indices = @transform_0, window_bounds = array<i64: 1, 256>}, {pipeline_mode = #tpu.pipeline_mode<synchronous>, transform_indices = @transform_1, window_bounds = array<i64: 1, 256>}, {pipeline_mode = #tpu.pipeline_mode<synchronous>, transform_indices = @transform_2, window_bounds = array<i64: 1, 1>}, {transform_indices = @transform_3, window_bounds = array<i64: 1, 4, 256>}, {transform_indices = @transform_4, window_bounds = array<i64: 1, 4, 256>}, {transform_indices = @transform_5, window_bounds = array<i64: 1, 4, 256>}, {transform_indices = @transform_6, window_bounds = array<i64: 1, 4, 256>}, {pipeline_mode = #tpu.pipeline_mode<synchronous>, transform_indices = @transform_7, window_bounds = array<i64: 256, 256>}, {pipeline_mode = #tpu.pipeline_mode<synchronous>, transform_indices = @transform_8, window_bounds = array<i64: 256, 256>}, {pipeline_mode = #tpu.pipeline_mode<synchronous>, transform_indices = @transform_9, window_bounds = array<i64: 256, 256>}, {pipeline_mode = #tpu.pipeline_mode<synchronous>, transform_indices = @transform_10, window_bounds = array<i64: 256, 256>}, {pipeline_mode = #tpu.pipeline_mode<synchronous>, transform_indices = @transform_11, window_bounds = array<i64: 256, 256>}, {pipeline_mode = #tpu.pipeline_mode<synchronous>, transform_indices = @transform_12, window_bounds = array<i64: 256, 256>}, {pipeline_mode = #tpu.pipeline_mode<synchronous>, transform_indices = @transform_13, window_bounds = array<i64: 9, 256>}, {pipeline_mode = #tpu.pipeline_mode<synchronous>, transform_indices = @transform_14, window_bounds = array<i64: 8, 18>}, {pipeline_mode = #tpu.pipeline_mode<synchronous>, transform_indices = @transform_15, window_bounds = array<i64: 8, 1>}, {pipeline_mode = #tpu.pipeline_mode<synchronous>, transform_indices = @transform_16, window_bounds = array<i64: 8, 72>}, {pipeline_mode = #tpu.pipeline_mode<synchronous>, transform_indices = @transform_17, window_bounds = array<i64: 8, 1>}, {pipeline_mode = #tpu.pipeline_mode<synchronous>, transform_indices = @transform_18, window_bounds = array<i64: 2, 72>}, {pipeline_mode = #tpu.pipeline_mode<synchronous>, transform_indices = @transform_19, window_bounds = array<i64: 2, 1>}, {transform_indices = @transform_20, window_bounds = array<i64: 1, 1, 2, 256>}]} {
    %c0 = arith.constant 0 : index
    %c0_0 = arith.constant 0 : index
    %0 = vector.load %arg3[%c0, %c0_0] : memref<1x1xf32, #tpu.memory_space<vmem>>, vector<1x1xf32>
    %1 = vector.extract %0[0, 0] : f32 from vector<1x1xf32>
    %c0_1 = arith.constant 0 : index
    %c0_2 = arith.constant 0 : index
    %2 = vector.load %arg1[%c0_1, %c0_2] : memref<1x256xf32, #tpu.memory_space<vmem>>, vector<1x256xf32>
    %cst = arith.constant -2.500000e-01 : f32
    %3 = vector.broadcast %cst : f32 to vector<1x256xf32>
    %4 = arith.mulf %3, %2 : vector<1x256xf32>
    %5 = math.exp %4 : vector<1x256xf32>
    %cst_3 = arith.constant 1.000000e+00 : f32
    %6 = vector.broadcast %cst_3 : f32 to vector<1x256xf32>
    %7 = arith.addf %6, %5 : vector<1x256xf32>
    %cst_4 = arith.constant 1.000000e+00 : f32
    %8 = vector.broadcast %cst_4 : f32 to vector<1x256xf32>
    %9 = arith.divf %8, %7 : vector<1x256xf32>
    %c0_5 = arith.constant 0 : index
    %c0_6 = arith.constant 0 : index
    %10 = vector.load %arg2[%c0_5, %c0_6] : memref<1x256xf32, #tpu.memory_space<vmem>>, vector<1x256xf32>
    %11 = arith.cmpf olt, %10, %9 : vector<1x256xf32>
    %12 = arith.extui %11 : vector<1x256xi1> to vector<1x256xi32>
    %13 = arith.sitofp %12 : vector<1x256xi32> to vector<1x256xf32>
    %c0_7 = arith.constant 0 : index
    %c0_8 = arith.constant 0 : index
    %c0_9 = arith.constant 0 : index
    %14 = vector.load %arg6[%c0_7, %c0_8, %c0_9] : memref<1x4x256xf32, #tpu.memory_space<vmem>>, vector<1x4x256xf32>
    %15 = vector.shape_cast %14 : vector<1x4x256xf32> to vector<4x256xf32>
    %c0_10 = arith.constant 0 : index
    %c0_11 = arith.constant 0 : index
    %c0_12 = arith.constant 0 : index
    %16 = vector.load %arg7[%c0_10, %c0_11, %c0_12] : memref<1x4x256xf32, #tpu.memory_space<vmem>>, vector<1x4x256xf32>
    %17 = vector.shape_cast %16 : vector<1x4x256xf32> to vector<4x256xf32>
    %c0_13 = arith.constant 0 : index
    %c0_14 = arith.constant 0 : index
    %18 = vector.load %arg8[%c0_13, %c0_14] : memref<256x256xf32, #tpu.memory_space<vmem>>, vector<256x256xf32>
    %c0_15 = arith.constant 0 : index
    %c0_16 = arith.constant 0 : index
    %19 = vector.load %arg9[%c0_15, %c0_16] : memref<256x256xf32, #tpu.memory_space<vmem>>, vector<256x256xf32>
    %c0_17 = arith.constant 0 : index
    %c0_18 = arith.constant 0 : index
    %20 = vector.load %arg10[%c0_17, %c0_18] : memref<256x256xf32, #tpu.memory_space<vmem>>, vector<256x256xf32>
    %c0_19 = arith.constant 0 : index
    %c0_20 = arith.constant 0 : index
    %21 = vector.load %arg11[%c0_19, %c0_20] : memref<256x256xf32, #tpu.memory_space<vmem>>, vector<256x256xf32>
    %c0_21 = arith.constant 0 : index
    %c0_22 = arith.constant 0 : index
    %22 = vector.load %arg12[%c0_21, %c0_22] : memref<256x256xf32, #tpu.memory_space<vmem>>, vector<256x256xf32>
    %c0_23 = arith.constant 0 : index
    %c0_24 = arith.constant 0 : index
    %23 = vector.load %arg13[%c0_23, %c0_24] : memref<256x256xf32, #tpu.memory_space<vmem>>, vector<256x256xf32>
    %c0_25 = arith.constant 0 : index
    %c0_26 = arith.constant 0 : index
    %24 = vector.load %arg14[%c0_25, %c0_26] : memref<9x256xf32, #tpu.memory_space<vmem>>, vector<9x256xf32>
    %c0_27 = arith.constant 0 : index
    %c0_28 = arith.constant 0 : index
    %c0_29 = arith.constant 0 : index
    %25 = vector.load %arg4[%c0_27, %c0_28, %c0_29] : memref<1x4x256xf32, #tpu.memory_space<vmem>>, vector<1x4x256xf32>
    %26 = vector.shape_cast %25 : vector<1x4x256xf32> to vector<4x256xf32>
    %27 = vector.broadcast %13 : vector<1x256xf32> to vector<4x256xf32>
    %28 = arith.mulf %26, %27 : vector<4x256xf32>
    %c0_30 = arith.constant 0 : index
    %c0_31 = arith.constant 0 : index
    %c0_32 = arith.constant 0 : index
    %29 = vector.load %arg5[%c0_30, %c0_31, %c0_32] : memref<1x4x256xf32, #tpu.memory_space<vmem>>, vector<1x4x256xf32>
    %30 = vector.shape_cast %29 : vector<1x4x256xf32> to vector<4x256xf32>
    %31 = vector.broadcast %13 : vector<1x256xf32> to vector<4x256xf32>
    %32 = arith.mulf %30, %31 : vector<4x256xf32>
    %cst_33 = arith.constant dense<0.000000e+00> : vector<4x256xf32>
    %33 = tpu.matmul %28, %21, %cst_33 {dimension_numbers = #tpu.dot_dimension_numbers<[1], [0], [0], [1], [0, 0, 1, 1], [], []>} : vector<4x256xf32>, vector<256x256xf32>, vector<4x256xf32> -> vector<4x256xf32>
    %cst_34 = arith.constant dense<0.000000e+00> : vector<4x256xf32>
    %34 = tpu.matmul %32, %22, %cst_34 {dimension_numbers = #tpu.dot_dimension_numbers<[1], [0], [0], [1], [0, 0, 1, 1], [], []>} : vector<4x256xf32>, vector<256x256xf32>, vector<4x256xf32> -> vector<4x256xf32>
    %35 = arith.addf %28, %32 : vector<4x256xf32>
    %cst_35 = arith.constant dense<0.000000e+00> : vector<4x256xf32>
    %36 = tpu.matmul %35, %23, %cst_35 {dimension_numbers = #tpu.dot_dimension_numbers<[1], [0], [0], [1], [0, 0, 1, 1], [], []>} : vector<4x256xf32>, vector<256x256xf32>, vector<4x256xf32> -> vector<4x256xf32>
    %37 = arith.subf %33, %34 : vector<4x256xf32>
    %38 = arith.subf %36, %33 : vector<4x256xf32>
    %39 = arith.subf %38, %34 : vector<4x256xf32>
    %40 = arith.mulf %37, %15 : vector<4x256xf32>
    %41 = arith.mulf %39, %17 : vector<4x256xf32>
    %42 = arith.addf %40, %41 : vector<4x256xf32>
    %cst_36 = arith.constant dense<0.000000e+00> : vector<256xf32>
    %43 = vector.multi_reduction <add>, %42, %cst_36 [0] : vector<4x256xf32> to vector<256xf32>
    %44 = vector.shape_cast %43 : vector<256xf32> to vector<1x256xf32>
    %45 = arith.mulf %39, %15 : vector<4x256xf32>
    %46 = arith.mulf %37, %17 : vector<4x256xf32>
    %47 = arith.subf %45, %46 : vector<4x256xf32>
    %cst_37 = arith.constant dense<0.000000e+00> : vector<256xf32>
    %48 = vector.multi_reduction <add>, %47, %cst_37 [0] : vector<4x256xf32> to vector<256xf32>
    %49 = vector.shape_cast %48 : vector<256xf32> to vector<1x256xf32>
    %50 = tpu.concatenate %44, %49 in 0 : vector<1x256xf32>, vector<1x256xf32> -> vector<2x256xf32>
    %c0_38 = arith.constant 0 : index
    %c0_39 = arith.constant 0 : index
    %51 = vector.load %arg15[%c0_38, %c0_39] : memref<8x18xf32, #tpu.memory_space<vmem>>, vector<8x18xf32>
    %c0_40 = arith.constant 0 : index
    %c0_41 = arith.constant 0 : index
    %52 = vector.load %arg16[%c0_40, %c0_41] : memref<8x1xf32, #tpu.memory_space<vmem>>, vector<8x1xf32>
    %53 = vector.extract_strided_slice %50 {offsets = [0, 239], sizes = [2, 17], strides = [1, 1]} : vector<2x256xf32> to vector<2x17xf32>
    %54 = vector.extract_strided_slice %50 {offsets = [0, 0], sizes = [2, 239], strides = [1, 1]} : vector<2x256xf32> to vector<2x239xf32>
    %55 = tpu.concatenate %53, %54 in 1 : vector<2x17xf32>, vector<2x239xf32> -> vector<2x256xf32>
    %56 = vector.extract_strided_slice %24 {offsets = [0, 0], sizes = [1, 256], strides = [1, 1]} : vector<9x256xf32> to vector<1x256xf32>
    %57 = vector.broadcast %56 : vector<1x256xf32> to vector<2x256xf32>
    %58 = arith.mulf %55, %57 : vector<2x256xf32>
    %59 = vector.extract_strided_slice %50 {offsets = [0, 240], sizes = [2, 16], strides = [1, 1]} : vector<2x256xf32> to vector<2x16xf32>
    %60 = vector.extract_strided_slice %50 {offsets = [0, 0], sizes = [2, 240], strides = [1, 1]} : vector<2x256xf32> to vector<2x240xf32>
    %61 = tpu.concatenate %59, %60 in 1 : vector<2x16xf32>, vector<2x240xf32> -> vector<2x256xf32>
    %62 = vector.extract_strided_slice %24 {offsets = [1, 0], sizes = [1, 256], strides = [1, 1]} : vector<9x256xf32> to vector<1x256xf32>
    %63 = vector.broadcast %62 : vector<1x256xf32> to vector<2x256xf32>
    %64 = arith.mulf %61, %63 : vector<2x256xf32>
    %65 = vector.extract_strided_slice %50 {offsets = [0, 241], sizes = [2, 15], strides = [1, 1]} : vector<2x256xf32> to vector<2x15xf32>
    %66 = vector.extract_strided_slice %50 {offsets = [0, 0], sizes = [2, 241], strides = [1, 1]} : vector<2x256xf32> to vector<2x241xf32>
    %67 = tpu.concatenate %65, %66 in 1 : vector<2x15xf32>, vector<2x241xf32> -> vector<2x256xf32>
    %68 = vector.extract_strided_slice %24 {offsets = [2, 0], sizes = [1, 256], strides = [1, 1]} : vector<9x256xf32> to vector<1x256xf32>
    %69 = vector.broadcast %68 : vector<1x256xf32> to vector<2x256xf32>
    %70 = arith.mulf %67, %69 : vector<2x256xf32>
    %71 = vector.extract_strided_slice %50 {offsets = [0, 255], sizes = [2, 1], strides = [1, 1]} : vector<2x256xf32> to vector<2x1xf32>
    %72 = vector.extract_strided_slice %50 {offsets = [0, 0], sizes = [2, 255], strides = [1, 1]} : vector<2x256xf32> to vector<2x255xf32>
    %73 = tpu.concatenate %71, %72 in 1 : vector<2x1xf32>, vector<2x255xf32> -> vector<2x256xf32>
    %74 = vector.extract_strided_slice %24 {offsets = [3, 0], sizes = [1, 256], strides = [1, 1]} : vector<9x256xf32> to vector<1x256xf32>
    %75 = vector.broadcast %74 : vector<1x256xf32> to vector<2x256xf32>
    %76 = arith.mulf %73, %75 : vector<2x256xf32>
    %77 = vector.extract_strided_slice %24 {offsets = [4, 0], sizes = [1, 256], strides = [1, 1]} : vector<9x256xf32> to vector<1x256xf32>
    %78 = vector.broadcast %77 : vector<1x256xf32> to vector<2x256xf32>
    %79 = arith.mulf %50, %78 : vector<2x256xf32>
    %80 = vector.extract_strided_slice %50 {offsets = [0, 1], sizes = [2, 255], strides = [1, 1]} : vector<2x256xf32> to vector<2x255xf32>
    %81 = vector.extract_strided_slice %50 {offsets = [0, 0], sizes = [2, 1], strides = [1, 1]} : vector<2x256xf32> to vector<2x1xf32>
    %82 = tpu.concatenate %80, %81 in 1 : vector<2x255xf32>, vector<2x1xf32> -> vector<2x256xf32>
    %83 = vector.extract_strided_slice %24 {offsets = [5, 0], sizes = [1, 256], strides = [1, 1]} : vector<9x256xf32> to vector<1x256xf32>
    %84 = vector.broadcast %83 : vector<1x256xf32> to vector<2x256xf32>
    %85 = arith.mulf %82, %84 : vector<2x256xf32>
    %86 = vector.extract_strided_slice %50 {offsets = [0, 15], sizes = [2, 241], strides = [1, 1]} : vector<2x256xf32> to vector<2x241xf32>
    %87 = vector.extract_strided_slice %50 {offsets = [0, 0], sizes = [2, 15], strides = [1, 1]} : vector<2x256xf32> to vector<2x15xf32>
    %88 = tpu.concatenate %86, %87 in 1 : vector<2x241xf32>, vector<2x15xf32> -> vector<2x256xf32>
    %89 = vector.extract_strided_slice %24 {offsets = [6, 0], sizes = [1, 256], strides = [1, 1]} : vector<9x256xf32> to vector<1x256xf32>
    %90 = vector.broadcast %89 : vector<1x256xf32> to vector<2x256xf32>
    %91 = arith.mulf %88, %90 : vector<2x256xf32>
    %92 = vector.extract_strided_slice %50 {offsets = [0, 16], sizes = [2, 240], strides = [1, 1]} : vector<2x256xf32> to vector<2x240xf32>
    %93 = vector.extract_strided_slice %50 {offsets = [0, 0], sizes = [2, 16], strides = [1, 1]} : vector<2x256xf32> to vector<2x16xf32>
    %94 = tpu.concatenate %92, %93 in 1 : vector<2x240xf32>, vector<2x16xf32> -> vector<2x256xf32>
    %95 = vector.extract_strided_slice %24 {offsets = [7, 0], sizes = [1, 256], strides = [1, 1]} : vector<9x256xf32> to vector<1x256xf32>
    %96 = vector.broadcast %95 : vector<1x256xf32> to vector<2x256xf32>
    %97 = arith.mulf %94, %96 : vector<2x256xf32>
    %98 = vector.extract_strided_slice %50 {offsets = [0, 17], sizes = [2, 239], strides = [1, 1]} : vector<2x256xf32> to vector<2x239xf32>
    %99 = vector.extract_strided_slice %50 {offsets = [0, 0], sizes = [2, 17], strides = [1, 1]} : vector<2x256xf32> to vector<2x17xf32>
    %100 = tpu.concatenate %98, %99 in 1 : vector<2x239xf32>, vector<2x17xf32> -> vector<2x256xf32>
    %101 = vector.extract_strided_slice %24 {offsets = [8, 0], sizes = [1, 256], strides = [1, 1]} : vector<9x256xf32> to vector<1x256xf32>
    %102 = vector.broadcast %101 : vector<1x256xf32> to vector<2x256xf32>
    %103 = arith.mulf %100, %102 : vector<2x256xf32>
    %104 = tpu.concatenate %58, %64, %70, %76, %79, %85, %91, %97, %103 in 0 : vector<2x256xf32>, vector<2x256xf32>, vector<2x256xf32>, vector<2x256xf32>, vector<2x256xf32>, vector<2x256xf32>, vector<2x256xf32>, vector<2x256xf32>, vector<2x256xf32> -> vector<18x256xf32>
    %cst_42 = arith.constant dense<0.000000e+00> : vector<8x256xf32>
    %105 = tpu.matmul %51, %104, %cst_42 {dimension_numbers = #tpu.dot_dimension_numbers<[1], [0], [0], [1], [0, 0, 1, 1], [], []>} : vector<8x18xf32>, vector<18x256xf32>, vector<8x256xf32> -> vector<8x256xf32>
    %106 = vector.broadcast %52 : vector<8x1xf32> to vector<8x256xf32>
    %107 = arith.addf %105, %106 : vector<8x256xf32>
    %cst_43 = arith.constant 0.000000e+00 : f32
    %108 = vector.broadcast %cst_43 : f32 to vector<8x256xf32>
    %109 = arith.maximumf %107, %108 : vector<8x256xf32>
    %c0_44 = arith.constant 0 : index
    %c0_45 = arith.constant 0 : index
    %110 = vector.load %arg17[%c0_44, %c0_45] : memref<8x72xf32, #tpu.memory_space<vmem>>, vector<8x72xf32>
    %c0_46 = arith.constant 0 : index
    %c0_47 = arith.constant 0 : index
    %111 = vector.load %arg18[%c0_46, %c0_47] : memref<8x1xf32, #tpu.memory_space<vmem>>, vector<8x1xf32>
    %112 = vector.extract_strided_slice %109 {offsets = [0, 239], sizes = [8, 17], strides = [1, 1]} : vector<8x256xf32> to vector<8x17xf32>
    %113 = vector.extract_strided_slice %109 {offsets = [0, 0], sizes = [8, 239], strides = [1, 1]} : vector<8x256xf32> to vector<8x239xf32>
    %114 = tpu.concatenate %112, %113 in 1 : vector<8x17xf32>, vector<8x239xf32> -> vector<8x256xf32>
    %115 = vector.extract_strided_slice %24 {offsets = [0, 0], sizes = [1, 256], strides = [1, 1]} : vector<9x256xf32> to vector<1x256xf32>
    %116 = vector.broadcast %115 : vector<1x256xf32> to vector<8x256xf32>
    %117 = arith.mulf %114, %116 : vector<8x256xf32>
    %118 = vector.extract_strided_slice %109 {offsets = [0, 240], sizes = [8, 16], strides = [1, 1]} : vector<8x256xf32> to vector<8x16xf32>
    %119 = vector.extract_strided_slice %109 {offsets = [0, 0], sizes = [8, 240], strides = [1, 1]} : vector<8x256xf32> to vector<8x240xf32>
    %120 = tpu.concatenate %118, %119 in 1 : vector<8x16xf32>, vector<8x240xf32> -> vector<8x256xf32>
    %121 = vector.extract_strided_slice %24 {offsets = [1, 0], sizes = [1, 256], strides = [1, 1]} : vector<9x256xf32> to vector<1x256xf32>
    %122 = vector.broadcast %121 : vector<1x256xf32> to vector<8x256xf32>
    %123 = arith.mulf %120, %122 : vector<8x256xf32>
    %124 = vector.extract_strided_slice %109 {offsets = [0, 241], sizes = [8, 15], strides = [1, 1]} : vector<8x256xf32> to vector<8x15xf32>
    %125 = vector.extract_strided_slice %109 {offsets = [0, 0], sizes = [8, 241], strides = [1, 1]} : vector<8x256xf32> to vector<8x241xf32>
    %126 = tpu.concatenate %124, %125 in 1 : vector<8x15xf32>, vector<8x241xf32> -> vector<8x256xf32>
    %127 = vector.extract_strided_slice %24 {offsets = [2, 0], sizes = [1, 256], strides = [1, 1]} : vector<9x256xf32> to vector<1x256xf32>
    %128 = vector.broadcast %127 : vector<1x256xf32> to vector<8x256xf32>
    %129 = arith.mulf %126, %128 : vector<8x256xf32>
    %130 = vector.extract_strided_slice %109 {offsets = [0, 255], sizes = [8, 1], strides = [1, 1]} : vector<8x256xf32> to vector<8x1xf32>
    %131 = vector.extract_strided_slice %109 {offsets = [0, 0], sizes = [8, 255], strides = [1, 1]} : vector<8x256xf32> to vector<8x255xf32>
    %132 = tpu.concatenate %130, %131 in 1 : vector<8x1xf32>, vector<8x255xf32> -> vector<8x256xf32>
    %133 = vector.extract_strided_slice %24 {offsets = [3, 0], sizes = [1, 256], strides = [1, 1]} : vector<9x256xf32> to vector<1x256xf32>
    %134 = vector.broadcast %133 : vector<1x256xf32> to vector<8x256xf32>
    %135 = arith.mulf %132, %134 : vector<8x256xf32>
    %136 = vector.extract_strided_slice %24 {offsets = [4, 0], sizes = [1, 256], strides = [1, 1]} : vector<9x256xf32> to vector<1x256xf32>
    %137 = vector.broadcast %136 : vector<1x256xf32> to vector<8x256xf32>
    %138 = arith.mulf %109, %137 : vector<8x256xf32>
    %139 = vector.extract_strided_slice %109 {offsets = [0, 1], sizes = [8, 255], strides = [1, 1]} : vector<8x256xf32> to vector<8x255xf32>
    %140 = vector.extract_strided_slice %109 {offsets = [0, 0], sizes = [8, 1], strides = [1, 1]} : vector<8x256xf32> to vector<8x1xf32>
    %141 = tpu.concatenate %139, %140 in 1 : vector<8x255xf32>, vector<8x1xf32> -> vector<8x256xf32>
    %142 = vector.extract_strided_slice %24 {offsets = [5, 0], sizes = [1, 256], strides = [1, 1]} : vector<9x256xf32> to vector<1x256xf32>
    %143 = vector.broadcast %142 : vector<1x256xf32> to vector<8x256xf32>
    %144 = arith.mulf %141, %143 : vector<8x256xf32>
    %145 = vector.extract_strided_slice %109 {offsets = [0, 15], sizes = [8, 241], strides = [1, 1]} : vector<8x256xf32> to vector<8x241xf32>
    %146 = vector.extract_strided_slice %109 {offsets = [0, 0], sizes = [8, 15], strides = [1, 1]} : vector<8x256xf32> to vector<8x15xf32>
    %147 = tpu.concatenate %145, %146 in 1 : vector<8x241xf32>, vector<8x15xf32> -> vector<8x256xf32>
    %148 = vector.extract_strided_slice %24 {offsets = [6, 0], sizes = [1, 256], strides = [1, 1]} : vector<9x256xf32> to vector<1x256xf32>
    %149 = vector.broadcast %148 : vector<1x256xf32> to vector<8x256xf32>
    %150 = arith.mulf %147, %149 : vector<8x256xf32>
    %151 = vector.extract_strided_slice %109 {offsets = [0, 16], sizes = [8, 240], strides = [1, 1]} : vector<8x256xf32> to vector<8x240xf32>
    %152 = vector.extract_strided_slice %109 {offsets = [0, 0], sizes = [8, 16], strides = [1, 1]} : vector<8x256xf32> to vector<8x16xf32>
    %153 = tpu.concatenate %151, %152 in 1 : vector<8x240xf32>, vector<8x16xf32> -> vector<8x256xf32>
    %154 = vector.extract_strided_slice %24 {offsets = [7, 0], sizes = [1, 256], strides = [1, 1]} : vector<9x256xf32> to vector<1x256xf32>
    %155 = vector.broadcast %154 : vector<1x256xf32> to vector<8x256xf32>
    %156 = arith.mulf %153, %155 : vector<8x256xf32>
    %157 = vector.extract_strided_slice %109 {offsets = [0, 17], sizes = [8, 239], strides = [1, 1]} : vector<8x256xf32> to vector<8x239xf32>
    %158 = vector.extract_strided_slice %109 {offsets = [0, 0], sizes = [8, 17], strides = [1, 1]} : vector<8x256xf32> to vector<8x17xf32>
    %159 = tpu.concatenate %157, %158 in 1 : vector<8x239xf32>, vector<8x17xf32> -> vector<8x256xf32>
    %160 = vector.extract_strided_slice %24 {offsets = [8, 0], sizes = [1, 256], strides = [1, 1]} : vector<9x256xf32> to vector<1x256xf32>
    %161 = vector.broadcast %160 : vector<1x256xf32> to vector<8x256xf32>
    %162 = arith.mulf %159, %161 : vector<8x256xf32>
    %163 = tpu.concatenate %117, %123, %129, %135, %138, %144, %150, %156, %162 in 0 : vector<8x256xf32>, vector<8x256xf32>, vector<8x256xf32>, vector<8x256xf32>, vector<8x256xf32>, vector<8x256xf32>, vector<8x256xf32>, vector<8x256xf32>, vector<8x256xf32> -> vector<72x256xf32>
    %cst_48 = arith.constant dense<0.000000e+00> : vector<8x256xf32>
    %164 = tpu.matmul %110, %163, %cst_48 {dimension_numbers = #tpu.dot_dimension_numbers<[1], [0], [0], [1], [0, 0, 1, 1], [], []>} : vector<8x72xf32>, vector<72x256xf32>, vector<8x256xf32> -> vector<8x256xf32>
    %165 = vector.broadcast %111 : vector<8x1xf32> to vector<8x256xf32>
    %166 = arith.addf %164, %165 : vector<8x256xf32>
    %cst_49 = arith.constant 0.000000e+00 : f32
    %167 = vector.broadcast %cst_49 : f32 to vector<8x256xf32>
    %168 = arith.maximumf %166, %167 : vector<8x256xf32>
    %c0_50 = arith.constant 0 : index
    %c0_51 = arith.constant 0 : index
    %169 = vector.load %arg19[%c0_50, %c0_51] : memref<2x72xf32, #tpu.memory_space<vmem>>, vector<2x72xf32>
    %c0_52 = arith.constant 0 : index
    %c0_53 = arith.constant 0 : index
    %170 = vector.load %arg20[%c0_52, %c0_53] : memref<2x1xf32, #tpu.memory_space<vmem>>, vector<2x1xf32>
    %171 = vector.extract_strided_slice %168 {offsets = [0, 239], sizes = [8, 17], strides = [1, 1]} : vector<8x256xf32> to vector<8x17xf32>
    %172 = vector.extract_strided_slice %168 {offsets = [0, 0], sizes = [8, 239], strides = [1, 1]} : vector<8x256xf32> to vector<8x239xf32>
    %173 = tpu.concatenate %171, %172 in 1 : vector<8x17xf32>, vector<8x239xf32> -> vector<8x256xf32>
    %174 = vector.extract_strided_slice %24 {offsets = [0, 0], sizes = [1, 256], strides = [1, 1]} : vector<9x256xf32> to vector<1x256xf32>
    %175 = vector.broadcast %174 : vector<1x256xf32> to vector<8x256xf32>
    %176 = arith.mulf %173, %175 : vector<8x256xf32>
    %177 = vector.extract_strided_slice %168 {offsets = [0, 240], sizes = [8, 16], strides = [1, 1]} : vector<8x256xf32> to vector<8x16xf32>
    %178 = vector.extract_strided_slice %168 {offsets = [0, 0], sizes = [8, 240], strides = [1, 1]} : vector<8x256xf32> to vector<8x240xf32>
    %179 = tpu.concatenate %177, %178 in 1 : vector<8x16xf32>, vector<8x240xf32> -> vector<8x256xf32>
    %180 = vector.extract_strided_slice %24 {offsets = [1, 0], sizes = [1, 256], strides = [1, 1]} : vector<9x256xf32> to vector<1x256xf32>
    %181 = vector.broadcast %180 : vector<1x256xf32> to vector<8x256xf32>
    %182 = arith.mulf %179, %181 : vector<8x256xf32>
    %183 = vector.extract_strided_slice %168 {offsets = [0, 241], sizes = [8, 15], strides = [1, 1]} : vector<8x256xf32> to vector<8x15xf32>
    %184 = vector.extract_strided_slice %168 {offsets = [0, 0], sizes = [8, 241], strides = [1, 1]} : vector<8x256xf32> to vector<8x241xf32>
    %185 = tpu.concatenate %183, %184 in 1 : vector<8x15xf32>, vector<8x241xf32> -> vector<8x256xf32>
    %186 = vector.extract_strided_slice %24 {offsets = [2, 0], sizes = [1, 256], strides = [1, 1]} : vector<9x256xf32> to vector<1x256xf32>
    %187 = vector.broadcast %186 : vector<1x256xf32> to vector<8x256xf32>
    %188 = arith.mulf %185, %187 : vector<8x256xf32>
    %189 = vector.extract_strided_slice %168 {offsets = [0, 255], sizes = [8, 1], strides = [1, 1]} : vector<8x256xf32> to vector<8x1xf32>
    %190 = vector.extract_strided_slice %168 {offsets = [0, 0], sizes = [8, 255], strides = [1, 1]} : vector<8x256xf32> to vector<8x255xf32>
    %191 = tpu.concatenate %189, %190 in 1 : vector<8x1xf32>, vector<8x255xf32> -> vector<8x256xf32>
    %192 = vector.extract_strided_slice %24 {offsets = [3, 0], sizes = [1, 256], strides = [1, 1]} : vector<9x256xf32> to vector<1x256xf32>
    %193 = vector.broadcast %192 : vector<1x256xf32> to vector<8x256xf32>
    %194 = arith.mulf %191, %193 : vector<8x256xf32>
    %195 = vector.extract_strided_slice %24 {offsets = [4, 0], sizes = [1, 256], strides = [1, 1]} : vector<9x256xf32> to vector<1x256xf32>
    %196 = vector.broadcast %195 : vector<1x256xf32> to vector<8x256xf32>
    %197 = arith.mulf %168, %196 : vector<8x256xf32>
    %198 = vector.extract_strided_slice %168 {offsets = [0, 1], sizes = [8, 255], strides = [1, 1]} : vector<8x256xf32> to vector<8x255xf32>
    %199 = vector.extract_strided_slice %168 {offsets = [0, 0], sizes = [8, 1], strides = [1, 1]} : vector<8x256xf32> to vector<8x1xf32>
    %200 = tpu.concatenate %198, %199 in 1 : vector<8x255xf32>, vector<8x1xf32> -> vector<8x256xf32>
    %201 = vector.extract_strided_slice %24 {offsets = [5, 0], sizes = [1, 256], strides = [1, 1]} : vector<9x256xf32> to vector<1x256xf32>
    %202 = vector.broadcast %201 : vector<1x256xf32> to vector<8x256xf32>
    %203 = arith.mulf %200, %202 : vector<8x256xf32>
    %204 = vector.extract_strided_slice %168 {offsets = [0, 15], sizes = [8, 241], strides = [1, 1]} : vector<8x256xf32> to vector<8x241xf32>
    %205 = vector.extract_strided_slice %168 {offsets = [0, 0], sizes = [8, 15], strides = [1, 1]} : vector<8x256xf32> to vector<8x15xf32>
    %206 = tpu.concatenate %204, %205 in 1 : vector<8x241xf32>, vector<8x15xf32> -> vector<8x256xf32>
    %207 = vector.extract_strided_slice %24 {offsets = [6, 0], sizes = [1, 256], strides = [1, 1]} : vector<9x256xf32> to vector<1x256xf32>
    %208 = vector.broadcast %207 : vector<1x256xf32> to vector<8x256xf32>
    %209 = arith.mulf %206, %208 : vector<8x256xf32>
    %210 = vector.extract_strided_slice %168 {offsets = [0, 16], sizes = [8, 240], strides = [1, 1]} : vector<8x256xf32> to vector<8x240xf32>
    %211 = vector.extract_strided_slice %168 {offsets = [0, 0], sizes = [8, 16], strides = [1, 1]} : vector<8x256xf32> to vector<8x16xf32>
    %212 = tpu.concatenate %210, %211 in 1 : vector<8x240xf32>, vector<8x16xf32> -> vector<8x256xf32>
    %213 = vector.extract_strided_slice %24 {offsets = [7, 0], sizes = [1, 256], strides = [1, 1]} : vector<9x256xf32> to vector<1x256xf32>
    %214 = vector.broadcast %213 : vector<1x256xf32> to vector<8x256xf32>
    %215 = arith.mulf %212, %214 : vector<8x256xf32>
    %216 = vector.extract_strided_slice %168 {offsets = [0, 17], sizes = [8, 239], strides = [1, 1]} : vector<8x256xf32> to vector<8x239xf32>
    %217 = vector.extract_strided_slice %168 {offsets = [0, 0], sizes = [8, 17], strides = [1, 1]} : vector<8x256xf32> to vector<8x17xf32>
    %218 = tpu.concatenate %216, %217 in 1 : vector<8x239xf32>, vector<8x17xf32> -> vector<8x256xf32>
    %219 = vector.extract_strided_slice %24 {offsets = [8, 0], sizes = [1, 256], strides = [1, 1]} : vector<9x256xf32> to vector<1x256xf32>
    %220 = vector.broadcast %219 : vector<1x256xf32> to vector<8x256xf32>
    %221 = arith.mulf %218, %220 : vector<8x256xf32>
    %222 = tpu.concatenate %176, %182, %188, %194, %197, %203, %209, %215, %221 in 0 : vector<8x256xf32>, vector<8x256xf32>, vector<8x256xf32>, vector<8x256xf32>, vector<8x256xf32>, vector<8x256xf32>, vector<8x256xf32>, vector<8x256xf32>, vector<8x256xf32> -> vector<72x256xf32>
    %cst_54 = arith.constant dense<0.000000e+00> : vector<2x256xf32>
    %223 = tpu.matmul %169, %222, %cst_54 {dimension_numbers = #tpu.dot_dimension_numbers<[1], [0], [0], [1], [0, 0, 1, 1], [], []>} : vector<2x72xf32>, vector<72x256xf32>, vector<2x256xf32> -> vector<2x256xf32>
    %224 = vector.broadcast %170 : vector<2x1xf32> to vector<2x256xf32>
    %225 = arith.addf %223, %224 : vector<2x256xf32>
    %226 = vector.extract_strided_slice %225 {offsets = [0, 0], sizes = [1, 256], strides = [1, 1]} : vector<2x256xf32> to vector<1x256xf32>
    %227 = arith.subf %44, %226 : vector<1x256xf32>
    %228 = vector.broadcast %1 : f32 to vector<1x256xf32>
    %229 = arith.mulf %228, %227 : vector<1x256xf32>
    %230 = arith.addf %44, %229 : vector<1x256xf32>
    %231 = vector.extract_strided_slice %225 {offsets = [1, 0], sizes = [1, 256], strides = [1, 1]} : vector<2x256xf32> to vector<1x256xf32>
    %232 = arith.subf %49, %231 : vector<1x256xf32>
    %233 = vector.broadcast %1 : f32 to vector<1x256xf32>
    %234 = arith.mulf %233, %232 : vector<1x256xf32>
    %235 = arith.addf %49, %234 : vector<1x256xf32>
    %cst_55 = arith.constant 0.000000e+00 : f32
    %236 = vector.broadcast %cst_55 : f32 to vector<1x256xf32>
    %237 = arith.mulf %230, %230 : vector<1x256xf32>
    %238 = arith.mulf %235, %235 : vector<1x256xf32>
    %239 = arith.addf %237, %238 : vector<1x256xf32>
    %240 = vector.shape_cast %239 : vector<1x256xf32> to vector<1x1x256xf32>
    %cst_56 = arith.constant dense<0.000000e+00> : vector<1xf32>
    %241 = vector.multi_reduction <add>, %240, %cst_56 [1, 2] : vector<1x1x256xf32> to vector<1xf32>
    %242 = vector.shape_cast %241 : vector<1xf32> to vector<1x1x1xf32>
    %243 = vector.extract %242[0, 0, 0] : f32 from vector<1x1x1xf32>
    %244 = vector.broadcast %243 : f32 to vector<1x1xf32>
    %c0_i32 = arith.constant 0 : i32
    %c10_i32 = arith.constant 10 : i32
    %245 = arith.addi %c0_i32, %c10_i32 : i32
    %c1_i32 = arith.constant 1 : i32
    %246:7 = scf.for %arg22 = %c0_i32 to %245 step %c1_i32 iter_args(%arg23 = %236, %arg24 = %236, %arg25 = %230, %arg26 = %235, %arg27 = %230, %arg28 = %235, %arg29 = %244) -> (vector<1x256xf32>, vector<1x256xf32>, vector<1x256xf32>, vector<1x256xf32>, vector<1x256xf32>, vector<1x256xf32>, vector<1x1xf32>)  : i32 {
      %251 = vector.broadcast %arg27 : vector<1x256xf32> to vector<4x256xf32>
      %252 = arith.mulf %15, %251 : vector<4x256xf32>
      %253 = vector.broadcast %arg28 : vector<1x256xf32> to vector<4x256xf32>
      %254 = arith.mulf %17, %253 : vector<4x256xf32>
      %255 = arith.subf %252, %254 : vector<4x256xf32>
      %256 = vector.broadcast %arg28 : vector<1x256xf32> to vector<4x256xf32>
      %257 = arith.mulf %15, %256 : vector<4x256xf32>
      %258 = vector.broadcast %arg27 : vector<1x256xf32> to vector<4x256xf32>
      %259 = arith.mulf %17, %258 : vector<4x256xf32>
      %260 = arith.addf %257, %259 : vector<4x256xf32>
      %cst_61 = arith.constant dense<0.000000e+00> : vector<4x256xf32>
      %261 = tpu.matmul %255, %18, %cst_61 {dimension_numbers = #tpu.dot_dimension_numbers<[1], [0], [0], [1], [0, 0, 1, 1], [], []>} : vector<4x256xf32>, vector<256x256xf32>, vector<4x256xf32> -> vector<4x256xf32>
      %cst_62 = arith.constant dense<0.000000e+00> : vector<4x256xf32>
      %262 = tpu.matmul %260, %19, %cst_62 {dimension_numbers = #tpu.dot_dimension_numbers<[1], [0], [0], [1], [0, 0, 1, 1], [], []>} : vector<4x256xf32>, vector<256x256xf32>, vector<4x256xf32> -> vector<4x256xf32>
      %263 = arith.addf %255, %260 : vector<4x256xf32>
      %cst_63 = arith.constant dense<0.000000e+00> : vector<4x256xf32>
      %264 = tpu.matmul %263, %20, %cst_63 {dimension_numbers = #tpu.dot_dimension_numbers<[1], [0], [0], [1], [0, 0, 1, 1], [], []>} : vector<4x256xf32>, vector<256x256xf32>, vector<4x256xf32> -> vector<4x256xf32>
      %265 = arith.subf %261, %262 : vector<4x256xf32>
      %266 = arith.subf %264, %261 : vector<4x256xf32>
      %267 = arith.subf %266, %262 : vector<4x256xf32>
      %268 = vector.broadcast %13 : vector<1x256xf32> to vector<4x256xf32>
      %269 = arith.mulf %265, %268 : vector<4x256xf32>
      %270 = vector.broadcast %13 : vector<1x256xf32> to vector<4x256xf32>
      %271 = arith.mulf %267, %270 : vector<4x256xf32>
      %cst_64 = arith.constant dense<0.000000e+00> : vector<4x256xf32>
      %272 = tpu.matmul %269, %21, %cst_64 {dimension_numbers = #tpu.dot_dimension_numbers<[1], [0], [0], [1], [0, 0, 1, 1], [], []>} : vector<4x256xf32>, vector<256x256xf32>, vector<4x256xf32> -> vector<4x256xf32>
      %cst_65 = arith.constant dense<0.000000e+00> : vector<4x256xf32>
      %273 = tpu.matmul %271, %22, %cst_65 {dimension_numbers = #tpu.dot_dimension_numbers<[1], [0], [0], [1], [0, 0, 1, 1], [], []>} : vector<4x256xf32>, vector<256x256xf32>, vector<4x256xf32> -> vector<4x256xf32>
      %274 = arith.addf %269, %271 : vector<4x256xf32>
      %cst_66 = arith.constant dense<0.000000e+00> : vector<4x256xf32>
      %275 = tpu.matmul %274, %23, %cst_66 {dimension_numbers = #tpu.dot_dimension_numbers<[1], [0], [0], [1], [0, 0, 1, 1], [], []>} : vector<4x256xf32>, vector<256x256xf32>, vector<4x256xf32> -> vector<4x256xf32>
      %276 = arith.subf %272, %273 : vector<4x256xf32>
      %277 = arith.subf %275, %272 : vector<4x256xf32>
      %278 = arith.subf %277, %273 : vector<4x256xf32>
      %279 = arith.mulf %276, %15 : vector<4x256xf32>
      %280 = arith.mulf %278, %17 : vector<4x256xf32>
      %281 = arith.addf %279, %280 : vector<4x256xf32>
      %cst_67 = arith.constant dense<0.000000e+00> : vector<256xf32>
      %282 = vector.multi_reduction <add>, %281, %cst_67 [0] : vector<4x256xf32> to vector<256xf32>
      %283 = vector.shape_cast %282 : vector<256xf32> to vector<1x256xf32>
      %284 = arith.mulf %278, %15 : vector<4x256xf32>
      %285 = arith.mulf %276, %17 : vector<4x256xf32>
      %286 = arith.subf %284, %285 : vector<4x256xf32>
      %cst_68 = arith.constant dense<0.000000e+00> : vector<256xf32>
      %287 = vector.multi_reduction <add>, %286, %cst_68 [0] : vector<4x256xf32> to vector<256xf32>
      %288 = vector.shape_cast %287 : vector<256xf32> to vector<1x256xf32>
      %289 = vector.broadcast %1 : f32 to vector<1x256xf32>
      %290 = arith.mulf %289, %arg27 : vector<1x256xf32>
      %291 = arith.addf %283, %290 : vector<1x256xf32>
      %292 = vector.broadcast %1 : f32 to vector<1x256xf32>
      %293 = arith.mulf %292, %arg28 : vector<1x256xf32>
      %294 = arith.addf %288, %293 : vector<1x256xf32>
      %295 = arith.mulf %arg27, %291 : vector<1x256xf32>
      %296 = arith.mulf %arg28, %294 : vector<1x256xf32>
      %297 = arith.addf %295, %296 : vector<1x256xf32>
      %298 = vector.shape_cast %297 : vector<1x256xf32> to vector<1x1x256xf32>
      %cst_69 = arith.constant dense<0.000000e+00> : vector<1xf32>
      %299 = vector.multi_reduction <add>, %298, %cst_69 [1, 2] : vector<1x1x256xf32> to vector<1xf32>
      %300 = vector.shape_cast %299 : vector<1xf32> to vector<1x1x1xf32>
      %301 = vector.extract %300[0, 0, 0] : f32 from vector<1x1x1xf32>
      %302 = vector.broadcast %301 : f32 to vector<1x1xf32>
      %cst_70 = arith.constant 9.99999968E-21 : f32
      %303 = vector.broadcast %cst_70 : f32 to vector<1x1xf32>
      %304 = arith.addf %302, %303 : vector<1x1xf32>
      %305 = arith.divf %arg29, %304 : vector<1x1xf32>
      %306 = vector.broadcast %305 : vector<1x1xf32> to vector<1x256xf32>
      %307 = arith.mulf %306, %arg27 : vector<1x256xf32>
      %308 = arith.addf %arg23, %307 : vector<1x256xf32>
      %309 = vector.broadcast %305 : vector<1x1xf32> to vector<1x256xf32>
      %310 = arith.mulf %309, %arg28 : vector<1x256xf32>
      %311 = arith.addf %arg24, %310 : vector<1x256xf32>
      %312 = vector.broadcast %305 : vector<1x1xf32> to vector<1x256xf32>
      %313 = arith.mulf %312, %291 : vector<1x256xf32>
      %314 = arith.subf %arg25, %313 : vector<1x256xf32>
      %315 = vector.broadcast %305 : vector<1x1xf32> to vector<1x256xf32>
      %316 = arith.mulf %315, %294 : vector<1x256xf32>
      %317 = arith.subf %arg26, %316 : vector<1x256xf32>
      %318 = arith.mulf %314, %314 : vector<1x256xf32>
      %319 = arith.mulf %317, %317 : vector<1x256xf32>
      %320 = arith.addf %318, %319 : vector<1x256xf32>
      %321 = vector.shape_cast %320 : vector<1x256xf32> to vector<1x1x256xf32>
      %cst_71 = arith.constant dense<0.000000e+00> : vector<1xf32>
      %322 = vector.multi_reduction <add>, %321, %cst_71 [1, 2] : vector<1x1x256xf32> to vector<1xf32>
      %323 = vector.shape_cast %322 : vector<1xf32> to vector<1x1x1xf32>
      %324 = vector.extract %323[0, 0, 0] : f32 from vector<1x1x1xf32>
      %325 = vector.broadcast %324 : f32 to vector<1x1xf32>
      %cst_72 = arith.constant 9.99999968E-21 : f32
      %326 = vector.broadcast %cst_72 : f32 to vector<1x1xf32>
      %327 = arith.addf %arg29, %326 : vector<1x1xf32>
      %328 = arith.divf %325, %327 : vector<1x1xf32>
      %329 = vector.broadcast %328 : vector<1x1xf32> to vector<1x256xf32>
      %330 = arith.mulf %329, %arg27 : vector<1x256xf32>
      %331 = arith.addf %314, %330 : vector<1x256xf32>
      %332 = vector.broadcast %328 : vector<1x1xf32> to vector<1x256xf32>
      %333 = arith.mulf %332, %arg28 : vector<1x256xf32>
      %334 = arith.addf %317, %333 : vector<1x256xf32>
      scf.yield %308, %311, %314, %317, %331, %334, %325 : vector<1x256xf32>, vector<1x256xf32>, vector<1x256xf32>, vector<1x256xf32>, vector<1x256xf32>, vector<1x256xf32>, vector<1x1xf32>
    }
    %247 = tpu.concatenate %246#0, %246#1 in 0 : vector<1x256xf32>, vector<1x256xf32> -> vector<2x256xf32>
    %c0_57 = arith.constant 0 : index
    %c0_58 = arith.constant 0 : index
    %c0_59 = arith.constant 0 : index
    %c0_60 = arith.constant 0 : index
    %248 = vector.load %arg21[%c0_57, %c0_58, %c0_59, %c0_60] : memref<1x1x2x256xf32, #tpu.memory_space<vmem>>, vector<1x1x2x256xf32>
    %249 = vector.shape_cast %248 : vector<1x1x2x256xf32> to vector<2x256xf32>
    %250 = vector.shape_cast %247 : vector<2x256xf32> to vector<1x1x2x256xf32>
    tpu.vector_store %arg21[%c0_57, %c0_58, %c0_59, %c0_60], %250 {strides = array<i32>} : memref<1x1x2x256xf32, #tpu.memory_space<vmem>>, vector<1x1x2x256xf32>,
    return
  }
  func.func @transform_0(%arg0: i32) -> (i32, i32) {
    %c0_i32 = arith.constant 0 : i32
    %c0_i32_0 = arith.constant 0 : i32
    %c0_i32_1 = arith.constant 0 : i32
    return %c0_i32, %c0_i32_0 : i32, i32
  }
  func.func @transform_1(%arg0: i32) -> (i32, i32) {
    %c0_i32 = arith.constant 0 : i32
    %c0_i32_0 = arith.constant 0 : i32
    %c0_i32_1 = arith.constant 0 : i32
    return %c0_i32, %c0_i32_0 : i32, i32
  }
  func.func @transform_2(%arg0: i32) -> (i32, i32) {
    %c0_i32 = arith.constant 0 : i32
    %c0_i32_0 = arith.constant 0 : i32
    %c0_i32_1 = arith.constant 0 : i32
    return %c0_i32, %c0_i32_0 : i32, i32
  }
  func.func @transform_3(%arg0: i32) -> (i32, i32, i32) {
    %c0_i32 = arith.constant 0 : i32
    %c0_i32_0 = arith.constant 0 : i32
    %c0_i32_1 = arith.constant 0 : i32
    return %arg0, %c0_i32, %c0_i32_0 : i32, i32, i32
  }
  func.func @transform_4(%arg0: i32) -> (i32, i32, i32) {
    %c0_i32 = arith.constant 0 : i32
    %c0_i32_0 = arith.constant 0 : i32
    %c0_i32_1 = arith.constant 0 : i32
    return %arg0, %c0_i32, %c0_i32_0 : i32, i32, i32
  }
  func.func @transform_5(%arg0: i32) -> (i32, i32, i32) {
    %c0_i32 = arith.constant 0 : i32
    %c0_i32_0 = arith.constant 0 : i32
    %c0_i32_1 = arith.constant 0 : i32
    return %arg0, %c0_i32, %c0_i32_0 : i32, i32, i32
  }
  func.func @transform_6(%arg0: i32) -> (i32, i32, i32) {
    %c0_i32 = arith.constant 0 : i32
    %c0_i32_0 = arith.constant 0 : i32
    %c0_i32_1 = arith.constant 0 : i32
    return %arg0, %c0_i32, %c0_i32_0 : i32, i32, i32
  }
  func.func @transform_7(%arg0: i32) -> (i32, i32) {
    %c0_i32 = arith.constant 0 : i32
    %c0_i32_0 = arith.constant 0 : i32
    %c0_i32_1 = arith.constant 0 : i32
    return %c0_i32, %c0_i32_0 : i32, i32
  }
  func.func @transform_8(%arg0: i32) -> (i32, i32) {
    %c0_i32 = arith.constant 0 : i32
    %c0_i32_0 = arith.constant 0 : i32
    %c0_i32_1 = arith.constant 0 : i32
    return %c0_i32, %c0_i32_0 : i32, i32
  }
  func.func @transform_9(%arg0: i32) -> (i32, i32) {
    %c0_i32 = arith.constant 0 : i32
    %c0_i32_0 = arith.constant 0 : i32
    %c0_i32_1 = arith.constant 0 : i32
    return %c0_i32, %c0_i32_0 : i32, i32
  }
  func.func @transform_10(%arg0: i32) -> (i32, i32) {
    %c0_i32 = arith.constant 0 : i32
    %c0_i32_0 = arith.constant 0 : i32
    %c0_i32_1 = arith.constant 0 : i32
    return %c0_i32, %c0_i32_0 : i32, i32
  }
  func.func @transform_11(%arg0: i32) -> (i32, i32) {
    %c0_i32 = arith.constant 0 : i32
    %c0_i32_0 = arith.constant 0 : i32
    %c0_i32_1 = arith.constant 0 : i32
    return %c0_i32, %c0_i32_0 : i32, i32
  }
  func.func @transform_12(%arg0: i32) -> (i32, i32) {
    %c0_i32 = arith.constant 0 : i32
    %c0_i32_0 = arith.constant 0 : i32
    %c0_i32_1 = arith.constant 0 : i32
    return %c0_i32, %c0_i32_0 : i32, i32
  }
  func.func @transform_13(%arg0: i32) -> (i32, i32) {
    %c0_i32 = arith.constant 0 : i32
    %c0_i32_0 = arith.constant 0 : i32
    %c0_i32_1 = arith.constant 0 : i32
    return %c0_i32, %c0_i32_0 : i32, i32
  }
  func.func @transform_14(%arg0: i32) -> (i32, i32) {
    %c0_i32 = arith.constant 0 : i32
    %c0_i32_0 = arith.constant 0 : i32
    %c0_i32_1 = arith.constant 0 : i32
    return %c0_i32, %c0_i32_0 : i32, i32
  }
  func.func @transform_15(%arg0: i32) -> (i32, i32) {
    %c0_i32 = arith.constant 0 : i32
    %c0_i32_0 = arith.constant 0 : i32
    %c0_i32_1 = arith.constant 0 : i32
    return %c0_i32, %c0_i32_0 : i32, i32
  }
  func.func @transform_16(%arg0: i32) -> (i32, i32) {
    %c0_i32 = arith.constant 0 : i32
    %c0_i32_0 = arith.constant 0 : i32
    %c0_i32_1 = arith.constant 0 : i32
    return %c0_i32, %c0_i32_0 : i32, i32
  }
  func.func @transform_17(%arg0: i32) -> (i32, i32) {
    %c0_i32 = arith.constant 0 : i32
    %c0_i32_0 = arith.constant 0 : i32
    %c0_i32_1 = arith.constant 0 : i32
    return %c0_i32, %c0_i32_0 : i32, i32
  }
  func.func @transform_18(%arg0: i32) -> (i32, i32) {
    %c0_i32 = arith.constant 0 : i32
    %c0_i32_0 = arith.constant 0 : i32
    %c0_i32_1 = arith.constant 0 : i32
    return %c0_i32, %c0_i32_0 : i32, i32
  }
  func.func @transform_19(%arg0: i32) -> (i32, i32) {
    %c0_i32 = arith.constant 0 : i32
    %c0_i32_0 = arith.constant 0 : i32
    %c0_i32_1 = arith.constant 0 : i32
    return %c0_i32, %c0_i32_0 : i32, i32
  }
  func.func @transform_20(%arg0: i32) -> (i32, i32, i32, i32) {
    %c0_i32 = arith.constant 0 : i32
    %c0_i32_0 = arith.constant 0 : i32
    %c0_i32_1 = arith.constant 0 : i32
    %c0_i32_2 = arith.constant 0 : i32
    return %arg0, %c0_i32, %c0_i32_0, %c0_i32_1 : i32, i32, i32, i32
  }
}

</mosaic_0001>

<llo_original>
// kernel: squeeze.10
$region0: #{squeeze.10}
  %s0 = inlined_call_operand.vmem [shape: f32[2,4,16,16], index: 0, kind: input, shape index: {}]
  %s1 = inlined_call_operand.vmem [shape: f32[2,4,256], index: 1, kind: output, shape index: {}]
  $region1: #{squeeze.10} parent=0
    #allocation0 [shape = 'u8[16384]{0}', space=vmem, size = 0x4000, scoped, tag = 'scoped mem for output reshape']
    %v2 = vld [vmem:[%s0] ss:$8 sm:$0xf]
    %v3 = vld [vmem:[%s0] ss:$8 sm:$0xf0]
    %vm4 = vcmask 1047556
    %v5 = vsel %vm4, %v3, %v2
    %vm6 = vcmask 130048
    %7 = vst.msk [vmem:[#allocation0] ss:$8 sm:$0x3] %vm6, %v5
    %s8 = scalar_lea.vmem [#allocation0], 4294967281
    %9 = vst.msk [vmem:[%s8] ss:$8 sm:$0xc] %vm6, %v5
    %s10 = scalar_lea.vmem [#allocation0], 4294967266
    %11 = vst.msk [vmem:[%s10] ss:$8 sm:$0x30] %vm6, %v5
    %s12 = scalar_lea.vmem [#allocation0], 4294967251
    %13 = vst.msk [vmem:[%s12] ss:$8 sm:$0xc0] %vm6, %v5
    %s14 = scalar_lea.vmem %s0, 64
    %v15 = vld [vmem:[%s14] ss:$8 sm:$0xf]
    %s16 = scalar_lea.vmem %s0, 64
    %v17 = vld [vmem:[%s16] ss:$8 sm:$0xf0]
    %vm18 = vcmask 1047556
    %v19 = vsel %vm18, %v17, %v15
    %vm20 = vcmask 130048
    %s21 = scalar_lea.vmem [#allocation0], 16
    %22 = vst.msk [vmem:[%s21] ss:$8 sm:$0x3] %vm20, %v19
    %s23 = scalar_lea.vmem [#allocation0], 1
    %24 = vst.msk [vmem:[%s23] ss:$8 sm:$0xc] %vm20, %v19
    %s25 = scalar_lea.vmem [#allocation0], 4294967282
    %26 = vst.msk [vmem:[%s25] ss:$8 sm:$0x30] %vm20, %v19
    %s27 = scalar_lea.vmem [#allocation0], 4294967267
    %28 = vst.msk [vmem:[%s27] ss:$8 sm:$0xc0] %vm20, %v19
    %s29 = scalar_lea.vmem %s0, 7
    %s30 = smov 3
    %v31 = vld [vmem:[%s29] ss:$16 sm:%s30]
    %s32 = scalar_lea.vmem %s0, 7
    %s33 = smov 12
    %v34 = vld [vmem:[%s32] ss:$16 sm:%s33]
    %vm35 = vcmask 1043458
    %v36 = vsel %vm35, %v34, %v31
    %s37 = scalar_lea.vmem %s0, 4294967247
    %s38 = smov 48
    %v39 = vld [vmem:[%s37] ss:$16 sm:%s38]
    %vm40 = vcmask 1045508
    %v41 = vsel %vm40, %v39, %v36
    %s42 = scalar_lea.vmem %s0, 4294967247
    %s43 = smov 192
    %v44 = vld [vmem:[%s42] ss:$16 sm:%s43]
    %vm45 = vcmask 1047558
    %v46 = vsel %vm45, %v44, %v41
    %47 = vrot.lane.b32.xlu0 %v46, 112
    %v48 = vpop.permute.xlu0 %47
    %vm49 = vcmask 1048448
    %50 = vst.msk [vmem:[#allocation0] sm:$0xf] %vm49, %v48
    %s51 = scalar_lea.vmem [#allocation0], 4
    %52 = vst.msk [vmem:[%s51] sm:$0xf0] %vm49, %v48
    %s53 = scalar_lea.vmem %s0, 71
    %s54 = smov 3
    %v55 = vld [vmem:[%s53] ss:$16 sm:%s54]
    %s56 = scalar_lea.vmem %s0, 71
    %s57 = smov 12
    %v58 = vld [vmem:[%s56] ss:$16 sm:%s57]
    %vm59 = vcmask 1043458
    %v60 = vsel %vm59, %v58, %v55
    %s61 = scalar_lea.vmem %s0, 15
    %s62 = smov 48
    %v63 = vld [vmem:[%s61] ss:$16 sm:%s62]
    %vm64 = vcmask 1045508
    %v65 = vsel %vm64, %v63, %v60
    %s66 = scalar_lea.vmem %s0, 15
    %s67 = smov 192
    %v68 = vld [vmem:[%s66] ss:$16 sm:%s67]
    %vm69 = vcmask 1047558
    %v70 = vsel %vm69, %v68, %v65
    %71 = vrot.lane.b32.xlu0 %v70, 112
    %v72 = vpop.permute.xlu0 %71
    %vm73 = vcmask 1048448
    %s74 = scalar_lea.vmem [#allocation0], 16
    %75 = vst.msk [vmem:[%s74] sm:$0xf] %vm73, %v72
    %s76 = scalar_lea.vmem [#allocation0], 20
    %77 = vst.msk [vmem:[%s76] sm:$0xf0] %vm73, %v72
    %s78 = scalar_lea.vmem %s0, 6
    %s79 = smov 3
    %v80 = vld [vmem:[%s78] ss:$16 sm:%s79]
    %s81 = scalar_lea.vmem %s0, 6
    %s82 = smov 12
    %v83 = vld [vmem:[%s81] ss:$16 sm:%s82]
    %vm84 = vcmask 1043458
    %v85 = vsel %vm84, %v83, %v80
    %s86 = scalar_lea.vmem %s0, 4294967246
    %s87 = smov 48
    %v88 = vld [vmem:[%s86] ss:$16 sm:%s87]
    %vm89 = vcmask 1045508
    %v90 = vsel %vm89, %v88, %v85
    %s91 = scalar_lea.vmem %s0, 4294967246
    %s92 = smov 192
    %v93 = vld [vmem:[%s91] ss:$16 sm:%s92]
    %vm94 = vcmask 1047558
    %v95 = vsel %vm94, %v93, %v90
    %96 = vrot.lane.b32.xlu0 %v95, 96
    %v97 = vpop.permute.xlu0 %96
    %vm98 = vcmask 917248
    %99 = vst.msk [vmem:[#allocation0] sm:$0xf] %vm98, %v97
    %s100 = scalar_lea.vmem [#allocation0], 4
    %101 = vst.msk [vmem:[%s100] sm:$0xf0] %vm98, %v97
    %s102 = scalar_lea.vmem %s0, 70
    %s103 = smov 3
    %v104 = vld [vmem:[%s102] ss:$16 sm:%s103]
    %s105 = scalar_lea.vmem %s0, 70
    %s106 = smov 12
    %v107 = vld [vmem:[%s105] ss:$16 sm:%s106]
    %vm108 = vcmask 1043458
    %v109 = vsel %vm108, %v107, %v104
    %s110 = scalar_lea.vmem %s0, 14
    %s111 = smov 48
    %v112 = vld [vmem:[%s110] ss:$16 sm:%s111]
    %vm113 = vcmask 1045508
    %v114 = vsel %vm113, %v112, %v109
    %s115 = scalar_lea.vmem %s0, 14
    %s116 = smov 192
    %v117 = vld [vmem:[%s115] ss:$16 sm:%s116]
    %vm118 = vcmask 1047558
    %v119 = vsel %vm118, %v117, %v114
    %120 = vrot.lane.b32.xlu0 %v119, 96
    %v121 = vpop.permute.xlu0 %120
    %vm122 = vcmask 917248
    %s123 = scalar_lea.vmem [#allocation0], 16
    %124 = vst.msk [vmem:[%s123] sm:$0xf] %vm122, %v121
    %s125 = scalar_lea.vmem [#allocation0], 20
    %126 = vst.msk [vmem:[%s125] sm:$0xf0] %vm122, %v121
    %s127 = scalar_lea.vmem %s0, 5
    %s128 = smov 3
    %v129 = vld [vmem:[%s127] ss:$16 sm:%s128]
    %s130 = scalar_lea.vmem %s0, 5
    %s131 = smov 12
    %v132 = vld [vmem:[%s130] ss:$16 sm:%s131]
    %vm133 = vcmask 1043458
    %v134 = vsel %vm133, %v132, %v129
    %s135 = scalar_lea.vmem %s0, 4294967245
    %s136 = smov 48
    %v137 = vld [vmem:[%s135] ss:$16 sm:%s136]
    %vm138 = vcmask 1045508
    %v139 = vsel %vm138, %v137, %v134
    %s140 = scalar_lea.vmem %s0, 4294967245
    %s141 = smov 192
    %v142 = vld [vmem:[%s140] ss:$16 sm:%s141]
    %vm143 = vcmask 1047558
    %v144 = vsel %vm143, %v142, %v139
    %145 = vrot.lane.b32.xlu0 %v144, 80
    %v146 = vpop.permute.xlu0 %145
    %vm147 = vcmask 786048
    %148 = vst.msk [vmem:[#allocation0] sm:$0xf] %vm147, %v146
    %s149 = scalar_lea.vmem [#allocation0], 4
    %150 = vst.msk [vmem:[%s149] sm:$0xf0] %vm147, %v146
    %s151 = scalar_lea.vmem %s0, 69
    %s152 = smov 3
    %v153 = vld [vmem:[%s151] ss:$16 sm:%s152]
    %s154 = scalar_lea.vmem %s0, 69
    %s155 = smov 12
    %v156 = vld [vmem:[%s154] ss:$16 sm:%s155]
    %vm157 = vcmask 1043458
    %v158 = vsel %vm157, %v156, %v153
    %s159 = scalar_lea.vmem %s0, 13
    %s160 = smov 48
    %v161 = vld [vmem:[%s159] ss:$16 sm:%s160]
    %vm162 = vcmask 1045508
    %v163 = vsel %vm162, %v161, %v158
    %s164 = scalar_lea.vmem %s0, 13
    %s165 = smov 192
    %v166 = vld [vmem:[%s164] ss:$16 sm:%s165]
    %vm167 = vcmask 1047558
    %v168 = vsel %vm167, %v166, %v163
    %169 = vrot.lane.b32.xlu0 %v168, 80
    %v170 = vpop.permute.xlu0 %169
    %vm171 = vcmask 786048
    %s172 = scalar_lea.vmem [#allocation0], 16
    %173 = vst.msk [vmem:[%s172] sm:$0xf] %vm171, %v170
    %s174 = scalar_lea.vmem [#allocation0], 20
    %175 = vst.msk [vmem:[%s174] sm:$0xf0] %vm171, %v170
    %s176 = scalar_lea.vmem %s0, 4
    %s177 = smov 3
    %v178 = vld [vmem:[%s176] ss:$16 sm:%s177]
    %s179 = scalar_lea.vmem %s0, 4
    %s180 = smov 12
    %v181 = vld [vmem:[%s179] ss:$16 sm:%s180]
    %vm182 = vcmask 1043458
    %v183 = vsel %vm182, %v181, %v178
    %s184 = scalar_lea.vmem %s0, 4294967244
    %s185 = smov 48
    %v186 = vld [vmem:[%s184] ss:$16 sm:%s185]
    %vm187 = vcmask 1045508
    %v188 = vsel %vm187, %v186, %v183
    %s189 = scalar_lea.vmem %s0, 4294967244
    %s190 = smov 192
    %v191 = vld [vmem:[%s189] ss:$16 sm:%s190]
    %vm192 = vcmask 1047558
    %v193 = vsel %vm192, %v191, %v188
    %194 = vrot.lane.b32.xlu0 %v193, 64
    %v195 = vpop.permute.xlu0 %194
    %vm196 = vcmask 654848
    %197 = vst.msk [vmem:[#allocation0] sm:$0xf] %vm196, %v195
    %s198 = scalar_lea.vmem [#allocation0], 4
    %199 = vst.msk [vmem:[%s198] sm:$0xf0] %vm196, %v195
    %s200 = scalar_lea.vmem %s0, 68
    %s201 = smov 3
    %v202 = vld [vmem:[%s200] ss:$16 sm:%s201]
    %s203 = scalar_lea.vmem %s0, 68
    %s204 = smov 12
    %v205 = vld [vmem:[%s203] ss:$16 sm:%s204]
    %vm206 = vcmask 1043458
    %v207 = vsel %vm206, %v205, %v202
    %s208 = scalar_lea.vmem %s0, 12
    %s209 = smov 48
    %v210 = vld [vmem:[%s208] ss:$16 sm:%s209]
    %vm211 = vcmask 1045508
    %v212 = vsel %vm211, %v210, %v207
    %s213 = scalar_lea.vmem %s0, 12
    %s214 = smov 192
    %v215 = vld [vmem:[%s213] ss:$16 sm:%s214]
    %vm216 = vcmask 1047558
    %v217 = vsel %vm216, %v215, %v212
    %218 = vrot.lane.b32.xlu0 %v217, 64
    %v219 = vpop.permute.xlu0 %218
    %vm220 = vcmask 654848
    %s221 = scalar_lea.vmem [#allocation0], 16
    %222 = vst.msk [vmem:[%s221] sm:$0xf] %vm220, %v219
    %s223 = scalar_lea.vmem [#allocation0], 20
    %224 = vst.msk [vmem:[%s223] sm:$0xf0] %vm220, %v219
    %s225 = scalar_lea.vmem %s0, 3
    %s226 = smov 3
    %v227 = vld [vmem:[%s225] ss:$16 sm:%s226]
    %s228 = scalar_lea.vmem %s0, 3
    %s229 = smov 12
    %v230 = vld [vmem:[%s228] ss:$16 sm:%s229]
    %vm231 = vcmask 1043458
    %v232 = vsel %vm231, %v230, %v227
    %s233 = scalar_lea.vmem %s0, 4294967243
    %s234 = smov 48
    %v235 = vld [vmem:[%s233] ss:$16 sm:%s234]
    %vm236 = vcmask 1045508
    %v237 = vsel %vm236, %v235, %v232
    %s238 = scalar_lea.vmem %s0, 4294967243
    %s239 = smov 192
    %v240 = vld [vmem:[%s238] ss:$16 sm:%s239]
    %vm241 = vcmask 1047558
    %v242 = vsel %vm241, %v240, %v237
    %243 = vrot.lane.b32.xlu0 %v242, 48
    %v244 = vpop.permute.xlu0 %243
    %vm245 = vcmask 523648
    %246 = vst.msk [vmem:[#allocation0] sm:$0xf] %vm245, %v244
    %s247 = scalar_lea.vmem [#allocation0], 4
    %248 = vst.msk [vmem:[%s247] sm:$0xf0] %vm245, %v244
    %s249 = scalar_lea.vmem %s0, 67
    %s250 = smov 3
    %v251 = vld [vmem:[%s249] ss:$16 sm:%s250]
    %s252 = scalar_lea.vmem %s0, 67
    %s253 = smov 12
    %v254 = vld [vmem:[%s252] ss:$16 sm:%s253]
    %vm255 = vcmask 1043458
    %v256 = vsel %vm255, %v254, %v251
    %s257 = scalar_lea.vmem %s0, 11
    %s258 = smov 48
    %v259 = vld [vmem:[%s257] ss:$16 sm:%s258]
    %vm260 = vcmask 1045508
    %v261 = vsel %vm260, %v259, %v256
    %s262 = scalar_lea.vmem %s0, 11
    %s263 = smov 192
    %v264 = vld [vmem:[%s262] ss:$16 sm:%s263]
    %vm265 = vcmask 1047558
    %v266 = vsel %vm265, %v264, %v261
    %267 = vrot.lane.b32.xlu0 %v266, 48
    %v268 = vpop.permute.xlu0 %267
    %vm269 = vcmask 523648
    %s270 = scalar_lea.vmem [#allocation0], 16
    %271 = vst.msk [vmem:[%s270] sm:$0xf] %vm269, %v268
    %s272 = scalar_lea.vmem [#allocation0], 20
    %273 = vst.msk [vmem:[%s272] sm:$0xf0] %vm269, %v268
    %s274 = scalar_lea.vmem %s0, 2
    %s275 = smov 3
    %v276 = vld [vmem:[%s274] ss:$16 sm:%s275]
    %s277 = scalar_lea.vmem %s0, 2
    %s278 = smov 12
    %v279 = vld [vmem:[%s277] ss:$16 sm:%s278]
    %vm280 = vcmask 1043458
    %v281 = vsel %vm280, %v279, %v276
    %s282 = scalar_lea.vmem %s0, 4294967242
    %s283 = smov 48
    %v284 = vld [vmem:[%s282] ss:$16 sm:%s283]
    %vm285 = vcmask 1045508
    %v286 = vsel %vm285, %v284, %v281
    %s287 = scalar_lea.vmem %s0, 4294967242
    %s288 = smov 192
    %v289 = vld [vmem:[%s287] ss:$16 sm:%s288]
    %vm290 = vcmask 1047558
    %v291 = vsel %vm290, %v289, %v286
    %292 = vrot.lane.b32.xlu0 %v291, 32
    %v293 = vpop.permute.xlu0 %292
    %vm294 = vcmask 392448
    %295 = vst.msk [vmem:[#allocation0] sm:$0xf] %vm294, %v293
    %s296 = scalar_lea.vmem [#allocation0], 4
    %297 = vst.msk [vmem:[%s296] sm:$0xf0] %vm294, %v293
    %s298 = scalar_lea.vmem %s0, 66
    %s299 = smov 3
    %v300 = vld [vmem:[%s298] ss:$16 sm:%s299]
    %s301 = scalar_lea.vmem %s0, 66
    %s302 = smov 12
    %v303 = vld [vmem:[%s301] ss:$16 sm:%s302]
    %vm304 = vcmask 1043458
    %v305 = vsel %vm304, %v303, %v300
    %s306 = scalar_lea.vmem %s0, 10
    %s307 = smov 48
    %v308 = vld [vmem:[%s306] ss:$16 sm:%s307]
    %vm309 = vcmask 1045508
    %v310 = vsel %vm309, %v308, %v305
    %s311 = scalar_lea.vmem %s0, 10
    %s312 = smov 192
    %v313 = vld [vmem:[%s311] ss:$16 sm:%s312]
    %vm314 = vcmask 1047558
    %v315 = vsel %vm314, %v313, %v310
    %316 = vrot.lane.b32.xlu0 %v315, 32
    %v317 = vpop.permute.xlu0 %316
    %vm318 = vcmask 392448
    %s319 = scalar_lea.vmem [#allocation0], 16
    %320 = vst.msk [vmem:[%s319] sm:$0xf] %vm318, %v317
    %s321 = scalar_lea.vmem [#allocation0], 20
    %322 = vst.msk [vmem:[%s321] sm:$0xf0] %vm318, %v317
    %s323 = scalar_lea.vmem %s0, 1
    %s324 = smov 3
    %v325 = vld [vmem:[%s323] ss:$16 sm:%s324]
    %s326 = scalar_lea.vmem %s0, 1
    %s327 = smov 12
    %v328 = vld [vmem:[%s326] ss:$16 sm:%s327]
    %vm329 = vcmask 1043458
    %v330 = vsel %vm329, %v328, %v325
    %s331 = scalar_lea.vmem %s0, 4294967241
    %s332 = smov 48
    %v333 = vld [vmem:[%s331] ss:$16 sm:%s332]
    %vm334 = vcmask 1045508
    %v335 = vsel %vm334, %v333, %v330
    %s336 = scalar_lea.vmem %s0, 4294967241
    %s337 = smov 192
    %v338 = vld [vmem:[%s336] ss:$16 sm:%s337]
    %vm339 = vcmask 1047558
    %v340 = vsel %vm339, %v338, %v335
    %341 = vrot.lane.b32.xlu0 %v340, 16
    %v342 = vpop.permute.xlu0 %341
    %vm343 = vcmask 261248
    %344 = vst.msk [vmem:[#allocation0] sm:$0xf] %vm343, %v342
    %s345 = scalar_lea.vmem [#allocation0], 4
    %346 = vst.msk [vmem:[%s345] sm:$0xf0] %vm343, %v342
    %s347 = scalar_lea.vmem %s0, 65
    %s348 = smov 3
    %v349 = vld [vmem:[%s347] ss:$16 sm:%s348]
    %s350 = scalar_lea.vmem %s0, 65
    %s351 = smov 12
    %v352 = vld [vmem:[%s350] ss:$16 sm:%s351]
    %vm353 = vcmask 1043458
    %v354 = vsel %vm353, %v352, %v349
    %s355 = scalar_lea.vmem %s0, 9
    %s356 = smov 48
    %v357 = vld [vmem:[%s355] ss:$16 sm:%s356]
    %vm358 = vcmask 1045508
    %v359 = vsel %vm358, %v357, %v354
    %s360 = scalar_lea.vmem %s0, 9
    %s361 = smov 192
    %v362 = vld [vmem:[%s360] ss:$16 sm:%s361]
    %vm363 = vcmask 1047558
    %v364 = vsel %vm363, %v362, %v359
    %365 = vrot.lane.b32.xlu0 %v364, 16
    %v366 = vpop.permute.xlu0 %365
    %vm367 = vcmask 261248
    %s368 = scalar_lea.vmem [#allocation0], 16
    %369 = vst.msk [vmem:[%s368] sm:$0xf] %vm367, %v366
    %s370 = scalar_lea.vmem [#allocation0], 20
    %371 = vst.msk [vmem:[%s370] sm:$0xf0] %vm367, %v366
    %s373 = sshllo.u32 0, 4
    %v375 = vld [vmem:[#allocation0] sm:%s373]
    %s376 = sshllo.u32 0, 4
    %377 = vst [vmem:[%s1] sm:%s376] %v375
    %s378 = scalar_lea.vmem [#allocation0], 8
    %v379 = vld [vmem:[%s378] sm:%s373]
    %s380 = sshllo.u32 0, 4
    %s381 = scalar_lea.vmem %s1, 4
    %382 = vst [vmem:[%s381] sm:%s380] %v379
    %s383 = scalar_lea.vmem [#allocation0], 16
    %v384 = vld [vmem:[%s383] sm:%s373]
    %s385 = sshllo.u32 0, 4
    %s386 = smul.addr 4, 2
    %s387 = scalar_lea.vmem %s1, %s386
    %388 = vst [vmem:[%s387] sm:%s385] %v384
    %s389 = scalar_lea.vmem [#allocation0], 24
    %v390 = vld [vmem:[%s389] sm:%s373]
    %s391 = sshllo.u32 0, 4
    %s392 = smul.addr 4, 3
    %s393 = scalar_lea.vmem %s1, %s392
    %394 = vst [vmem:[%s393] sm:%s391] %v390

// kernel: _forward.1
$region0: #{_forward.1}
  #allocation0 [shape = 'u32[]', space=smem, size = 0x4, offset = 0x4, fixed_abs, tag = 'smem constant byte address 0x4 - core index']
  #allocation1 [shape = 'u32[144,128]{1,0:T(1,128)}', space=vmem, size = 0x12000, scoped, tag = 'internal scratch']
  #allocation2 [shape = 'f32[1,1]{1,0:T(1,128)S(1)}', space=vmem, size = 0x200, scoped, tag = 'scoped memory for _forward.1']
  %s0 = inlined_call_operand.vmem [shape: f32[1,256], index: 0, kind: input, shape index: {}]
  %s1 = inlined_call_operand.vmem [shape: f32[1,256], index: 1, kind: input, shape index: {}]
  %s2 = inlined_call_operand.<no memory space> [shape: f32[1,1], index: 2, kind: input, shape index: {}]
  %s3 = inlined_call_operand.vmem [shape: f32[2,4,256], index: 3, kind: input, shape index: {}]
  %s4 = inlined_call_operand.vmem [shape: f32[2,4,256], index: 4, kind: input, shape index: {}]
  %s5 = inlined_call_operand.vmem [shape: f32[2,4,256], index: 5, kind: input, shape index: {}]
  %s6 = inlined_call_operand.vmem [shape: f32[2,4,256], index: 6, kind: input, shape index: {}]
  %s7 = inlined_call_operand.vmem [shape: f32[256,256], index: 7, kind: input, shape index: {}]
  %s8 = inlined_call_operand.vmem [shape: f32[256,256], index: 8, kind: input, shape index: {}]
  %s9 = inlined_call_operand.vmem [shape: f32[256,256], index: 9, kind: input, shape index: {}]
  %s10 = inlined_call_operand.hbm [shape: f32[256,256], index: 10, kind: input, shape index: {}]
  %s11 = inlined_call_operand.hbm [shape: f32[256,256], index: 11, kind: input, shape index: {}]
  %s12 = inlined_call_operand.hbm [shape: f32[256,256], index: 12, kind: input, shape index: {}]
  %s13 = inlined_call_operand.vmem [shape: f32[9,256], index: 13, kind: input, shape index: {}]
  %s14 = inlined_call_operand.vmem [shape: f32[8,18], index: 14, kind: input, shape index: {}]
  %s15 = inlined_call_operand.vmem [shape: f32[8,1], index: 15, kind: input, shape index: {}, may-alias: {15,17}]
  %s16 = inlined_call_operand.vmem [shape: f32[8,72], index: 16, kind: input, shape index: {}]
  %s17 = inlined_call_operand.vmem [shape: f32[8,1], index: 17, kind: input, shape index: {}, may-alias: {15,17}]
  %s18 = inlined_call_operand.vmem [shape: f32[2,72], index: 18, kind: input, shape index: {}]
  %s19 = inlined_call_operand.vmem [shape: f32[2,1], index: 19, kind: input, shape index: {}]
  %s20 = inlined_call_operand.vmem [shape: f32[2,1,2,256], index: 20, kind: output, shape index: {}]
  %s21 = sld [smem:[#allocation0]]
  $region132: #{_forward.1} parent=0
    _
  %s23 = ssub.s32 1, %s21
  %s24 = scalar_select 0, %s23, %s21
  %v25 = vstv %s2
  %26 = vst [vmem:[#allocation2] sm:$0x1] %v25
  $region1: #{_forward.1} parent=0
    #allocation3 [shape = 'u8[262144]{0}', space=vmem, size = 0x40000, scoped, tag = 'input window, operand 10, single buffered']
    #allocation4 [shape = 's32[2]{0}', space=sflag, size = 0x8, scoped, tag = 'scoped memory for _forward.1']
    #allocation5 [shape = 'u8[262144]{0}', space=vmem, size = 0x40000, scoped, tag = 'input window, operand 11, single buffered']
    #allocation6 [shape = 's32[1]{0}', space=sflag, size = 0x4, scoped, tag = 'scoped memory for _forward.1']
    #allocation7 [shape = 'u8[262144]{0}', space=vmem, size = 0x40000, scoped, tag = 'input window, operand 12, single buffered']
    %27 = vsyncpa [#allocation4], 0
    %28 = vsyncpa [#allocation6], 0
    loop: start=0, step=1, limit=4
    $region2: #{_forward.1} parent=1 // loop_pre_header
      _
    $region3: #{_forward.1} parent=1 // loop_header
      %s30 = sphi 0, %s34
      %p31 = scmp.ge.s32.totalorder %s30, 4
      %s38 = sphi 0, %s38
      %s40 = sphi 0, %s38
      %s41 = sphi 0, %s40
      %s55 = sphi 0, %s41
      %s59 = sphi 0, %s59
      %s61 = sphi 0, %s59
      %s62 = sphi 0, %s61
      %s76 = sphi 0, %s62
      %s80 = sphi 0, %s80
      %s82 = sphi 0, %s80
      %s83 = sphi 0, %s82
      %s97 = sphi 0, %s83
      %s103 = sphi 0, %s105
      %s106 = sphi 0, %s103
      %s107 = sphi 0, %s106
      %s123 = sphi 0, %s107
      %s129 = sphi 0, %s131
      %s132 = sphi 0, %s129
      %s133 = sphi 0, %s132
      %s149 = sphi 0, %s133
      %s155 = sphi 0, %s157
      %s158 = sphi 0, %s155
      %s159 = sphi 0, %s158
      %s175 = sphi 0, %s159
      %s181 = sphi 0, %s183
      %s184 = sphi 0, %s181
      %s185 = sphi 0, %s184
      %s201 = sphi 0, %s185
      %s205 = sphi 0, %s205
      %s207 = sphi 0, %s205
      %s208 = sphi 0, %s207
      %s222 = sphi 0, %s208
      %s226 = sphi 0, %s226
      %s228 = sphi 0, %s226
      %s229 = sphi 0, %s228
      %s243 = sphi 0, %s229
      %s247 = sphi 0, %s247
      %s249 = sphi 0, %s247
      %s250 = sphi 0, %s249
      %s264 = sphi 0, %s250
      %s268 = sphi 0, %s268
      %s270 = sphi 0, %s268
      %s271 = sphi 0, %s270
      %s285 = sphi 0, %s271
      %s289 = sphi 0, %s289
      %s291 = sphi 0, %s289
      %s292 = sphi 0, %s291
      %s306 = sphi 0, %s292
      %s310 = sphi 0, %s310
      %s312 = sphi 0, %s310
      %s313 = sphi 0, %s312
      %s327 = sphi 0, %s313
      %s331 = sphi 0, %s331
      %s333 = sphi 0, %s331
      %s334 = sphi 0, %s333
      %s348 = sphi 0, %s334
      %s352 = sphi 0, %s352
      %s354 = sphi 0, %s352
      %s355 = sphi 0, %s354
      %s369 = sphi 0, %s355
      %s373 = sphi 0, %s373
      %s375 = sphi 0, %s373
      %s376 = sphi 0, %s375
      %s390 = sphi 0, %s376
      %s394 = sphi 0, %s394
      %s396 = sphi 0, %s394
      %s397 = sphi 0, %s396
      %s411 = sphi 0, %s397
      %s415 = sphi 0, %s415
      %s417 = sphi 0, %s415
      %s418 = sphi 0, %s417
      %s432 = sphi 0, %s418
      %s436 = sphi 0, %s436
      %s438 = sphi 0, %s436
      %s439 = sphi 0, %s438
      %s453 = sphi 0, %s439
      %s457 = sphi 0, %s457
      %s459 = sphi 0, %s457
      %s460 = sphi 0, %s459
      %s474 = sphi 0, %s460
      %s480 = sphi 0, %s482
      %s483 = sphi 0, %s480
      %s484 = sphi 0, %s483
      %s500 = sphi 0, %s484
    $region4: #{_forward.1} parent=1 // loop_header_branch
      %33 = sbr.rel (%p31) target = $region8
    $region5: #{_forward.1} parent=1 // loop_body
      %s35 = ssub.s32 %s30, 1
      %s36 = ssub.s32 %s30, 2
      %s37 = sadd.s32 %s30, 1
      %s39 = sadd.s32 %s38, 1
      %p42 = scmp.eq.s32.totalorder %s30, 1
      %p43 = scmp.ne.s32.totalorder %s38, %s40
      %p44 = scmp.eq.s32.totalorder %s30, 0
      %p45 = por %p43, %p44
      %p46 = scmp.ne.s32.totalorder %s38, %s40
      %p47 = scmp.eq.s32.totalorder %s35, 1
      %p48 = por %p46, %p47
      %p49 = scmp.ne.s32.totalorder %s40, %s41
      %p50 = scmp.eq.s32.totalorder %s35, 0
      %p51 = por %p49, %p50
      %p52 = scmp.ne.s32.totalorder %s40, %s41
      %p53 = scmp.eq.s32.totalorder %s36, 1
      %p54 = por %p52, %p53
      %p56 = scmp.ne.s32.totalorder %s41, %s55
      %p57 = scmp.eq.s32.totalorder %s36, 0
      %p58 = por %p56, %p57
      %s60 = sadd.s32 %s59, 1
      %p63 = scmp.eq.s32.totalorder %s30, 1
      %p64 = scmp.ne.s32.totalorder %s59, %s61
      %p65 = scmp.eq.s32.totalorder %s30, 0
      %p66 = por %p64, %p65
      %p67 = scmp.ne.s32.totalorder %s59, %s61
      %p68 = scmp.eq.s32.totalorder %s35, 1
      %p69 = por %p67, %p68
      %p70 = scmp.ne.s32.totalorder %s61, %s62
      %p71 = scmp.eq.s32.totalorder %s35, 0
      %p72 = por %p70, %p71
      %p73 = scmp.ne.s32.totalorder %s61, %s62
      %p74 = scmp.eq.s32.totalorder %s36, 1
      %p75 = por %p73, %p74
      %p77 = scmp.ne.s32.totalorder %s62, %s76
      %p78 = scmp.eq.s32.totalorder %s36, 0
      %p79 = por %p77, %p78
      %s81 = sadd.s32 %s80, 1
      %p84 = scmp.eq.s32.totalorder %s30, 1
      %p85 = scmp.ne.s32.totalorder %s80, %s82
      %p86 = scmp.eq.s32.totalorder %s30, 0
      %p87 = por %p85, %p86
      %p88 = scmp.ne.s32.totalorder %s80, %s82
      %p89 = scmp.eq.s32.totalorder %s35, 1
      %p90 = por %p88, %p89
      %p91 = scmp.ne.s32.totalorder %s82, %s83
      %p92 = scmp.eq.s32.totalorder %s35, 0
      %p93 = por %p91, %p92
      %p94 = scmp.ne.s32.totalorder %s82, %s83
      %p95 = scmp.eq.s32.totalorder %s36, 1
      %p96 = por %p94, %p95
      %p98 = scmp.ne.s32.totalorder %s83, %s97
      %p99 = scmp.eq.s32.totalorder %s36, 0
      %p100 = por %p98, %p99
      %s101 = ssub.s32 %s30, %s37
      %p102 = scmp.eq.s32.totalorder %s101, 0
      %s104 = sadd.s32 %s103, 1
      %s105 = scalar_select %p102, %s103, %s104
      %p108 = pneg %p102
      %p109 = scmp.eq.s32.totalorder %s30, 1
      %p110 = por %p108, %p109
      %p111 = scmp.ne.s32.totalorder %s103, %s106
      %p112 = scmp.eq.s32.totalorder %s30, 0
      %p113 = por %p111, %p112
      %p114 = scmp.ne.s32.totalorder %s103, %s106
      %p115 = scmp.eq.s32.totalorder %s35, 1
      %p116 = por %p114, %p115
      %p117 = scmp.ne.s32.totalorder %s106, %s107
      %p118 = scmp.eq.s32.totalorder %s35, 0
      %p119 = por %p117, %p118
      %p120 = scmp.ne.s32.totalorder %s106, %s107
      %p121 = scmp.eq.s32.totalorder %s36, 1
      %p122 = por %p120, %p121
      %p124 = scmp.ne.s32.totalorder %s107, %s123
      %p125 = scmp.eq.s32.totalorder %s36, 0
      %p126 = por %p124, %p125
      %s127 = ssub.s32 %s30, %s37
      %p128 = scmp.eq.s32.totalorder %s127, 0
      %s130 = sadd.s32 %s129, 1
      %s131 = scalar_select %p128, %s129, %s130
      %p134 = pneg %p128
      %p135 = scmp.eq.s32.totalorder %s30, 1
      %p136 = por %p134, %p135
      %p137 = scmp.ne.s32.totalorder %s129, %s132
      %p138 = scmp.eq.s32.totalorder %s30, 0
      %p139 = por %p137, %p138
      %p140 = scmp.ne.s32.totalorder %s129, %s132
      %p141 = scmp.eq.s32.totalorder %s35, 1
      %p142 = por %p140, %p141
      %p143 = scmp.ne.s32.totalorder %s132, %s133
      %p144 = scmp.eq.s32.totalorder %s35, 0
      %p145 = por %p143, %p144
      %p146 = scmp.ne.s32.totalorder %s132, %s133
      %p147 = scmp.eq.s32.totalorder %s36, 1
      %p148 = por %p146, %p147
      %p150 = scmp.ne.s32.totalorder %s133, %s149
      %p151 = scmp.eq.s32.totalorder %s36, 0
      %p152 = por %p150, %p151
      %s153 = ssub.s32 %s30, %s37
      %p154 = scmp.eq.s32.totalorder %s153, 0
      %s156 = sadd.s32 %s155, 1
      %s157 = scalar_select %p154, %s155, %s156
      %p160 = pneg %p154
      %p161 = scmp.eq.s32.totalorder %s30, 1
      %p162 = por %p160, %p161
      %p163 = scmp.ne.s32.totalorder %s155, %s158
      %p164 = scmp.eq.s32.totalorder %s30, 0
      %p165 = por %p163, %p164
      %p166 = scmp.ne.s32.totalorder %s155, %s158
      %p167 = scmp.eq.s32.totalorder %s35, 1
      %p168 = por %p166, %p167
      %p169 = scmp.ne.s32.totalorder %s158, %s159
      %p170 = scmp.eq.s32.totalorder %s35, 0
      %p171 = por %p169, %p170
      %p172 = scmp.ne.s32.totalorder %s158, %s159
      %p173 = scmp.eq.s32.totalorder %s36, 1
      %p174 = por %p172, %p173
      %p176 = scmp.ne.s32.totalorder %s159, %s175
      %p177 = scmp.eq.s32.totalorder %s36, 0
      %p178 = por %p176, %p177
      %s179 = ssub.s32 %s30, %s37
      %p180 = scmp.eq.s32.totalorder %s179, 0
      %s182 = sadd.s32 %s181, 1
      %s183 = scalar_select %p180, %s181, %s182
      %p186 = pneg %p180
      %p187 = scmp.eq.s32.totalorder %s30, 1
      %p188 = por %p186, %p187
      %p189 = scmp.ne.s32.totalorder %s181, %s184
      %p190 = scmp.eq.s32.totalorder %s30, 0
      %p191 = por %p189, %p190
      %p192 = scmp.ne.s32.totalorder %s181, %s184
      %p193 = scmp.eq.s32.totalorder %s35, 1
      %p194 = por %p192, %p193
      %p195 = scmp.ne.s32.totalorder %s184, %s185
      %p196 = scmp.eq.s32.totalorder %s35, 0
      %p197 = por %p195, %p196
      %p198 = scmp.ne.s32.totalorder %s184, %s185
      %p199 = scmp.eq.s32.totalorder %s36, 1
      %p200 = por %p198, %p199
      %p202 = scmp.ne.s32.totalorder %s185, %s201
      %p203 = scmp.eq.s32.totalorder %s36, 0
      %p204 = por %p202, %p203
      %s206 = sadd.s32 %s205, 1
      %p209 = scmp.eq.s32.totalorder %s30, 1
      %p210 = scmp.ne.s32.totalorder %s205, %s207
      %p211 = scmp.eq.s32.totalorder %s30, 0
      %p212 = por %p210, %p211
      %p213 = scmp.ne.s32.totalorder %s205, %s207
      %p214 = scmp.eq.s32.totalorder %s35, 1
      %p215 = por %p213, %p214
      %p216 = scmp.ne.s32.totalorder %s207, %s208
      %p217 = scmp.eq.s32.totalorder %s35, 0
      %p218 = por %p216, %p217
      %p219 = scmp.ne.s32.totalorder %s207, %s208
      %p220 = scmp.eq.s32.totalorder %s36, 1
      %p221 = por %p219, %p220
      %p223 = scmp.ne.s32.totalorder %s208, %s222
      %p224 = scmp.eq.s32.totalorder %s36, 0
      %p225 = por %p223, %p224
      %s227 = sadd.s32 %s226, 1
      %p230 = scmp.eq.s32.totalorder %s30, 1
      %p231 = scmp.ne.s32.totalorder %s226, %s228
      %p232 = scmp.eq.s32.totalorder %s30, 0
      %p233 = por %p231, %p232
      %p234 = scmp.ne.s32.totalorder %s226, %s228
      %p235 = scmp.eq.s32.totalorder %s35, 1
      %p236 = por %p234, %p235
      %p237 = scmp.ne.s32.totalorder %s228, %s229
      %p238 = scmp.eq.s32.totalorder %s35, 0
      %p239 = por %p237, %p238
      %p240 = scmp.ne.s32.totalorder %s228, %s229
      %p241 = scmp.eq.s32.totalorder %s36, 1
      %p242 = por %p240, %p241
      %p244 = scmp.ne.s32.totalorder %s229, %s243
      %p245 = scmp.eq.s32.totalorder %s36, 0
      %p246 = por %p244, %p245
      %s248 = sadd.s32 %s247, 1
      %p251 = scmp.eq.s32.totalorder %s30, 1
      %p252 = scmp.ne.s32.totalorder %s247, %s249
      %p253 = scmp.eq.s32.totalorder %s30, 0
      %p254 = por %p252, %p253
      %p255 = scmp.ne.s32.totalorder %s247, %s249
      %p256 = scmp.eq.s32.totalorder %s35, 1
      %p257 = por %p255, %p256
      %p258 = scmp.ne.s32.totalorder %s249, %s250
      %p259 = scmp.eq.s32.totalorder %s35, 0
      %p260 = por %p258, %p259
      %p261 = scmp.ne.s32.totalorder %s249, %s250
      %p262 = scmp.eq.s32.totalorder %s36, 1
      %p263 = por %p261, %p262
      %p265 = scmp.ne.s32.totalorder %s250, %s264
      %p266 = scmp.eq.s32.totalorder %s36, 0
      %p267 = por %p265, %p266
      %s269 = sadd.s32 %s268, 1
      %p272 = scmp.eq.s32.totalorder %s30, 1
      %p273 = scmp.ne.s32.totalorder %s268, %s270
      %p274 = scmp.eq.s32.totalorder %s30, 0
      %p275 = por %p273, %p274
      %p276 = scmp.ne.s32.totalorder %s268, %s270
      %p277 = scmp.eq.s32.totalorder %s35, 1
      %p278 = por %p276, %p277
      %p279 = scmp.ne.s32.totalorder %s270, %s271
      %p280 = scmp.eq.s32.totalorder %s35, 0
      %p281 = por %p279, %p280
      %p282 = scmp.ne.s32.totalorder %s270, %s271
      %p283 = scmp.eq.s32.totalorder %s36, 1
      %p284 = por %p282, %p283
      %p286 = scmp.ne.s32.totalorder %s271, %s285
      %p287 = scmp.eq.s32.totalorder %s36, 0
      %p288 = por %p286, %p287
      %s290 = sadd.s32 %s289, 1
      %p293 = scmp.eq.s32.totalorder %s30, 1
      %p294 = scmp.ne.s32.totalorder %s289, %s291
      %p295 = scmp.eq.s32.totalorder %s30, 0
      %p296 = por %p294, %p295
      %p297 = scmp.ne.s32.totalorder %s289, %s291
      %p298 = scmp.eq.s32.totalorder %s35, 1
      %p299 = por %p297, %p298
      %p300 = scmp.ne.s32.totalorder %s291, %s292
      %p301 = scmp.eq.s32.totalorder %s35, 0
      %p302 = por %p300, %p301
      %p303 = scmp.ne.s32.totalorder %s291, %s292
      %p304 = scmp.eq.s32.totalorder %s36, 1
      %p305 = por %p303, %p304
      %p307 = scmp.ne.s32.totalorder %s292, %s306
      %p308 = scmp.eq.s32.totalorder %s36, 0
      %p309 = por %p307, %p308
      %s311 = sadd.s32 %s310, 1
      %p314 = scmp.eq.s32.totalorder %s30, 1
      %p315 = scmp.ne.s32.totalorder %s310, %s312
      %p316 = scmp.eq.s32.totalorder %s30, 0
      %p317 = por %p315, %p316
      %p318 = scmp.ne.s32.totalorder %s310, %s312
      %p319 = scmp.eq.s32.totalorder %s35, 1
      %p320 = por %p318, %p319
      %p321 = scmp.ne.s32.totalorder %s312, %s313
      %p322 = scmp.eq.s32.totalorder %s35, 0
      %p323 = por %p321, %p322
      %p324 = scmp.ne.s32.totalorder %s312, %s313
      %p325 = scmp.eq.s32.totalorder %s36, 1
      %p326 = por %p324, %p325
      %p328 = scmp.ne.s32.totalorder %s313, %s327
      %p329 = scmp.eq.s32.totalorder %s36, 0
      %p330 = por %p328, %p329
      %s332 = sadd.s32 %s331, 1
      %p335 = scmp.eq.s32.totalorder %s30, 1
      %p336 = scmp.ne.s32.totalorder %s331, %s333
      %p337 = scmp.eq.s32.totalorder %s30, 0
      %p338 = por %p336, %p337
      %p339 = scmp.ne.s32.totalorder %s331, %s333
      %p340 = scmp.eq.s32.totalorder %s35, 1
      %p341 = por %p339, %p340
      %p342 = scmp.ne.s32.totalorder %s333, %s334
      %p343 = scmp.eq.s32.totalorder %s35, 0
      %p344 = por %p342, %p343
      %p345 = scmp.ne.s32.totalorder %s333, %s334
      %p346 = scmp.eq.s32.totalorder %s36, 1
      %p347 = por %p345, %p346
      %p349 = scmp.ne.s32.totalorder %s334, %s348
      %p350 = scmp.eq.s32.totalorder %s36, 0
      %p351 = por %p349, %p350
      %s353 = sadd.s32 %s352, 1
      %p356 = scmp.eq.s32.totalorder %s30, 1
      %p357 = scmp.ne.s32.totalorder %s352, %s354
      %p358 = scmp.eq.s32.totalorder %s30, 0
      %p359 = por %p357, %p358
      %p360 = scmp.ne.s32.totalorder %s352, %s354
      %p361 = scmp.eq.s32.totalorder %s35, 1
      %p362 = por %p360, %p361
      %p363 = scmp.ne.s32.totalorder %s354, %s355
      %p364 = scmp.eq.s32.totalorder %s35, 0
      %p365 = por %p363, %p364
      %p366 = scmp.ne.s32.totalorder %s354, %s355
      %p367 = scmp.eq.s32.totalorder %s36, 1
      %p368 = por %p366, %p367
      %p370 = scmp.ne.s32.totalorder %s355, %s369
      %p371 = scmp.eq.s32.totalorder %s36, 0
      %p372 = por %p370, %p371
      %s374 = sadd.s32 %s373, 1
      %p377 = scmp.eq.s32.totalorder %s30, 1
      %p378 = scmp.ne.s32.totalorder %s373, %s375
      %p379 = scmp.eq.s32.totalorder %s30, 0
      %p380 = por %p378, %p379
      %p381 = scmp.ne.s32.totalorder %s373, %s375
      %p382 = scmp.eq.s32.totalorder %s35, 1
      %p383 = por %p381, %p382
      %p384 = scmp.ne.s32.totalorder %s375, %s376
      %p385 = scmp.eq.s32.totalorder %s35, 0
      %p386 = por %p384, %p385
      %p387 = scmp.ne.s32.totalorder %s375, %s376
      %p388 = scmp.eq.s32.totalorder %s36, 1
      %p389 = por %p387, %p388
      %p391 = scmp.ne.s32.totalorder %s376, %s390
      %p392 = scmp.eq.s32.totalorder %s36, 0
      %p393 = por %p391, %p392
      %s395 = sadd.s32 %s394, 1
      %p398 = scmp.eq.s32.totalorder %s30, 1
      %p399 = scmp.ne.s32.totalorder %s394, %s396
      %p400 = scmp.eq.s32.totalorder %s30, 0
      %p401 = por %p399, %p400
      %p402 = scmp.ne.s32.totalorder %s394, %s396
      %p403 = scmp.eq.s32.totalorder %s35, 1
      %p404 = por %p402, %p403
      %p405 = scmp.ne.s32.totalorder %s396, %s397
      %p406 = scmp.eq.s32.totalorder %s35, 0
      %p407 = por %p405, %p406
      %p408 = scmp.ne.s32.totalorder %s396, %s397
      %p409 = scmp.eq.s32.totalorder %s36, 1
      %p410 = por %p408, %p409
      %p412 = scmp.ne.s32.totalorder %s397, %s411
      %p413 = scmp.eq.s32.totalorder %s36, 0
      %p414 = por %p412, %p413
      %s416 = sadd.s32 %s415, 1
      %p419 = scmp.eq.s32.totalorder %s30, 1
      %p420 = scmp.ne.s32.totalorder %s415, %s417
      %p421 = scmp.eq.s32.totalorder %s30, 0
      %p422 = por %p420, %p421
      %p423 = scmp.ne.s32.totalorder %s415, %s417
      %p424 = scmp.eq.s32.totalorder %s35, 1
      %p425 = por %p423, %p424
      %p426 = scmp.ne.s32.totalorder %s417, %s418
      %p427 = scmp.eq.s32.totalorder %s35, 0
      %p428 = por %p426, %p427
      %p429 = scmp.ne.s32.totalorder %s417, %s418
      %p430 = scmp.eq.s32.totalorder %s36, 1
      %p431 = por %p429, %p430
      %p433 = scmp.ne.s32.totalorder %s418, %s432
      %p434 = scmp.eq.s32.totalorder %s36, 0
      %p435 = por %p433, %p434
      %s437 = sadd.s32 %s436, 1
      %p440 = scmp.eq.s32.totalorder %s30, 1
      %p441 = scmp.ne.s32.totalorder %s436, %s438
      %p442 = scmp.eq.s32.totalorder %s30, 0
      %p443 = por %p441, %p442
      %p444 = scmp.ne.s32.totalorder %s436, %s438
      %p445 = scmp.eq.s32.totalorder %s35, 1
      %p446 = por %p444, %p445
      %p447 = scmp.ne.s32.totalorder %s438, %s439
      %p448 = scmp.eq.s32.totalorder %s35, 0
      %p449 = por %p447, %p448
      %p450 = scmp.ne.s32.totalorder %s438, %s439
      %p451 = scmp.eq.s32.totalorder %s36, 1
      %p452 = por %p450, %p451
      %p454 = scmp.ne.s32.totalorder %s439, %s453
      %p455 = scmp.eq.s32.totalorder %s36, 0
      %p456 = por %p454, %p455
      %s458 = sadd.s32 %s457, 1
      %p461 = scmp.eq.s32.totalorder %s30, 1
      %p462 = scmp.ne.s32.totalorder %s457, %s459
      %p463 = scmp.eq.s32.totalorder %s30, 0
      %p464 = por %p462, %p463
      %p465 = scmp.ne.s32.totalorder %s457, %s459
      %p466 = scmp.eq.s32.totalorder %s35, 1
      %p467 = por %p465, %p466
      %p468 = scmp.ne.s32.totalorder %s459, %s460
      %p469 = scmp.eq.s32.totalorder %s35, 0
      %p470 = por %p468, %p469
      %p471 = scmp.ne.s32.totalorder %s459, %s460
      %p472 = scmp.eq.s32.totalorder %s36, 1
      %p473 = por %p471, %p472
      %p475 = scmp.ne.s32.totalorder %s460, %s474
      %p476 = scmp.eq.s32.totalorder %s36, 0
      %p477 = por %p475, %p476
      %s478 = ssub.s32 %s30, %s37
      %p479 = scmp.eq.s32.totalorder %s478, 0
      %s481 = sadd.s32 %s480, 1
      %s482 = scalar_select %p479, %s480, %s481
      %p485 = pneg %p479
      %p486 = scmp.eq.s32.totalorder %s30, 1
      %p487 = por %p485, %p486
      %p488 = scmp.ne.s32.totalorder %s480, %s483
      %p489 = scmp.eq.s32.totalorder %s30, 0
      %p490 = por %p488, %p489
      %p491 = scmp.ne.s32.totalorder %s480, %s483
      %p492 = scmp.eq.s32.totalorder %s35, 1
      %p493 = por %p491, %p492
      %p494 = scmp.ne.s32.totalorder %s483, %s484
      %p495 = scmp.eq.s32.totalorder %s35, 0
      %p496 = por %p494, %p495
      %p497 = scmp.ne.s32.totalorder %s483, %s484
      %p498 = scmp.eq.s32.totalorder %s36, 1
      %p499 = por %p497, %p498
      %p501 = scmp.ne.s32.totalorder %s484, %s500
      %p502 = scmp.eq.s32.totalorder %s36, 0
      %p503 = por %p501, %p502
      %p504 = scmp.le.s32.totalorder 1, %s30
      %p505 = scmp.lt.s32.totalorder %s30, 3
      %p506 = pnand %p504, %p505
      %p507 = pneg %p506
      // Predicated region
      $region9: #{_forward.1} parent=5 // pred_check
        _
      $region10: #{_forward.1} parent=5 // pred_check_branch
        %509 = sbr.rel (%p506) target = $region12
      $region11: #{_forward.1} parent=5 // pred_region
        %s510 = ssub.s32 %s30, 1
        // Predicated region
        $region13: #{_forward.1} parent=11 // pred_check
          %p511 = pneg %p51
        $region14: #{_forward.1} parent=11 // pred_check_branch
          %513 = sbr.rel (%p511) target = $region16
        $region15: #{_forward.1} parent=11 // pred_region
          _
        $region16: #{_forward.1} parent=11 // pred_fallthru
          _
        // Predicated region
        $region17: #{_forward.1} parent=11 // pred_check
          %p514 = pneg %p72
        $region18: #{_forward.1} parent=11 // pred_check_branch
          %516 = sbr.rel (%p514) target = $region20
        $region19: #{_forward.1} parent=11 // pred_region
          _
        $region20: #{_forward.1} parent=11 // pred_fallthru
          _
        // Predicated region
        $region21: #{_forward.1} parent=11 // pred_check
          %p517 = pneg %p93
        $region22: #{_forward.1} parent=11 // pred_check_branch
          %519 = sbr.rel (%p517) target = $region24
        $region23: #{_forward.1} parent=11 // pred_region
          _
        $region24: #{_forward.1} parent=11 // pred_fallthru
          _
        // Predicated region
        $region25: #{_forward.1} parent=11 // pred_check
          %p520 = pneg %p218
        $region26: #{_forward.1} parent=11 // pred_check_branch
          %522 = sbr.rel (%p520) target = $region28
        $region27: #{_forward.1} parent=11 // pred_region
          _
        $region28: #{_forward.1} parent=11 // pred_fallthru
          _
        // Predicated region
        $region29: #{_forward.1} parent=11 // pred_check
          %p523 = pneg %p239
        $region30: #{_forward.1} parent=11 // pred_check_branch
          %525 = sbr.rel (%p523) target = $region32
        $region31: #{_forward.1} parent=11 // pred_region
          _
        $region32: #{_forward.1} parent=11 // pred_fallthru
          _
        // Predicated region
        $region33: #{_forward.1} parent=11 // pred_check
          %p526 = pneg %p260
        $region34: #{_forward.1} parent=11 // pred_check_branch
          %528 = sbr.rel (%p526) target = $region36
        $region35: #{_forward.1} parent=11 // pred_region
          _
        $region36: #{_forward.1} parent=11 // pred_fallthru
          _
        // Predicated region
        $region37: #{_forward.1} parent=11 // pred_check
          %p529 = pneg %p281
        $region38: #{_forward.1} parent=11 // pred_check_branch
          %531 = sbr.rel (%p529) target = $region40
        $region39: #{_forward.1} parent=11 // pred_region
          %s533 = ssub.s32 8192, 8192
          %534 = vsyncadd [#allocation4], %s533
          %s535 = sshll.u32 [#allocation3], 4
          %s536 = int_to_ptr.vmem [resolvable:$true] %s535
          %541 = dma.hbm_to_vmem [thread:$0]  %s10, 8192, %s536, [#allocation4], 256, 256, 16
        $region40: #{_forward.1} parent=11 // pred_fallthru
          _
        // Predicated region
        $region41: #{_forward.1} parent=11 // pred_check
          %p542 = pneg %p302
        $region42: #{_forward.1} parent=11 // pred_check_branch
          %544 = sbr.rel (%p542) target = $region44
        $region43: #{_forward.1} parent=11 // pred_region
          %s546 = ssub.s32 8192, 8192
          %547 = vsyncadd [#allocation6], %s546
          %s548 = sshll.u32 [#allocation5], 4
          %s549 = int_to_ptr.vmem [resolvable:$true] %s548
          %554 = dma.hbm_to_vmem [thread:$0]  %s11, 8192, %s549, [#allocation6], 256, 256, 16
        $region44: #{_forward.1} parent=11 // pred_fallthru
          _
        // Predicated region
        $region45: #{_forward.1} parent=11 // pred_check
          %p555 = pneg %p323
        $region46: #{_forward.1} parent=11 // pred_check_branch
          %557 = sbr.rel (%p555) target = $region48
        $region47: #{_forward.1} parent=11 // pred_region
          %s559 = ssub.s32 8192, 8192
          %560 = vsyncadd [#allocation6], %s559
          %s561 = sshll.u32 [#allocation7], 4
          %s562 = int_to_ptr.vmem [resolvable:$true] %s561
          %567 = dma.hbm_to_vmem [thread:$0]  %s12, 8192, %s562, [#allocation6], 256, 256, 16
        $region48: #{_forward.1} parent=11 // pred_fallthru
          _
        // Predicated region
        $region49: #{_forward.1} parent=11 // pred_check
          %p568 = pneg %p344
        $region50: #{_forward.1} parent=11 // pred_check_branch
          %570 = sbr.rel (%p568) target = $region52
        $region51: #{_forward.1} parent=11 // pred_region
          _
        $region52: #{_forward.1} parent=11 // pred_fallthru
          _
        // Predicated region
        $region53: #{_forward.1} parent=11 // pred_check
          %p571 = pneg %p365
        $region54: #{_forward.1} parent=11 // pred_check_branch
          %573 = sbr.rel (%p571) target = $region56
        $region55: #{_forward.1} parent=11 // pred_region
          _
        $region56: #{_forward.1} parent=11 // pred_fallthru
          _
        // Predicated region
        $region57: #{_forward.1} parent=11 // pred_check
          %p574 = pneg %p386
        $region58: #{_forward.1} parent=11 // pred_check_branch
          %576 = sbr.rel (%p574) target = $region60
        $region59: #{_forward.1} parent=11 // pred_region
          _
        $region60: #{_forward.1} parent=11 // pred_fallthru
          _
        // Predicated region
        $region61: #{_forward.1} parent=11 // pred_check
          %p577 = pneg %p407
        $region62: #{_forward.1} parent=11 // pred_check_branch
          %579 = sbr.rel (%p577) target = $region64
        $region63: #{_forward.1} parent=11 // pred_region
          _
        $region64: #{_forward.1} parent=11 // pred_fallthru
          _
        // Predicated region
        $region65: #{_forward.1} parent=11 // pred_check
          %p580 = pneg %p428
        $region66: #{_forward.1} parent=11 // pred_check_branch
          %582 = sbr.rel (%p580) target = $region68
        $region67: #{_forward.1} parent=11 // pred_region
          _
        $region68: #{_forward.1} parent=11 // pred_fallthru
          _
        // Predicated region
        $region69: #{_forward.1} parent=11 // pred_check
          %p583 = pneg %p449
        $region70: #{_forward.1} parent=11 // pred_check_branch
          %585 = sbr.rel (%p583) target = $region72
        $region71: #{_forward.1} parent=11 // pred_region
          _
        $region72: #{_forward.1} parent=11 // pred_fallthru
          _
        // Predicated region
        $region73: #{_forward.1} parent=11 // pred_check
          %p586 = pneg %p470
        $region74: #{_forward.1} parent=11 // pred_check_branch
          %588 = sbr.rel (%p586) target = $region76
        $region75: #{_forward.1} parent=11 // pred_region
          _
        $region76: #{_forward.1} parent=11 // pred_fallthru
          _
      $region12: #{_forward.1} parent=5 // pred_fallthru
        _
      %p589 = scmp.lt.s32.totalorder %s30, 2
      // Predicated region
      $region77: #{_forward.1} parent=5 // pred_check
        %p590 = pneg %p589
      $region78: #{_forward.1} parent=5 // pred_check_branch
        %592 = sbr.rel (%p590) target = $region80
      $region79: #{_forward.1} parent=5 // pred_region
        // Predicated region
        $region81: #{_forward.1} parent=79 // pred_check
          %p593 = pneg %p113
        $region82: #{_forward.1} parent=79 // pred_check_branch
          %595 = sbr.rel (%p593) target = $region84
        $region83: #{_forward.1} parent=79 // pred_region
          %p596 = scmp.lt.s32.totalorder %s30, 1
          %s597 = scalar_select %p596, %s30, 1
          %s598 = smul.addr %s597, 2
          %s599 = smul.addr %s598, 4
          %s600 = scalar_lea.vmem %s3, %s599
        $region84: #{_forward.1} parent=79 // pred_fallthru
          _
        // Predicated region
        $region85: #{_forward.1} parent=79 // pred_check
          %p601 = pneg %p139
        $region86: #{_forward.1} parent=79 // pred_check_branch
          %603 = sbr.rel (%p601) target = $region88
        $region87: #{_forward.1} parent=79 // pred_region
          %p604 = scmp.lt.s32.totalorder %s30, 1
          %s605 = scalar_select %p604, %s30, 1
          %s606 = smul.addr %s605, 2
          %s607 = smul.addr %s606, 4
          %s608 = scalar_lea.vmem %s4, %s607
        $region88: #{_forward.1} parent=79 // pred_fallthru
          _
        // Predicated region
        $region89: #{_forward.1} parent=79 // pred_check
          %p609 = pneg %p165
        $region90: #{_forward.1} parent=79 // pred_check_branch
          %611 = sbr.rel (%p609) target = $region92
        $region91: #{_forward.1} parent=79 // pred_region
          %p612 = scmp.lt.s32.totalorder %s30, 1
          %s613 = scalar_select %p612, %s30, 1
          %s614 = smul.addr %s613, 2
          %s615 = smul.addr %s614, 4
          %s616 = scalar_lea.vmem %s5, %s615
        $region92: #{_forward.1} parent=79 // pred_fallthru
          _
        // Predicated region
        $region93: #{_forward.1} parent=79 // pred_check
          %p617 = pneg %p191
        $region94: #{_forward.1} parent=79 // pred_check_branch
          %619 = sbr.rel (%p617) target = $region96
        $region95: #{_forward.1} parent=79 // pred_region
          %p620 = scmp.lt.s32.totalorder %s30, 1
          %s621 = scalar_select %p620, %s30, 1
          %s622 = smul.addr %s621, 2
          %s623 = smul.addr %s622, 4
          %s624 = scalar_lea.vmem %s6, %s623
        $region96: #{_forward.1} parent=79 // pred_fallthru
          _
      $region80: #{_forward.1} parent=5 // pred_fallthru
        _
      %p625 = scmp.le.s32.totalorder 1, %s30
      %p626 = scmp.lt.s32.totalorder %s30, 3
      %p627 = pnand %p625, %p626
      %p628 = pneg %p627
      // Predicated region
      $region97: #{_forward.1} parent=5 // pred_check
        _
      $region98: #{_forward.1} parent=5 // pred_check_branch
        %630 = sbr.rel (%p627) target = $region100
      $region99: #{_forward.1} parent=5 // pred_region
        %s631 = ssub.s32 %s30, 1
        // Predicated region
        $region101: #{_forward.1} parent=99 // pred_check
          %p632 = pneg %p281
        $region102: #{_forward.1} parent=99 // pred_check_branch
          %634 = sbr.rel (%p632) target = $region104
        $region103: #{_forward.1} parent=99 // pred_region
          %635 = dma.done [#allocation4], 8192
        $region104: #{_forward.1} parent=99 // pred_fallthru
          _
        // Predicated region
        $region105: #{_forward.1} parent=99 // pred_check
          %p636 = pneg %p302
        $region106: #{_forward.1} parent=99 // pred_check_branch
          %638 = sbr.rel (%p636) target = $region108
        $region107: #{_forward.1} parent=99 // pred_region
          %639 = dma.done [#allocation6], 8192
        $region108: #{_forward.1} parent=99 // pred_fallthru
          _
        // Predicated region
        $region109: #{_forward.1} parent=99 // pred_check
          %p640 = pneg %p323
        $region110: #{_forward.1} parent=99 // pred_check_branch
          %642 = sbr.rel (%p640) target = $region112
        $region111: #{_forward.1} parent=99 // pred_region
          %643 = dma.done [#allocation6], 8192
        $region112: #{_forward.1} parent=99 // pred_fallthru
          _
        %p644 = pneg %p51
        %p645 = pneg %p48
        %p646 = pneg %p72
        %p647 = pneg %p69
        %p648 = pneg %p93
        %p649 = pneg %p90
        %p650 = scmp.lt.s32.totalorder %s35, 1
        %s651 = scalar_select %p650, %s35, 1
        %s652 = smul.addr %s651, 2
        %s653 = smul.addr %s652, 4
        %s654 = scalar_lea.vmem %s3, %s653
        %p655 = pneg %p119
        %p656 = pneg %p116
        %p657 = scmp.lt.s32.totalorder %s35, 1
        %s658 = scalar_select %p657, %s35, 1
        %s659 = smul.addr %s658, 2
        %s660 = smul.addr %s659, 4
        %s661 = scalar_lea.vmem %s4, %s660
        %p662 = pneg %p145
        %p663 = pneg %p142
        %p664 = scmp.lt.s32.totalorder %s35, 1
        %s665 = scalar_select %p664, %s35, 1
        %s666 = smul.addr %s665, 2
        %s667 = smul.addr %s666, 4
        %s668 = scalar_lea.vmem %s5, %s667
        %p669 = pneg %p171
        %p670 = pneg %p168
        %p671 = scmp.lt.s32.totalorder %s35, 1
        %s672 = scalar_select %p671, %s35, 1
        %s673 = smul.addr %s672, 2
        %s674 = smul.addr %s673, 4
        %s675 = scalar_lea.vmem %s6, %s674
        %p676 = pneg %p197
        %p677 = pneg %p194
        %p678 = pneg %p218
        %p679 = pneg %p215
        %p680 = pneg %p239
        %p681 = pneg %p236
        %p682 = pneg %p260
        %p683 = pneg %p257
        %p684 = pneg %p281
        %p685 = pneg %p278
        %p686 = pneg %p302
        %p687 = pneg %p299
        %p688 = pneg %p323
        %p689 = pneg %p320
        %p690 = pneg %p344
        %p691 = pneg %p341
        %p692 = pneg %p365
        %p693 = pneg %p362
        %p694 = pneg %p386
        %p695 = pneg %p383
        %p696 = pneg %p407
        %p697 = pneg %p404
        %p698 = pneg %p428
        %p699 = pneg %p425
        %p700 = pneg %p449
        %p701 = pneg %p446
        %p702 = pneg %p470
        %p703 = pneg %p467
        %p704 = pneg %p496
        %p705 = pneg %p493
        %p706 = scmp.lt.s32.totalorder %s35, 1
        %s707 = scalar_select %p706, %s35, 1
        %s708 = smul.addr %s707, 2
        %s709 = smul.addr %s708, 2
        %s710 = scalar_lea.vmem %s20, %s709
        %p711 = scmp.lt.s32.totalorder %s35, 1
        %s712 = scalar_select %p711, %s35, 1
        %s713 = smul.addr %s712, 2
        %s714 = smul.addr %s713, 4
        %s715 = scalar_lea.vmem %s3, %s714
        %p716 = scmp.lt.s32.totalorder %s35, 1
        %s717 = scalar_select %p716, %s35, 1
        %s718 = smul.addr %s717, 2
        %s719 = smul.addr %s718, 4
        %s720 = scalar_lea.vmem %s4, %s719
        %p721 = scmp.lt.s32.totalorder %s35, 1
        %s722 = scalar_select %p721, %s35, 1
        %s723 = smul.addr %s722, 2
        %s724 = smul.addr %s723, 4
        %s725 = scalar_lea.vmem %s5, %s724
        %p726 = scmp.lt.s32.totalorder %s35, 1
        %s727 = scalar_select %p726, %s35, 1
        %s728 = smul.addr %s727, 2
        %s729 = smul.addr %s728, 4
        %s730 = scalar_lea.vmem %s6, %s729
        %p731 = scmp.lt.s32.totalorder %s35, 1
        %s732 = scalar_select %p731, %s35, 1
        %s733 = smul.addr %s732, 2
        %s734 = smul.addr %s733, 2
        %s735 = scalar_lea.vmem %s20, %s734
        %v736 = vld [vmem:[#allocation2] sm:$0x1]
        %s737 = vtos %v736
        %v738 = vld [vmem:[%s0] sm:$0x3]
        %v739 = vmul.f32 %v738, -0.25
        %v740 = vmul.f32 %v739, 1.442695
        %v741 = vpow.pop %v740
        %v742 = vadd.f32 %v741, 1.0
        %v743 = vrcp.pop %v742
        %v744 = vmul.f32 1.0, %v743
        %v745 = vld [vmem:[%s1] sm:$0x3]
        %vm746 = vcmp.lt.f32.partialorder %v745, %v744
        %v747 = vsel %vm746, 1, 0
        %v748 = vcvt.s32.f32 %v747
        %v749 = vld [vmem:[%s725] sm:$0xff]
        %v750 = vld [vmem:[%s730] sm:$0xff]
        %v751 = vld [vmem:[%s7] sm:$0xff]
        %v752 = vld [vmem:[%s7 + $0x8] sm:$0xff]
        %v753 = vld [vmem:[%s7 + $0x10] sm:$0xff]
        %v754 = vld [vmem:[%s7 + $0x18] sm:$0xff]
        %v755 = vld [vmem:[%s7 + $0x20] sm:$0xff]
        %v756 = vld [vmem:[%s7 + $0x28] sm:$0xff]
        %v757 = vld [vmem:[%s7 + $0x30] sm:$0xff]
        %v758 = vld [vmem:[%s7 + $0x38] sm:$0xff]
        %v759 = vld [vmem:[%s7 + $0x40] sm:$0xff]
        %v760 = vld [vmem:[%s7 + $0x48] sm:$0xff]
        %v761 = vld [vmem:[%s7 + $0x50] sm:$0xff]
        %v762 = vld [vmem:[%s7 + $0x58] sm:$0xff]
        %v763 = vld [vmem:[%s7 + $0x60] sm:$0xff]
        %v764 = vld [vmem:[%s7 + $0x68] sm:$0xff]
        %v765 = vld [vmem:[%s7 + $0x70] sm:$0xff]
        %v766 = vld [vmem:[%s7 + $0x78] sm:$0xff]
        %v767 = vld [vmem:[%s7 + $0x80] sm:$0xff]
        %v768 = vld [vmem:[%s7 + $0x88] sm:$0xff]
        %v769 = vld [vmem:[%s7 + $0x90] sm:$0xff]
        %v770 = vld [vmem:[%s7 + $0x98] sm:$0xff]
        %v771 = vld [vmem:[%s7 + $0xa0] sm:$0xff]
        %v772 = vld [vmem:[%s7 + $0xa8] sm:$0xff]
        %v773 = vld [vmem:[%s7 + $0xb0] sm:$0xff]
        %v774 = vld [vmem:[%s7 + $0xb8] sm:$0xff]
        %v775 = vld [vmem:[%s7 + $0xc0] sm:$0xff]
        %v776 = vld [vmem:[%s7 + $0xc8] sm:$0xff]
        %v777 = vld [vmem:[%s7 + $0xd0] sm:$0xff]
        %v778 = vld [vmem:[%s7 + $0xd8] sm:$0xff]
        %v779 = vld [vmem:[%s7 + $0xe0] sm:$0xff]
        %v780 = vld [vmem:[%s7 + $0xe8] sm:$0xff]
        %v781 = vld [vmem:[%s7 + $0xf0] sm:$0xff]
        %v782 = vld [vmem:[%s7 + $0xf8] sm:$0xff]
        %v783 = vld [vmem:[%s7 + $0x100] sm:$0xff]
        %v784 = vld [vmem:[%s7 + $0x108] sm:$0xff]
        %v785 = vld [vmem:[%s7 + $0x110] sm:$0xff]
        %v786 = vld [vmem:[%s7 + $0x118] sm:$0xff]
        %v787 = vld [vmem:[%s7 + $0x120] sm:$0xff]
        %v788 = vld [vmem:[%s7 + $0x128] sm:$0xff]
        %v789 = vld [vmem:[%s7 + $0x130] sm:$0xff]
        %v790 = vld [vmem:[%s7 + $0x138] sm:$0xff]
        %v791 = vld [vmem:[%s7 + $0x140] sm:$0xff]
        %v792 = vld [vmem:[%s7 + $0x148] sm:$0xff]
        %v793 = vld [vmem:[%s7 + $0x150] sm:$0xff]
        %v794 = vld [vmem:[%s7 + $0x158] sm:$0xff]
        %v795 = vld [vmem:[%s7 + $0x160] sm:$0xff]
        %v796 = vld [vmem:[%s7 + $0x168] sm:$0xff]
        %v797 = vld [vmem:[%s7 + $0x170] sm:$0xff]
        %v798 = vld [vmem:[%s7 + $0x178] sm:$0xff]
        %v799 = vld [vmem:[%s7 + $0x180] sm:$0xff]
        %v800 = vld [vmem:[%s7 + $0x188] sm:$0xff]
        %v801 = vld [vmem:[%s7 + $0x190] sm:$0xff]
        %v802 = vld [vmem:[%s7 + $0x198] sm:$0xff]
        %v803 = vld [vmem:[%s7 + $0x1a0] sm:$0xff]
        %v804 = vld [vmem:[%s7 + $0x1a8] sm:$0xff]
        %v805 = vld [vmem:[%s7 + $0x1b0] sm:$0xff]
        %v806 = vld [vmem:[%s7 + $0x1b8] sm:$0xff]
        %v807 = vld [vmem:[%s7 + $0x1c0] sm:$0xff]
        %v808 = vld [vmem:[%s7 + $0x1c8] sm:$0xff]
        %v809 = vld [vmem:[%s7 + $0x1d0] sm:$0xff]
        %v810 = vld [vmem:[%s7 + $0x1d8] sm:$0xff]
        %v811 = vld [vmem:[%s7 + $0x1e0] sm:$0xff]
        %v812 = vld [vmem:[%s7 + $0x1e8] sm:$0xff]
        %v813 = vld [vmem:[%s7 + $0x1f0] sm:$0xff]
        %v814 = vld [vmem:[%s7 + $0x1f8] sm:$0xff]
        %v815 = vld [vmem:[%s8] sm:$0xff]
        %v816 = vld [vmem:[%s8 + $0x8] sm:$0xff]
        %v817 = vld [vmem:[%s8 + $0x10] sm:$0xff]
        %v818 = vld [vmem:[%s8 + $0x18] sm:$0xff]
        %v819 = vld [vmem:[%s8 + $0x20] sm:$0xff]
        %v820 = vld [vmem:[%s8 + $0x28] sm:$0xff]
        %v821 = vld [vmem:[%s8 + $0x30] sm:$0xff]
        %v822 = vld [vmem:[%s8 + $0x38] sm:$0xff]
        %v823 = vld [vmem:[%s8 + $0x40] sm:$0xff]
        %v824 = vld [vmem:[%s8 + $0x48] sm:$0xff]
        %v825 = vld [vmem:[%s8 + $0x50] sm:$0xff]
        %v826 = vld [vmem:[%s8 + $0x58] sm:$0xff]
        %v827 = vld [vmem:[%s8 + $0x60] sm:$0xff]
        %v828 = vld [vmem:[%s8 + $0x68] sm:$0xff]
        %v829 = vld [vmem:[%s8 + $0x70] sm:$0xff]
        %v830 = vld [vmem:[%s8 + $0x78] sm:$0xff]
        %v831 = vld [vmem:[%s8 + $0x80] sm:$0xff]
        %v832 = vld [vmem:[%s8 + $0x88] sm:$0xff]
        %v833 = vld [vmem:[%s8 + $0x90] sm:$0xff]
        %v834 = vld [vmem:[%s8 + $0x98] sm:$0xff]
        %v835 = vld [vmem:[%s8 + $0xa0] sm:$0xff]
        %v836 = vld [vmem:[%s8 + $0xa8] sm:$0xff]
        %v837 = vld [vmem:[%s8 + $0xb0] sm:$0xff]
        %v838 = vld [vmem:[%s8 + $0xb8] sm:$0xff]
        %v839 = vld [vmem:[%s8 + $0xc0] sm:$0xff]
        %v840 = vld [vmem:[%s8 + $0xc8] sm:$0xff]
        %v841 = vld [vmem:[%s8 + $0xd0] sm:$0xff]
        %v842 = vld [vmem:[%s8 + $0xd8] sm:$0xff]
        %v843 = vld [vmem:[%s8 + $0xe0] sm:$0xff]
        %v844 = vld [vmem:[%s8 + $0xe8] sm:$0xff]
        %v845 = vld [vmem:[%s8 + $0xf0] sm:$0xff]
        %v846 = vld [vmem:[%s8 + $0xf8] sm:$0xff]
        %v847 = vld [vmem:[%s8 + $0x100] sm:$0xff]
        %v848 = vld [vmem:[%s8 + $0x108] sm:$0xff]
        %v849 = vld [vmem:[%s8 + $0x110] sm:$0xff]
        %v850 = vld [vmem:[%s8 + $0x118] sm:$0xff]
        %v851 = vld [vmem:[%s8 + $0x120] sm:$0xff]
        %v852 = vld [vmem:[%s8 + $0x128] sm:$0xff]
        %v853 = vld [vmem:[%s8 + $0x130] sm:$0xff]
        %v854 = vld [vmem:[%s8 + $0x138] sm:$0xff]
        %v855 = vld [vmem:[%s8 + $0x140] sm:$0xff]
        %v856 = vld [vmem:[%s8 + $0x148] sm:$0xff]
        %v857 = vld [vmem:[%s8 + $0x150] sm:$0xff]
        %v858 = vld [vmem:[%s8 + $0x158] sm:$0xff]
        %v859 = vld [vmem:[%s8 + $0x160] sm:$0xff]
        %v860 = vld [vmem:[%s8 + $0x168] sm:$0xff]
        %v861 = vld [vmem:[%s8 + $0x170] sm:$0xff]
        %v862 = vld [vmem:[%s8 + $0x178] sm:$0xff]
        %v863 = vld [vmem:[%s8 + $0x180] sm:$0xff]
        %v864 = vld [vmem:[%s8 + $0x188] sm:$0xff]
        %v865 = vld [vmem:[%s8 + $0x190] sm:$0xff]
        %v866 = vld [vmem:[%s8 + $0x198] sm:$0xff]
        %v867 = vld [vmem:[%s8 + $0x1a0] sm:$0xff]
        %v868 = vld [vmem:[%s8 + $0x1a8] sm:$0xff]
        %v869 = vld [vmem:[%s8 + $0x1b0] sm:$0xff]
        %v870 = vld [vmem:[%s8 + $0x1b8] sm:$0xff]
        %v871 = vld [vmem:[%s8 + $0x1c0] sm:$0xff]
        %v872 = vld [vmem:[%s8 + $0x1c8] sm:$0xff]
        %v873 = vld [vmem:[%s8 + $0x1d0] sm:$0xff]
        %v874 = vld [vmem:[%s8 + $0x1d8] sm:$0xff]
        %v875 = vld [vmem:[%s8 + $0x1e0] sm:$0xff]
        %v876 = vld [vmem:[%s8 + $0x1e8] sm:$0xff]
        %v877 = vld [vmem:[%s8 + $0x1f0] sm:$0xff]
        %v878 = vld [vmem:[%s8 + $0x1f8] sm:$0xff]
        %v879 = vld [vmem:[%s9] sm:$0xff]
        %v880 = vld [vmem:[%s9 + $0x8] sm:$0xff]
        %v881 = vld [vmem:[%s9 + $0x10] sm:$0xff]
        %v882 = vld [vmem:[%s9 + $0x18] sm:$0xff]
        %v883 = vld [vmem:[%s9 + $0x20] sm:$0xff]
        %v884 = vld [vmem:[%s9 + $0x28] sm:$0xff]
        %v885 = vld [vmem:[%s9 + $0x30] sm:$0xff]
        %v886 = vld [vmem:[%s9 + $0x38] sm:$0xff]
        %v887 = vld [vmem:[%s9 + $0x40] sm:$0xff]
        %v888 = vld [vmem:[%s9 + $0x48] sm:$0xff]
        %v889 = vld [vmem:[%s9 + $0x50] sm:$0xff]
        %v890 = vld [vmem:[%s9 + $0x58] sm:$0xff]
        %v891 = vld [vmem:[%s9 + $0x60] sm:$0xff]
        %v892 = vld [vmem:[%s9 + $0x68] sm:$0xff]
        %v893 = vld [vmem:[%s9 + $0x70] sm:$0xff]
        %v894 = vld [vmem:[%s9 + $0x78] sm:$0xff]
        %v895 = vld [vmem:[%s9 + $0x80] sm:$0xff]
        %v896 = vld [vmem:[%s9 + $0x88] sm:$0xff]
        %v897 = vld [vmem:[%s9 + $0x90] sm:$0xff]
        %v898 = vld [vmem:[%s9 + $0x98] sm:$0xff]
        %v899 = vld [vmem:[%s9 + $0xa0] sm:$0xff]
        %v900 = vld [vmem:[%s9 + $0xa8] sm:$0xff]
        %v901 = vld [vmem:[%s9 + $0xb0] sm:$0xff]
        %v902 = vld [vmem:[%s9 + $0xb8] sm:$0xff]
        %v903 = vld [vmem:[%s9 + $0xc0] sm:$0xff]
        %v904 = vld [vmem:[%s9 + $0xc8] sm:$0xff]
        %v905 = vld [vmem:[%s9 + $0xd0] sm:$0xff]
        %v906 = vld [vmem:[%s9 + $0xd8] sm:$0xff]
        %v907 = vld [vmem:[%s9 + $0xe0] sm:$0xff]
        %v908 = vld [vmem:[%s9 + $0xe8] sm:$0xff]
        %v909 = vld [vmem:[%s9 + $0xf0] sm:$0xff]
        %v910 = vld [vmem:[%s9 + $0xf8] sm:$0xff]
        %v911 = vld [vmem:[%s9 + $0x100] sm:$0xff]
        %v912 = vld [vmem:[%s9 + $0x108] sm:$0xff]
        %v913 = vld [vmem:[%s9 + $0x110] sm:$0xff]
        %v914 = vld [vmem:[%s9 + $0x118] sm:$0xff]
        %v915 = vld [vmem:[%s9 + $0x120] sm:$0xff]
        %v916 = vld [vmem:[%s9 + $0x128] sm:$0xff]
        %v917 = vld [vmem:[%s9 + $0x130] sm:$0xff]
        %v918 = vld [vmem:[%s9 + $0x138] sm:$0xff]
        %v919 = vld [vmem:[%s9 + $0x140] sm:$0xff]
        %v920 = vld [vmem:[%s9 + $0x148] sm:$0xff]
        %v921 = vld [vmem:[%s9 + $0x150] sm:$0xff]
        %v922 = vld [vmem:[%s9 + $0x158] sm:$0xff]
        %v923 = vld [vmem:[%s9 + $0x160] sm:$0xff]
        %v924 = vld [vmem:[%s9 + $0x168] sm:$0xff]
        %v925 = vld [vmem:[%s9 + $0x170] sm:$0xff]
        %v926 = vld [vmem:[%s9 + $0x178] sm:$0xff]
        %v927 = vld [vmem:[%s9 + $0x180] sm:$0xff]
        %v928 = vld [vmem:[%s9 + $0x188] sm:$0xff]
        %v929 = vld [vmem:[%s9 + $0x190] sm:$0xff]
        %v930 = vld [vmem:[%s9 + $0x198] sm:$0xff]
        %v931 = vld [vmem:[%s9 + $0x1a0] sm:$0xff]
        %v932 = vld [vmem:[%s9 + $0x1a8] sm:$0xff]
        %v933 = vld [vmem:[%s9 + $0x1b0] sm:$0xff]
        %v934 = vld [vmem:[%s9 + $0x1b8] sm:$0xff]
        %v935 = vld [vmem:[%s9 + $0x1c0] sm:$0xff]
        %v936 = vld [vmem:[%s9 + $0x1c8] sm:$0xff]
        %v937 = vld [vmem:[%s9 + $0x1d0] sm:$0xff]
        %v938 = vld [vmem:[%s9 + $0x1d8] sm:$0xff]
        %v939 = vld [vmem:[%s9 + $0x1e0] sm:$0xff]
        %v940 = vld [vmem:[%s9 + $0x1e8] sm:$0xff]
        %v941 = vld [vmem:[%s9 + $0x1f0] sm:$0xff]
        %v942 = vld [vmem:[%s9 + $0x1f8] sm:$0xff]
        %v943 = vld [vmem:[#allocation3] sm:$0xff]
        %v944 = vld [vmem:[#allocation3 + $0x8] sm:$0xff]
        %v945 = vld [vmem:[#allocation3 + $0x10] sm:$0xff]
        %v946 = vld [vmem:[#allocation3 + $0x18] sm:$0xff]
        %v947 = vld [vmem:[#allocation3 + $0x20] sm:$0xff]
        %v948 = vld [vmem:[#allocation3 + $0x28] sm:$0xff]
        %v949 = vld [vmem:[#allocation3 + $0x30] sm:$0xff]
        %v950 = vld [vmem:[#allocation3 + $0x38] sm:$0xff]
        %v951 = vld [vmem:[#allocation3 + $0x40] sm:$0xff]
        %v952 = vld [vmem:[#allocation3 + $0x48] sm:$0xff]
        %v953 = vld [vmem:[#allocation3 + $0x50] sm:$0xff]
        %v954 = vld [vmem:[#allocation3 + $0x58] sm:$0xff]
        %v955 = vld [vmem:[#allocation3 + $0x60] sm:$0xff]
        %v956 = vld [vmem:[#allocation3 + $0x68] sm:$0xff]
        %v957 = vld [vmem:[#allocation3 + $0x70] sm:$0xff]
        %v958 = vld [vmem:[#allocation3 + $0x78] sm:$0xff]
        %v959 = vld [vmem:[#allocation3 + $0x80] sm:$0xff]
        %v960 = vld [vmem:[#allocation3 + $0x88] sm:$0xff]
        %v961 = vld [vmem:[#allocation3 + $0x90] sm:$0xff]
        %v962 = vld [vmem:[#allocation3 + $0x98] sm:$0xff]
        %v963 = vld [vmem:[#allocation3 + $0xa0] sm:$0xff]
        %v964 = vld [vmem:[#allocation3 + $0xa8] sm:$0xff]
        %v965 = vld [vmem:[#allocation3 + $0xb0] sm:$0xff]
        %v966 = vld [vmem:[#allocation3 + $0xb8] sm:$0xff]
        %v967 = vld [vmem:[#allocation3 + $0xc0] sm:$0xff]
        %v968 = vld [vmem:[#allocation3 + $0xc8] sm:$0xff]
        %v969 = vld [vmem:[#allocation3 + $0xd0] sm:$0xff]
        %v970 = vld [vmem:[#allocation3 + $0xd8] sm:$0xff]
        %v971 = vld [vmem:[#allocation3 + $0xe0] sm:$0xff]
        %v972 = vld [vmem:[#allocation3 + $0xe8] sm:$0xff]
        %v973 = vld [vmem:[#allocation3 + $0xf0] sm:$0xff]
        %v974 = vld [vmem:[#allocation3 + $0xf8] sm:$0xff]
        %v975 = vld [vmem:[#allocation3 + $0x100] sm:$0xff]
        %v976 = vld [vmem:[#allocation3 + $0x108] sm:$0xff]
        %v977 = vld [vmem:[#allocation3 + $0x110] sm:$0xff]
        %v978 = vld [vmem:[#allocation3 + $0x118] sm:$0xff]
        %v979 = vld [vmem:[#allocation3 + $0x120] sm:$0xff]
        %v980 = vld [vmem:[#allocation3 + $0x128] sm:$0xff]
        %v981 = vld [vmem:[#allocation3 + $0x130] sm:$0xff]
        %v982 = vld [vmem:[#allocation3 + $0x138] sm:$0xff]
        %v983 = vld [vmem:[#allocation3 + $0x140] sm:$0xff]
        %v984 = vld [vmem:[#allocation3 + $0x148] sm:$0xff]
        %v985 = vld [vmem:[#allocation3 + $0x150] sm:$0xff]
        %v986 = vld [vmem:[#allocation3 + $0x158] sm:$0xff]
        %v987 = vld [vmem:[#allocation3 + $0x160] sm:$0xff]
        %v988 = vld [vmem:[#allocation3 + $0x168] sm:$0xff]
        %v989 = vld [vmem:[#allocation3 + $0x170] sm:$0xff]
        %v990 = vld [vmem:[#allocation3 + $0x178] sm:$0xff]
        %v991 = vld [vmem:[#allocation3 + $0x180] sm:$0xff]
        %v992 = vld [vmem:[#allocation3 + $0x188] sm:$0xff]
        %v993 = vld [vmem:[#allocation3 + $0x190] sm:$0xff]
        %v994 = vld [vmem:[#allocation3 + $0x198] sm:$0xff]
        %v995 = vld [vmem:[#allocation3 + $0x1a0] sm:$0xff]
        %v996 = vld [vmem:[#allocation3 + $0x1a8] sm:$0xff]
        %v997 = vld [vmem:[#allocation3 + $0x1b0] sm:$0xff]
        %v998 = vld [vmem:[#allocation3 + $0x1b8] sm:$0xff]
        %v999 = vld [vmem:[#allocation3 + $0x1c0] sm:$0xff]
        %v1000 = vld [vmem:[#allocation3 + $0x1c8] sm:$0xff]
        %v1001 = vld [vmem:[#allocation3 + $0x1d0] sm:$0xff]
        %v1002 = vld [vmem:[#allocation3 + $0x1d8] sm:$0xff]
        %v1003 = vld [vmem:[#allocation3 + $0x1e0] sm:$0xff]
        %v1004 = vld [vmem:[#allocation3 + $0x1e8] sm:$0xff]
        %v1005 = vld [vmem:[#allocation3 + $0x1f0] sm:$0xff]
        %v1006 = vld [vmem:[#allocation3 + $0x1f8] sm:$0xff]
        %v1007 = vld [vmem:[#allocation5] sm:$0xff]
        %v1008 = vld [vmem:[#allocation5 + $0x8] sm:$0xff]
        %v1009 = vld [vmem:[#allocation5 + $0x10] sm:$0xff]
        %v1010 = vld [vmem:[#allocation5 + $0x18] sm:$0xff]
        %v1011 = vld [vmem:[#allocation5 + $0x20] sm:$0xff]
        %v1012 = vld [vmem:[#allocation5 + $0x28] sm:$0xff]
        %v1013 = vld [vmem:[#allocation5 + $0x30] sm:$0xff]
        %v1014 = vld [vmem:[#allocation5 + $0x38] sm:$0xff]
        %v1015 = vld [vmem:[#allocation5 + $0x40] sm:$0xff]
        %v1016 = vld [vmem:[#allocation5 + $0x48] sm:$0xff]
        %v1017 = vld [vmem:[#allocation5 + $0x50] sm:$0xff]
        %v1018 = vld [vmem:[#allocation5 + $0x58] sm:$0xff]
        %v1019 = vld [vmem:[#allocation5 + $0x60] sm:$0xff]
        %v1020 = vld [vmem:[#allocation5 + $0x68] sm:$0xff]
        %v1021 = vld [vmem:[#allocation5 + $0x70] sm:$0xff]
        %v1022 = vld [vmem:[#allocation5 + $0x78] sm:$0xff]
        %v1023 = vld [vmem:[#allocation5 + $0x80] sm:$0xff]
        %v1024 = vld [vmem:[#allocation5 + $0x88] sm:$0xff]
        %v1025 = vld [vmem:[#allocation5 + $0x90] sm:$0xff]
        %v1026 = vld [vmem:[#allocation5 + $0x98] sm:$0xff]
        %v1027 = vld [vmem:[#allocation5 + $0xa0] sm:$0xff]
        %v1028 = vld [vmem:[#allocation5 + $0xa8] sm:$0xff]
        %v1029 = vld [vmem:[#allocation5 + $0xb0] sm:$0xff]
        %v1030 = vld [vmem:[#allocation5 + $0xb8] sm:$0xff]
        %v1031 = vld [vmem:[#allocation5 + $0xc0] sm:$0xff]
        %v1032 = vld [vmem:[#allocation5 + $0xc8] sm:$0xff]
        %v1033 = vld [vmem:[#allocation5 + $0xd0] sm:$0xff]
        %v1034 = vld [vmem:[#allocation5 + $0xd8] sm:$0xff]
        %v1035 = vld [vmem:[#allocation5 + $0xe0] sm:$0xff]
        %v1036 = vld [vmem:[#allocation5 + $0xe8] sm:$0xff]
        %v1037 = vld [vmem:[#allocation5 + $0xf0] sm:$0xff]
        %v1038 = vld [vmem:[#allocation5 + $0xf8] sm:$0xff]
        %v1039 = vld [vmem:[#allocation5 + $0x100] sm:$0xff]
        %v1040 = vld [vmem:[#allocation5 + $0x108] sm:$0xff]
        %v1041 = vld [vmem:[#allocation5 + $0x110] sm:$0xff]
        %v1042 = vld [vmem:[#allocation5 + $0x118] sm:$0xff]
        %v1043 = vld [vmem:[#allocation5 + $0x120] sm:$0xff]
        %v1044 = vld [vmem:[#allocation5 + $0x128] sm:$0xff]
        %v1045 = vld [vmem:[#allocation5 + $0x130] sm:$0xff]
        %v1046 = vld [vmem:[#allocation5 + $0x138] sm:$0xff]
        %v1047 = vld [vmem:[#allocation5 + $0x140] sm:$0xff]
        %v1048 = vld [vmem:[#allocation5 + $0x148] sm:$0xff]
        %v1049 = vld [vmem:[#allocation5 + $0x150] sm:$0xff]
        %v1050 = vld [vmem:[#allocation5 + $0x158] sm:$0xff]
        %v1051 = vld [vmem:[#allocation5 + $0x160] sm:$0xff]
        %v1052 = vld [vmem:[#allocation5 + $0x168] sm:$0xff]
        %v1053 = vld [vmem:[#allocation5 + $0x170] sm:$0xff]
        %v1054 = vld [vmem:[#allocation5 + $0x178] sm:$0xff]
        %v1055 = vld [vmem:[#allocation5 + $0x180] sm:$0xff]
        %v1056 = vld [vmem:[#allocation5 + $0x188] sm:$0xff]
        %v1057 = vld [vmem:[#allocation5 + $0x190] sm:$0xff]
        %v1058 = vld [vmem:[#allocation5 + $0x198] sm:$0xff]
        %v1059 = vld [vmem:[#allocation5 + $0x1a0] sm:$0xff]
        %v1060 = vld [vmem:[#allocation5 + $0x1a8] sm:$0xff]
        %v1061 = vld [vmem:[#allocation5 + $0x1b0] sm:$0xff]
        %v1062 = vld [vmem:[#allocation5 + $0x1b8] sm:$0xff]
        %v1063 = vld [vmem:[#allocation5 + $0x1c0] sm:$0xff]
        %v1064 = vld [vmem:[#allocation5 + $0x1c8] sm:$0xff]
        %v1065 = vld [vmem:[#allocation5 + $0x1d0] sm:$0xff]
        %v1066 = vld [vmem:[#allocation5 + $0x1d8] sm:$0xff]
        %v1067 = vld [vmem:[#allocation5 + $0x1e0] sm:$0xff]
        %v1068 = vld [vmem:[#allocation5 + $0x1e8] sm:$0xff]
        %v1069 = vld [vmem:[#allocation5 + $0x1f0] sm:$0xff]
        %v1070 = vld [vmem:[#allocation5 + $0x1f8] sm:$0xff]
        %v1071 = vld [vmem:[#allocation7] sm:$0xff]
        %v1072 = vld [vmem:[#allocation7 + $0x8] sm:$0xff]
        %v1073 = vld [vmem:[#allocation7 + $0x10] sm:$0xff]
        %v1074 = vld [vmem:[#allocation7 + $0x18] sm:$0xff]
        %v1075 = vld [vmem:[#allocation7 + $0x20] sm:$0xff]
        %v1076 = vld [vmem:[#allocation7 + $0x28] sm:$0xff]
        %v1077 = vld [vmem:[#allocation7 + $0x30] sm:$0xff]
        %v1078 = vld [vmem:[#allocation7 + $0x38] sm:$0xff]
        %v1079 = vld [vmem:[#allocation7 + $0x40] sm:$0xff]
        %v1080 = vld [vmem:[#allocation7 + $0x48] sm:$0xff]
        %v1081 = vld [vmem:[#allocation7 + $0x50] sm:$0xff]
        %v1082 = vld [vmem:[#allocation7 + $0x58] sm:$0xff]
        %v1083 = vld [vmem:[#allocation7 + $0x60] sm:$0xff]
        %v1084 = vld [vmem:[#allocation7 + $0x68] sm:$0xff]
        %v1085 = vld [vmem:[#allocation7 + $0x70] sm:$0xff]
        %v1086 = vld [vmem:[#allocation7 + $0x78] sm:$0xff]
        %v1087 = vld [vmem:[#allocation7 + $0x80] sm:$0xff]
        %v1088 = vld [vmem:[#allocation7 + $0x88] sm:$0xff]
        %v1089 = vld [vmem:[#allocation7 + $0x90] sm:$0xff]
        %v1090 = vld [vmem:[#allocation7 + $0x98] sm:$0xff]
        %v1091 = vld [vmem:[#allocation7 + $0xa0] sm:$0xff]
        %v1092 = vld [vmem:[#allocation7 + $0xa8] sm:$0xff]
        %v1093 = vld [vmem:[#allocation7 + $0xb0] sm:$0xff]
        %v1094 = vld [vmem:[#allocation7 + $0xb8] sm:$0xff]
        %v1095 = vld [vmem:[#allocation7 + $0xc0] sm:$0xff]
        %v1096 = vld [vmem:[#allocation7 + $0xc8] sm:$0xff]
        %v1097 = vld [vmem:[#allocation7 + $0xd0] sm:$0xff]
        %v1098 = vld [vmem:[#allocation7 + $0xd8] sm:$0xff]
        %v1099 = vld [vmem:[#allocation7 + $0xe0] sm:$0xff]
        %v1100 = vld [vmem:[#allocation7 + $0xe8] sm:$0xff]
        %v1101 = vld [vmem:[#allocation7 + $0xf0] sm:$0xff]
        %v1102 = vld [vmem:[#allocation7 + $0xf8] sm:$0xff]
        %v1103 = vld [vmem:[#allocation7 + $0x100] sm:$0xff]
        %v1104 = vld [vmem:[#allocation7 + $0x108] sm:$0xff]
        %v1105 = vld [vmem:[#allocation7 + $0x110] sm:$0xff]
        %v1106 = vld [vmem:[#allocation7 + $0x118] sm:$0xff]
        %v1107 = vld [vmem:[#allocation7 + $0x120] sm:$0xff]
        %v1108 = vld [vmem:[#allocation7 + $0x128] sm:$0xff]
        %v1109 = vld [vmem:[#allocation7 + $0x130] sm:$0xff]
        %v1110 = vld [vmem:[#allocation7 + $0x138] sm:$0xff]
        %v1111 = vld [vmem:[#allocation7 + $0x140] sm:$0xff]
        %v1112 = vld [vmem:[#allocation7 + $0x148] sm:$0xff]
        %v1113 = vld [vmem:[#allocation7 + $0x150] sm:$0xff]
        %v1114 = vld [vmem:[#allocation7 + $0x158] sm:$0xff]
        %v1115 = vld [vmem:[#allocation7 + $0x160] sm:$0xff]
        %v1116 = vld [vmem:[#allocation7 + $0x168] sm:$0xff]
        %v1117 = vld [vmem:[#allocation7 + $0x170] sm:$0xff]
        %v1118 = vld [vmem:[#allocation7 + $0x178] sm:$0xff]
        %v1119 = vld [vmem:[#allocation7 + $0x180] sm:$0xff]
        %v1120 = vld [vmem:[#allocation7 + $0x188] sm:$0xff]
        %v1121 = vld [vmem:[#allocation7 + $0x190] sm:$0xff]
        %v1122 = vld [vmem:[#allocation7 + $0x198] sm:$0xff]
        %v1123 = vld [vmem:[#allocation7 + $0x1a0] sm:$0xff]
        %v1124 = vld [vmem:[#allocation7 + $0x1a8] sm:$0xff]
        %v1125 = vld [vmem:[#allocation7 + $0x1b0] sm:$0xff]
        %v1126 = vld [vmem:[#allocation7 + $0x1b8] sm:$0xff]
        %v1127 = vld [vmem:[#allocation7 + $0x1c0] sm:$0xff]
        %v1128 = vld [vmem:[#allocation7 + $0x1c8] sm:$0xff]
        %v1129 = vld [vmem:[#allocation7 + $0x1d0] sm:$0xff]
        %v1130 = vld [vmem:[#allocation7 + $0x1d8] sm:$0xff]
        %v1131 = vld [vmem:[#allocation7 + $0x1e0] sm:$0xff]
        %v1132 = vld [vmem:[#allocation7 + $0x1e8] sm:$0xff]
        %v1133 = vld [vmem:[#allocation7 + $0x1f0] sm:$0xff]
        %v1134 = vld [vmem:[#allocation7 + $0x1f8] sm:$0xff]
        %v1135 = vld [vmem:[%s13] sm:$0xff]
        %v1136 = vld [vmem:[%s13 + $0x8] sm:$0xff]
        %v1137 = vld [vmem:[%s13 + $0x10] sm:$0x1]
        %v1138 = vld [vmem:[%s13 + $0x18] sm:$0x1]
        %v1139 = vld [vmem:[%s715] sm:$0xff]
        %v1141 = vlaneseq
        %v1142 = vshrl.u32 %v1141, 7
        %v1143 = vsub.s32 0, %v1142
        %v1144 = vrot.slane %v748, %v1143
        %v1145 = vlaneseq
        %v1146 = vshrl.u32 %v1145, 7
        %v1147 = vsub.s32 1, %v1146
        %v1148 = vrot.slane %v748, %v1147
        %v1151 = vcombine.low %v1144, %v1148
        %v1153 = vmul.f32 %v1139, %v1151
        %v1154 = vld [vmem:[%s720] sm:$0xff]
        %v1155 = vmul.f32 %v1154, %v1151
        %v1157 = vcombine.high %v1153, %v1153
        %1159 = vmatprep.subr.mxu0 %v944
        %1160 = vmatpush1.msra.mxu0 %v943
        %1161 = vmatprep.subr.mxu0 %v946
        %1162 = vmatpush1.msra.mxu0 %v945
        %1163 = vmatprep.subr.mxu0 %v948
        %1164 = vmatpush1.msra.mxu0 %v947
        %1165 = vmatprep.subr.mxu0 %v950
        %1166 = vmatpush1.msra.mxu0 %v949
        %1167 = vmatprep.subr.mxu0 %v952
        %1168 = vmatpush1.msra.mxu0 %v951
        %1169 = vmatprep.subr.mxu0 %v954
        %1170 = vmatpush1.msra.mxu0 %v953
        %1171 = vmatprep.subr.mxu0 %v956
        %1172 = vmatpush1.msra.mxu0 %v955
        %1173 = vmatprep.subr.mxu0 %v958
        %1174 = vmatpush1.msra.mxu0 %v957
        %1175 = vmatprep.subr.mxu0 %v960
        %1176 = vmatpush1.msra.mxu0 %v959
        %1177 = vmatprep.subr.mxu0 %v962
        %1178 = vmatpush1.msra.mxu0 %v961
        %1179 = vmatprep.subr.mxu0 %v964
        %1180 = vmatpush1.msra.mxu0 %v963
        %1181 = vmatprep.subr.mxu0 %v966
        %1182 = vmatpush1.msra.mxu0 %v965
        %1183 = vmatprep.subr.mxu0 %v968
        %1184 = vmatpush1.msra.mxu0 %v967
        %1185 = vmatprep.subr.mxu0 %v970
        %1186 = vmatpush1.msra.mxu0 %v969
        %1187 = vmatprep.subr.mxu0 %v972
        %1188 = vmatpush1.msra.mxu0 %v971
        %1189 = vmatprep.subr.mxu0 %v974
        %1190 = vmatpush1.msra.mxu0 %v973
        %1191 = vmatprep.subr.mxu0 %v976
        %1192 = vmatpush1.msra.mxu0 %v975
        %1193 = vmatprep.subr.mxu0 %v978
        %1194 = vmatpush1.msra.mxu0 %v977
        %1195 = vmatprep.subr.mxu0 %v980
        %1196 = vmatpush1.msra.mxu0 %v979
        %1197 = vmatprep.subr.mxu0 %v982
        %1198 = vmatpush1.msra.mxu0 %v981
        %1199 = vmatprep.subr.mxu0 %v984
        %1200 = vmatpush1.msra.mxu0 %v983
        %1201 = vmatprep.subr.mxu0 %v986
        %1202 = vmatpush1.msra.mxu0 %v985
        %1203 = vmatprep.subr.mxu0 %v988
        %1204 = vmatpush1.msra.mxu0 %v987
        %1205 = vmatprep.subr.mxu0 %v990
        %1206 = vmatpush1.msra.mxu0 %v989
        %1207 = vmatprep.subr.mxu0 %v992
        %1208 = vmatpush1.msra.mxu0 %v991
        %1209 = vmatprep.subr.mxu0 %v994
        %1210 = vmatpush1.msra.mxu0 %v993
        %1211 = vmatprep.subr.mxu0 %v996
        %1212 = vmatpush1.msra.mxu0 %v995
        %1213 = vmatprep.subr.mxu0 %v998
        %1214 = vmatpush1.msra.mxu0 %v997
        %1215 = vmatprep.subr.mxu0 %v1000
        %1216 = vmatpush1.msra.mxu0 %v999
        %1217 = vmatprep.subr.mxu0 %v1002
        %1218 = vmatpush1.msra.mxu0 %v1001
        %1219 = vmatprep.subr.mxu0 %v1004
        %1220 = vmatpush1.msra.mxu0 %v1003
        %1221 = vmatprep.subr.mxu0 %v1006
        %1222 = vmatpush1.msra.mxu0 %v1005
        %1223 = vmatprep.mubr.f32.mxu0 %v1157
        %1224 = vmatmul.mubr.f32.gmra.mrb[0].mxu0 %v1153
        %v1225 = vpop.f32.mrb[0].mxu0
        %v1226 = vadd.f32 0.0, %v1225
        %v1227 = vpop.f32.mrb[0].mxu0
        %v1228 = vadd.f32 0.0, %v1227
        %1229 = vdwg.mxu0
        %v1231 = vcombine.high %v1155, %v1155
        %1233 = vmatprep.subr.mxu0 %v1008
        %1234 = vmatpush1.msra.mxu0 %v1007
        %1235 = vmatprep.subr.mxu0 %v1010
        %1236 = vmatpush1.msra.mxu0 %v1009
        %1237 = vmatprep.subr.mxu0 %v1012
        %1238 = vmatpush1.msra.mxu0 %v1011
        %1239 = vmatprep.subr.mxu0 %v1014
        %1240 = vmatpush1.msra.mxu0 %v1013
        %1241 = vmatprep.subr.mxu0 %v1016
        %1242 = vmatpush1.msra.mxu0 %v1015
        %1243 = vmatprep.subr.mxu0 %v1018
        %1244 = vmatpush1.msra.mxu0 %v1017
        %1245 = vmatprep.subr.mxu0 %v1020
        %1246 = vmatpush1.msra.mxu0 %v1019
        %1247 = vmatprep.subr.mxu0 %v1022
        %1248 = vmatpush1.msra.mxu0 %v1021
        %1249 = vmatprep.subr.mxu0 %v1024
        %1250 = vmatpush1.msra.mxu0 %v1023
        %1251 = vmatprep.subr.mxu0 %v1026
        %1252 = vmatpush1.msra.mxu0 %v1025
        %1253 = vmatprep.subr.mxu0 %v1028
        %1254 = vmatpush1.msra.mxu0 %v1027
        %1255 = vmatprep.subr.mxu0 %v1030
        %1256 = vmatpush1.msra.mxu0 %v1029
        %1257 = vmatprep.subr.mxu0 %v1032
        %1258 = vmatpush1.msra.mxu0 %v1031
        %1259 = vmatprep.subr.mxu0 %v1034
        %1260 = vmatpush1.msra.mxu0 %v1033
        %1261 = vmatprep.subr.mxu0 %v1036
        %1262 = vmatpush1.msra.mxu0 %v1035
        %1263 = vmatprep.subr.mxu0 %v1038
        %1264 = vmatpush1.msra.mxu0 %v1037
        %1265 = vmatprep.subr.mxu0 %v1040
        %1266 = vmatpush1.msra.mxu0 %v1039
        %1267 = vmatprep.subr.mxu0 %v1042
        %1268 = vmatpush1.msra.mxu0 %v1041
        %1269 = vmatprep.subr.mxu0 %v1044
        %1270 = vmatpush1.msra.mxu0 %v1043
        %1271 = vmatprep.subr.mxu0 %v1046
        %1272 = vmatpush1.msra.mxu0 %v1045
        %1273 = vmatprep.subr.mxu0 %v1048
        %1274 = vmatpush1.msra.mxu0 %v1047
        %1275 = vmatprep.subr.mxu0 %v1050
        %1276 = vmatpush1.msra.mxu0 %v1049
        %1277 = vmatprep.subr.mxu0 %v1052
        %1278 = vmatpush1.msra.mxu0 %v1051
        %1279 = vmatprep.subr.mxu0 %v1054
        %1280 = vmatpush1.msra.mxu0 %v1053
        %1281 = vmatprep.subr.mxu0 %v1056
        %1282 = vmatpush1.msra.mxu0 %v1055
        %1283 = vmatprep.subr.mxu0 %v1058
        %1284 = vmatpush1.msra.mxu0 %v1057
        %1285 = vmatprep.subr.mxu0 %v1060
        %1286 = vmatpush1.msra.mxu0 %v1059
        %1287 = vmatprep.subr.mxu0 %v1062
        %1288 = vmatpush1.msra.mxu0 %v1061
        %1289 = vmatprep.subr.mxu0 %v1064
        %1290 = vmatpush1.msra.mxu0 %v1063
        %1291 = vmatprep.subr.mxu0 %v1066
        %1292 = vmatpush1.msra.mxu0 %v1065
        %1293 = vmatprep.subr.mxu0 %v1068
        %1294 = vmatpush1.msra.mxu0 %v1067
        %1295 = vmatprep.subr.mxu0 %v1070
        %1296 = vmatpush1.msra.mxu0 %v1069
        %1297 = vmatprep.mubr.f32.mxu0 %v1231
        %1298 = vmatmul.mubr.f32.gmra.mrb[0].mxu0 %v1155
        %v1299 = vpop.f32.mrb[0].mxu0
        %v1300 = vadd.f32 0.0, %v1299
        %v1301 = vpop.f32.mrb[0].mxu0
        %v1302 = vadd.f32 0.0, %v1301
        %1303 = vdwg.mxu0
        %v1304 = vadd.f32 %v1153, %v1155
        %v1306 = vcombine.high %v1304, %v1304
        %1308 = vmatprep.subr.mxu0 %v1072
        %1309 = vmatpush1.msra.mxu0 %v1071
        %1310 = vmatprep.subr.mxu0 %v1074
        %1311 = vmatpush1.msra.mxu0 %v1073
        %1312 = vmatprep.subr.mxu0 %v1076
        %1313 = vmatpush1.msra.mxu0 %v1075
        %1314 = vmatprep.subr.mxu0 %v1078
        %1315 = vmatpush1.msra.mxu0 %v1077
        %1316 = vmatprep.subr.mxu0 %v1080
        %1317 = vmatpush1.msra.mxu0 %v1079
        %1318 = vmatprep.subr.mxu0 %v1082
        %1319 = vmatpush1.msra.mxu0 %v1081
        %1320 = vmatprep.subr.mxu0 %v1084
        %1321 = vmatpush1.msra.mxu0 %v1083
        %1322 = vmatprep.subr.mxu0 %v1086
        %1323 = vmatpush1.msra.mxu0 %v1085
        %1324 = vmatprep.subr.mxu0 %v1088
        %1325 = vmatpush1.msra.mxu0 %v1087
        %1326 = vmatprep.subr.mxu0 %v1090
        %1327 = vmatpush1.msra.mxu0 %v1089
        %1328 = vmatprep.subr.mxu0 %v1092
        %1329 = vmatpush1.msra.mxu0 %v1091
        %1330 = vmatprep.subr.mxu0 %v1094
        %1331 = vmatpush1.msra.mxu0 %v1093
        %1332 = vmatprep.subr.mxu0 %v1096
        %1333 = vmatpush1.msra.mxu0 %v1095
        %1334 = vmatprep.subr.mxu0 %v1098
        %1335 = vmatpush1.msra.mxu0 %v1097
        %1336 = vmatprep.subr.mxu0 %v1100
        %1337 = vmatpush1.msra.mxu0 %v1099
        %1338 = vmatprep.subr.mxu0 %v1102
        %1339 = vmatpush1.msra.mxu0 %v1101
        %1340 = vmatprep.subr.mxu0 %v1104
        %1341 = vmatpush1.msra.mxu0 %v1103
        %1342 = vmatprep.subr.mxu0 %v1106
        %1343 = vmatpush1.msra.mxu0 %v1105
        %1344 = vmatprep.subr.mxu0 %v1108
        %1345 = vmatpush1.msra.mxu0 %v1107
        %1346 = vmatprep.subr.mxu0 %v1110
        %1347 = vmatpush1.msra.mxu0 %v1109
        %1348 = vmatprep.subr.mxu0 %v1112
        %1349 = vmatpush1.msra.mxu0 %v1111
        %1350 = vmatprep.subr.mxu0 %v1114
        %1351 = vmatpush1.msra.mxu0 %v1113
        %1352 = vmatprep.subr.mxu0 %v1116
        %1353 = vmatpush1.msra.mxu0 %v1115
        %1354 = vmatprep.subr.mxu0 %v1118
        %1355 = vmatpush1.msra.mxu0 %v1117
        %1356 = vmatprep.subr.mxu0 %v1120
        %1357 = vmatpush1.msra.mxu0 %v1119
        %1358 = vmatprep.subr.mxu0 %v1122
        %1359 = vmatpush1.msra.mxu0 %v1121
        %1360 = vmatprep.subr.mxu0 %v1124
        %1361 = vmatpush1.msra.mxu0 %v1123
        %1362 = vmatprep.subr.mxu0 %v1126
        %1363 = vmatpush1.msra.mxu0 %v1125
        %1364 = vmatprep.subr.mxu0 %v1128
        %1365 = vmatpush1.msra.mxu0 %v1127
        %1366 = vmatprep.subr.mxu0 %v1130
        %1367 = vmatpush1.msra.mxu0 %v1129
        %1368 = vmatprep.subr.mxu0 %v1132
        %1369 = vmatpush1.msra.mxu0 %v1131
        %1370 = vmatprep.subr.mxu0 %v1134
        %1371 = vmatpush1.msra.mxu0 %v1133
        %1372 = vmatprep.mubr.f32.mxu0 %v1306
        %1373 = vmatmul.mubr.f32.gmra.mrb[0].mxu0 %v1304
        %v1374 = vpop.f32.mrb[0].mxu0
        %v1375 = vadd.f32 0.0, %v1374
        %v1376 = vpop.f32.mrb[0].mxu0
        %v1377 = vadd.f32 0.0, %v1376
        %1378 = vdwg.mxu0
        %v1379 = vsub.f32 %v1226, %v1300
        %v1380 = vsub.f32 %v1228, %v1302
        %v1381 = vsub.f32 %v1375, %v1226
        %v1382 = vsub.f32 %v1377, %v1228
        %v1383 = vsub.f32 %v1381, %v1300
        %v1384 = vsub.f32 %v1382, %v1302
        %v1386 = vcombine.high %v749, %v749
        %v1388 = vmul.f32 %v1379, %v749
        %v1389 = vmul.f32 %v1380, %v1386
        %v1391 = vcombine.high %v750, %v750
        %v1393 = vmul.f32 %v1383, %v750
        %v1394 = vmul.f32 %v1384, %v1391
        %v1395 = vadd.f32 %v1388, %v1393
        %v1396 = vadd.f32 %v1389, %v1394
        %vm1397 = vcmask 1043456
        %v1398 = vsel %vm1397, %v1395, 0.0
        %v1399 = vrot.slane %v1398, 4
        %v1400 = vadd.f32 %v1398, %v1399
        %v1401 = vrot.slane %v1400, 2
        %v1402 = vadd.f32 %v1400, %v1401
        %v1403 = vrot.slane %v1402, 1
        %v1404 = vadd.f32 %v1402, %v1403
        %v1405 = vsel %vm1397, %v1396, 0.0
        %v1406 = vrot.slane %v1405, 4
        %v1407 = vadd.f32 %v1405, %v1406
        %v1408 = vrot.slane %v1407, 2
        %v1409 = vadd.f32 %v1407, %v1408
        %v1410 = vrot.slane %v1409, 1
        %v1411 = vadd.f32 %v1409, %v1410
        %v1412 = vmul.f32 %v1383, %v749
        %v1413 = vmul.f32 %v1384, %v1386
        %v1414 = vmul.f32 %v1379, %v750
        %v1415 = vmul.f32 %v1380, %v1391
        %v1416 = vsub.f32 %v1412, %v1414
        %v1417 = vsub.f32 %v1413, %v1415
        %v1418 = vsel %vm1397, %v1416, 0.0
        %v1419 = vrot.slane %v1418, 4
        %v1420 = vadd.f32 %v1418, %v1419
        %v1421 = vrot.slane %v1420, 2
        %v1422 = vadd.f32 %v1420, %v1421
        %v1423 = vrot.slane %v1422, 1
        %v1424 = vadd.f32 %v1422, %v1423
        %v1425 = vsel %vm1397, %v1417, 0.0
        %v1426 = vrot.slane %v1425, 4
        %v1427 = vadd.f32 %v1425, %v1426
        %v1428 = vrot.slane %v1427, 2
        %v1429 = vadd.f32 %v1427, %v1428
        %v1430 = vrot.slane %v1429, 1
        %v1431 = vadd.f32 %v1429, %v1430
        %vm1432 = vcmask 1040384
        %v1433 = vsel %vm1432, %v1404, %v1424
        %v1434 = vsel %vm1432, %v1411, %v1431
        %v1435 = vld [vmem:[%s14] sm:$0xff]
        %v1436 = vld [vmem:[%s15] sm:$0xff]
        %1438 = vrot.lane.b32.xlu0 %v1434, 17
        %v1439 = vpop.permute.xlu0 %1438
        %1442 = vrot.lane.b32.xlu0 %v1433, 17
        %v1443 = vpop.permute.xlu0 %1442
        %vm1444 = vcmask 138240
        %v1445 = vsel %vm1444, %v1443, %v1439
        %v1448 = vsel %vm1444, %v1439, %v1443
        %v1449 = vlaneseq
        %v1450 = vshrl.u32 %v1449, 7
        %v1451 = vsub.s32 0, %v1450
        %v1452 = vrot.slane %v1135, %v1451
        %v1453 = vlaneseq
        %v1454 = vshrl.u32 %v1453, 7
        %v1455 = vsub.s32 0, %v1454
        %v1456 = vrot.slane %v1136, %v1455
        %v1457 = vmul.f32 %v1448, %v1452
        %v1458 = vmul.f32 %v1445, %v1456
        %1459 = vrot.lane.b32.xlu0 %v1434, 16
        %v1460 = vpop.permute.xlu0 %1459
        %1462 = vrot.lane.b32.xlu0 %v1433, 16
        %v1463 = vpop.permute.xlu0 %1462
        %vm1464 = vcmask 130048
        %v1465 = vsel %vm1464, %v1463, %v1460
        %v1468 = vsel %vm1464, %v1460, %v1463
        %v1469 = vlaneseq
        %v1470 = vshrl.u32 %v1469, 7
        %v1471 = vsub.s32 1, %v1470
        %v1472 = vrot.slane %v1135, %v1471
        %v1473 = vlaneseq
        %v1474 = vshrl.u32 %v1473, 7
        %v1475 = vsub.s32 1, %v1474
        %v1476 = vrot.slane %v1136, %v1475
        %v1477 = vmul.f32 %v1468, %v1472
        %v1478 = vmul.f32 %v1465, %v1476
        %1479 = vrot.lane.b32.xlu0 %v1434, 15
        %v1480 = vpop.permute.xlu0 %1479
        %1482 = vrot.lane.b32.xlu0 %v1433, 15
        %v1483 = vpop.permute.xlu0 %1482
        %vm1484 = vcmask 121856
        %v1485 = vsel %vm1484, %v1483, %v1480
        %v1488 = vsel %vm1484, %v1480, %v1483
        %v1489 = vlaneseq
        %v1490 = vshrl.u32 %v1489, 7
        %v1491 = vsub.s32 2, %v1490
        %v1492 = vrot.slane %v1135, %v1491
        %v1493 = vlaneseq
        %v1494 = vshrl.u32 %v1493, 7
        %v1495 = vsub.s32 2, %v1494
        %v1496 = vrot.slane %v1136, %v1495
        %v1497 = vmul.f32 %v1488, %v1492
        %v1498 = vmul.f32 %v1485, %v1496
        %1499 = vrot.lane.b32.xlu0 %v1434, 1
        %v1500 = vpop.permute.xlu0 %1499
        %1502 = vrot.lane.b32.xlu0 %v1433, 1
        %v1503 = vpop.permute.xlu0 %1502
        %vm1504 = vcmask 7168
        %v1505 = vsel %vm1504, %v1503, %v1500
        %v1508 = vsel %vm1504, %v1500, %v1503
        %v1509 = vlaneseq
        %v1510 = vshrl.u32 %v1509, 7
        %v1511 = vsub.s32 3, %v1510
        %v1512 = vrot.slane %v1135, %v1511
        %v1513 = vlaneseq
        %v1514 = vshrl.u32 %v1513, 7
        %v1515 = vsub.s32 3, %v1514
        %v1516 = vrot.slane %v1136, %v1515
        %v1517 = vmul.f32 %v1508, %v1512
        %v1518 = vmul.f32 %v1505, %v1516
        %v1519 = vlaneseq
        %v1520 = vshrl.u32 %v1519, 7
        %v1521 = vsub.s32 4, %v1520
        %v1522 = vrot.slane %v1135, %v1521
        %v1523 = vlaneseq
        %v1524 = vshrl.u32 %v1523, 7
        %v1525 = vsub.s32 4, %v1524
        %v1526 = vrot.slane %v1136, %v1525
        %v1527 = vmul.f32 %v1433, %v1522
        %v1528 = vmul.f32 %v1434, %v1526
        %1529 = vrot.lane.b32.xlu0 %v1433, 127
        %v1530 = vpop.permute.xlu0 %1529
        %1531 = vrot.lane.b32.xlu0 %v1434, 127
        %v1532 = vpop.permute.xlu0 %1531
        %vm1533 = vcmask 1039360
        %v1534 = vsel %vm1533, %v1530, %v1532
        %v1538 = vsel %vm1533, %v1532, %v1530
        %v1539 = vlaneseq
        %v1540 = vshrl.u32 %v1539, 7
        %v1541 = vsub.s32 5, %v1540
        %v1542 = vrot.slane %v1135, %v1541
        %v1543 = vlaneseq
        %v1544 = vshrl.u32 %v1543, 7
        %v1545 = vsub.s32 5, %v1544
        %v1546 = vrot.slane %v1136, %v1545
        %v1547 = vmul.f32 %v1534, %v1542
        %v1548 = vmul.f32 %v1538, %v1546
        %1549 = vrot.lane.b32.xlu0 %v1433, 113
        %v1550 = vpop.permute.xlu0 %1549
        %1551 = vrot.lane.b32.xlu0 %v1434, 113
        %v1552 = vpop.permute.xlu0 %1551
        %vm1553 = vcmask 924672
        %v1554 = vsel %vm1553, %v1550, %v1552
        %v1558 = vsel %vm1553, %v1552, %v1550
        %v1559 = vlaneseq
        %v1560 = vshrl.u32 %v1559, 7
        %v1561 = vsub.s32 6, %v1560
        %v1562 = vrot.slane %v1135, %v1561
        %v1563 = vlaneseq
        %v1564 = vshrl.u32 %v1563, 7
        %v1565 = vsub.s32 6, %v1564
        %v1566 = vrot.slane %v1136, %v1565
        %v1567 = vmul.f32 %v1554, %v1562
        %v1568 = vmul.f32 %v1558, %v1566
        %1569 = vrot.lane.b32.xlu0 %v1433, 112
        %v1570 = vpop.permute.xlu0 %1569
        %1571 = vrot.lane.b32.xlu0 %v1434, 112
        %v1572 = vpop.permute.xlu0 %1571
        %vm1573 = vcmask 916480
        %v1574 = vsel %vm1573, %v1570, %v1572
        %v1578 = vsel %vm1573, %v1572, %v1570
        %v1579 = vlaneseq
        %v1580 = vshrl.u32 %v1579, 7
        %v1581 = vsub.s32 7, %v1580
        %v1582 = vrot.slane %v1135, %v1581
        %v1583 = vlaneseq
        %v1584 = vshrl.u32 %v1583, 7
        %v1585 = vsub.s32 7, %v1584
        %v1586 = vrot.slane %v1136, %v1585
        %v1587 = vmul.f32 %v1574, %v1582
        %v1588 = vmul.f32 %v1578, %v1586
        %1589 = vrot.lane.b32.xlu0 %v1433, 111
        %v1590 = vpop.permute.xlu0 %1589
        %1591 = vrot.lane.b32.xlu0 %v1434, 111
        %v1592 = vpop.permute.xlu0 %1591
        %vm1593 = vcmask 908288
        %v1594 = vsel %vm1593, %v1590, %v1592
        %v1598 = vsel %vm1593, %v1592, %v1590
        %v1599 = vlaneseq
        %v1600 = vshrl.u32 %v1599, 7
        %v1601 = vsub.s32 0, %v1600
        %v1602 = vrot.slane %v1137, %v1601
        %v1603 = vlaneseq
        %v1604 = vshrl.u32 %v1603, 7
        %v1605 = vsub.s32 0, %v1604
        %v1606 = vrot.slane %v1138, %v1605
        %v1607 = vmul.f32 %v1594, %v1602
        %v1608 = vmul.f32 %v1598, %v1606
        %v1611 = vrot.slane %v1477, 6
        %v1612 = vrot.slane %v1478, 6
        %v1617 = vrot.slane %v1497, 4
        %v1618 = vrot.slane %v1498, 4
        %v1623 = vrot.slane %v1517, 2
        %v1624 = vrot.slane %v1518, 2
        %v1629 = vrot.slane %v1547, 6
        %v1630 = vrot.slane %v1548, 6
        %v1635 = vrot.slane %v1567, 4
        %v1636 = vrot.slane %v1568, 4
        %v1641 = vrot.slane %v1587, 2
        %v1642 = vrot.slane %v1588, 2
        %vm1645 = vcmask 1041408
        %v1646 = vsel %vm1645, %v1457, %v1611
        %v1647 = vsel %vm1645, %v1458, %v1612
        %v1648 = vsel %vm1397, %v1646, %v1617
        %v1649 = vsel %vm1397, %v1647, %v1618
        %vm1650 = vcmask 1045504
        %v1651 = vsel %vm1650, %v1648, %v1623
        %v1652 = vsel %vm1650, %v1649, %v1624
        %v1653 = vsel %vm1645, %v1527, %v1629
        %v1654 = vsel %vm1645, %v1528, %v1630
        %v1655 = vsel %vm1397, %v1653, %v1635
        %v1656 = vsel %vm1397, %v1654, %v1636
        %v1657 = vsel %vm1650, %v1655, %v1641
        %v1658 = vsel %vm1650, %v1656, %v1642
        %1660 = vset.pattern.permute.xlu0 0
        %1661 = vperm.xlu0 %1660, %v1436
        %v1662 = vpop.permute.xlu0 %1661
        %vm1664 = vcmask 146432
        %v1666 = vsel %vm1664, %v1435, 0
        %v1669 = vsel %vm1645, %v1607, 0
        %v1672 = vsel %vm1645, %v1608, 0
        %1674 = vmatprep.subr.mxu0 %v1652
        %1675 = vmatpush1.msra.mxu0 %v1651
        %1676 = vmatprep.subr.mxu0 %v1658
        %1677 = vmatpush1.msra.mxu0 %v1657
        %1678 = vmatprep.subr.mxu0 %v1672
        %1679 = vmatpush1.msra.mxu0 %v1669
        %1680 = vmatprep.subr.mxu0 0.0
        %1681 = vmatpush1.msra.mxu0 0.0
        %1682 = vmatprep.subr.mxu0 0.0
        %1683 = vmatpush1.msra.mxu0 0.0
        %1684 = vmatprep.subr.mxu0 0.0
        %1685 = vmatpush1.msra.mxu0 0.0
        %1686 = vmatprep.subr.mxu0 0.0
        %1687 = vmatpush1.msra.mxu0 0.0
        %1688 = vmatprep.subr.mxu0 0.0
        %1689 = vmatpush1.msra.mxu0 0.0
        %1690 = vmatprep.subr.mxu0 0.0
        %1691 = vmatpush1.msra.mxu0 0.0
        %1692 = vmatprep.subr.mxu0 0.0
        %1693 = vmatpush1.msra.mxu0 0.0
        %1694 = vmatprep.subr.mxu0 0.0
        %1695 = vmatpush1.msra.mxu0 0.0
        %1696 = vmatprep.subr.mxu0 0.0
        %1697 = vmatpush1.msra.mxu0 0.0
        %1698 = vmatprep.subr.mxu0 0.0
        %1699 = vmatpush1.msra.mxu0 0.0
        %1700 = vmatprep.subr.mxu0 0.0
        %1701 = vmatpush1.msra.mxu0 0.0
        %1702 = vmatprep.subr.mxu0 0.0
        %1703 = vmatpush1.msra.mxu0 0.0
        %1704 = vmatprep.subr.mxu0 0.0
        %1705 = vmatpush1.msra.mxu0 0.0
        %1706 = vmatprep.subr.mxu0 0.0
        %1707 = vmatpush1.msra.mxu0 0.0
        %1708 = vmatprep.subr.mxu0 0.0
        %1709 = vmatpush1.msra.mxu0 0.0
        %1710 = vmatprep.subr.mxu0 0.0
        %1711 = vmatpush1.msra.mxu0 0.0
        %1712 = vmatprep.subr.mxu0 0.0
        %1713 = vmatpush1.msra.mxu0 0.0
        %1714 = vmatprep.subr.mxu0 0.0
        %1715 = vmatpush1.msra.mxu0 0.0
        %1716 = vmatprep.subr.mxu0 0.0
        %1717 = vmatpush1.msra.mxu0 0.0
        %1718 = vmatprep.subr.mxu0 0.0
        %1719 = vmatpush1.msra.mxu0 0.0
        %1720 = vmatprep.subr.mxu0 0.0
        %1721 = vmatpush1.msra.mxu0 0.0
        %1722 = vmatprep.subr.mxu0 0.0
        %1723 = vmatpush1.msra.mxu0 0.0
        %1724 = vmatprep.subr.mxu0 0.0
        %1725 = vmatpush1.msra.mxu0 0.0
        %1726 = vmatprep.subr.mxu0 0.0
        %1727 = vmatpush1.msra.mxu0 0.0
        %1728 = vmatprep.subr.mxu0 0.0
        %1729 = vmatpush1.msra.mxu0 0.0
        %1730 = vmatprep.subr.mxu0 0.0
        %1731 = vmatpush1.msra.mxu0 0.0
        %1732 = vmatprep.subr.mxu0 0.0
        %1733 = vmatpush1.msra.mxu0 0.0
        %1734 = vmatprep.subr.mxu0 0.0
        %1735 = vmatpush1.msra.mxu0 0.0
        %1736 = vmatprep.subr.mxu0 0.0
        %1737 = vmatpush1.msra.mxu0 0.0
        %1738 = vmatprep.mubr.f32.mxu0 0.0
        %1739 = vmatmul.mubr.f32.gmra.mrb[0].mxu0 %v1666
        %v1740 = vpop.f32.mrb[0].mxu0
        %v1741 = vadd.f32 %v1662, %v1740
        %v1742 = vpop.f32.mrb[0].mxu0
        %v1743 = vadd.f32 %v1662, %v1742
        %1744 = vdwg.mxu0
        %v1745 = vmax.f32 %v1741, 0.0
        %v1746 = vmax.f32 %v1743, 0.0
        %v1747 = vld [vmem:[%s16] sm:$0xff]
        %v1748 = vld [vmem:[%s17] sm:$0xff]
        %1750 = vrot.lane.b32.xlu0 %v1746, 17
        %v1751 = vpop.permute.xlu0 %1750
        %1754 = vrot.lane.b32.xlu0 %v1745, 17
        %v1755 = vpop.permute.xlu0 %1754
        %v1756 = vsel %vm1444, %v1755, %v1751
        %v1759 = vsel %vm1444, %v1751, %v1755
        %v1760 = vmul.f32 %v1759, %v1452
        %v1761 = vmul.f32 %v1756, %v1456
        %1762 = vrot.lane.b32.xlu0 %v1746, 16
        %v1763 = vpop.permute.xlu0 %1762
        %1765 = vrot.lane.b32.xlu0 %v1745, 16
        %v1766 = vpop.permute.xlu0 %1765
        %v1767 = vsel %vm1464, %v1766, %v1763
        %v1770 = vsel %vm1464, %v1763, %v1766
        %v1771 = vmul.f32 %v1770, %v1472
        %v1772 = vmul.f32 %v1767, %v1476
        %1773 = vrot.lane.b32.xlu0 %v1746, 15
        %v1774 = vpop.permute.xlu0 %1773
        %1776 = vrot.lane.b32.xlu0 %v1745, 15
        %v1777 = vpop.permute.xlu0 %1776
        %v1778 = vsel %vm1484, %v1777, %v1774
        %v1781 = vsel %vm1484, %v1774, %v1777
        %v1782 = vmul.f32 %v1781, %v1492
        %v1783 = vmul.f32 %v1778, %v1496
        %1784 = vrot.lane.b32.xlu0 %v1746, 1
        %v1785 = vpop.permute.xlu0 %1784
        %1787 = vrot.lane.b32.xlu0 %v1745, 1
        %v1788 = vpop.permute.xlu0 %1787
        %v1789 = vsel %vm1504, %v1788, %v1785
        %v1792 = vsel %vm1504, %v1785, %v1788
        %v1793 = vmul.f32 %v1792, %v1512
        %v1794 = vmul.f32 %v1789, %v1516
        %v1795 = vmul.f32 %v1745, %v1522
        %v1796 = vmul.f32 %v1746, %v1526
        %1797 = vrot.lane.b32.xlu0 %v1745, 127
        %v1798 = vpop.permute.xlu0 %1797
        %1799 = vrot.lane.b32.xlu0 %v1746, 127
        %v1800 = vpop.permute.xlu0 %1799
        %v1801 = vsel %vm1533, %v1798, %v1800
        %v1805 = vsel %vm1533, %v1800, %v1798
        %v1806 = vmul.f32 %v1801, %v1542
        %v1807 = vmul.f32 %v1805, %v1546
        %1808 = vrot.lane.b32.xlu0 %v1745, 113
        %v1809 = vpop.permute.xlu0 %1808
        %1810 = vrot.lane.b32.xlu0 %v1746, 113
        %v1811 = vpop.permute.xlu0 %1810
        %v1812 = vsel %vm1553, %v1809, %v1811
        %v1816 = vsel %vm1553, %v1811, %v1809
        %v1817 = vmul.f32 %v1812, %v1562
        %v1818 = vmul.f32 %v1816, %v1566
        %1819 = vrot.lane.b32.xlu0 %v1745, 112
        %v1820 = vpop.permute.xlu0 %1819
        %1821 = vrot.lane.b32.xlu0 %v1746, 112
        %v1822 = vpop.permute.xlu0 %1821
        %v1823 = vsel %vm1573, %v1820, %v1822
        %v1827 = vsel %vm1573, %v1822, %v1820
        %v1828 = vmul.f32 %v1823, %v1582
        %v1829 = vmul.f32 %v1827, %v1586
        %1830 = vrot.lane.b32.xlu0 %v1745, 111
        %v1831 = vpop.permute.xlu0 %1830
        %1832 = vrot.lane.b32.xlu0 %v1746, 111
        %v1833 = vpop.permute.xlu0 %1832
        %v1834 = vsel %vm1593, %v1831, %v1833
        %v1838 = vsel %vm1593, %v1833, %v1831
        %v1839 = vmul.f32 %v1834, %v1602
        %v1840 = vmul.f32 %v1838, %v1606
        %1842 = vset.pattern.permute.xlu0 0
        %1843 = vperm.xlu0 %1842, %v1748
        %v1844 = vpop.permute.xlu0 %1843
        %vm1846 = vcmask 588800
        %v1848 = vsel %vm1846, %v1747, 0
        %1850 = vmatprep.subr.mxu0 %v1761
        %1851 = vmatpush1.msra.mxu0 %v1760
        %1852 = vmatprep.subr.mxu0 %v1772
        %1853 = vmatpush1.msra.mxu0 %v1771
        %1854 = vmatprep.subr.mxu0 %v1783
        %1855 = vmatpush1.msra.mxu0 %v1782
        %1856 = vmatprep.subr.mxu0 %v1794
        %1857 = vmatpush1.msra.mxu0 %v1793
        %1858 = vmatprep.subr.mxu0 %v1796
        %1859 = vmatpush1.msra.mxu0 %v1795
        %1860 = vmatprep.subr.mxu0 %v1807
        %1861 = vmatpush1.msra.mxu0 %v1806
        %1862 = vmatprep.subr.mxu0 %v1818
        %1863 = vmatpush1.msra.mxu0 %v1817
        %1864 = vmatprep.subr.mxu0 %v1829
        %1865 = vmatpush1.msra.mxu0 %v1828
        %1866 = vmatprep.subr.mxu0 %v1840
        %1867 = vmatpush1.msra.mxu0 %v1839
        %1868 = vmatprep.subr.mxu0 0.0
        %1869 = vmatpush1.msra.mxu0 0.0
        %1870 = vmatprep.subr.mxu0 0.0
        %1871 = vmatpush1.msra.mxu0 0.0
        %1872 = vmatprep.subr.mxu0 0.0
        %1873 = vmatpush1.msra.mxu0 0.0
        %1874 = vmatprep.subr.mxu0 0.0
        %1875 = vmatpush1.msra.mxu0 0.0
        %1876 = vmatprep.subr.mxu0 0.0
        %1877 = vmatpush1.msra.mxu0 0.0
        %1878 = vmatprep.subr.mxu0 0.0
        %1879 = vmatpush1.msra.mxu0 0.0
        %1880 = vmatprep.subr.mxu0 0.0
        %1881 = vmatpush1.msra.mxu0 0.0
        %1882 = vmatprep.subr.mxu0 0.0
        %1883 = vmatpush1.msra.mxu0 0.0
        %1884 = vmatprep.subr.mxu0 0.0
        %1885 = vmatpush1.msra.mxu0 0.0
        %1886 = vmatprep.subr.mxu0 0.0
        %1887 = vmatpush1.msra.mxu0 0.0
        %1888 = vmatprep.subr.mxu0 0.0
        %1889 = vmatpush1.msra.mxu0 0.0
        %1890 = vmatprep.subr.mxu0 0.0
        %1891 = vmatpush1.msra.mxu0 0.0
        %1892 = vmatprep.subr.mxu0 0.0
        %1893 = vmatpush1.msra.mxu0 0.0
        %1894 = vmatprep.subr.mxu0 0.0
        %1895 = vmatpush1.msra.mxu0 0.0
        %1896 = vmatprep.subr.mxu0 0.0
        %1897 = vmatpush1.msra.mxu0 0.0
        %1898 = vmatprep.subr.mxu0 0.0
        %1899 = vmatpush1.msra.mxu0 0.0
        %1900 = vmatprep.subr.mxu0 0.0
        %1901 = vmatpush1.msra.mxu0 0.0
        %1902 = vmatprep.subr.mxu0 0.0
        %1903 = vmatpush1.msra.mxu0 0.0
        %1904 = vmatprep.subr.mxu0 0.0
        %1905 = vmatpush1.msra.mxu0 0.0
        %1906 = vmatprep.subr.mxu0 0.0
        %1907 = vmatpush1.msra.mxu0 0.0
        %1908 = vmatprep.subr.mxu0 0.0
        %1909 = vmatpush1.msra.mxu0 0.0
        %1910 = vmatprep.subr.mxu0 0.0
        %1911 = vmatpush1.msra.mxu0 0.0
        %1912 = vmatprep.subr.mxu0 0.0
        %1913 = vmatpush1.msra.mxu0 0.0
        %1914 = vmatprep.mubr.f32.mxu0 0.0
        %1915 = vmatmul.mubr.f32.gmra.mrb[0].mxu0 %v1848
        %v1916 = vpop.f32.mrb[0].mxu0
        %v1917 = vadd.f32 %v1844, %v1916
        %v1918 = vpop.f32.mrb[0].mxu0
        %v1919 = vadd.f32 %v1844, %v1918
        %1920 = vdwg.mxu0
        %v1921 = vmax.f32 %v1917, 0.0
        %v1922 = vmax.f32 %v1919, 0.0
        %v1923 = vld [vmem:[%s18] sm:$0x3]
        %v1924 = vld [vmem:[%s19] sm:$0x3]
        %1926 = vrot.lane.b32.xlu0 %v1922, 17
        %v1927 = vpop.permute.xlu0 %1926
        %1930 = vrot.lane.b32.xlu0 %v1921, 17
        %v1931 = vpop.permute.xlu0 %1930
        %v1932 = vsel %vm1444, %v1931, %v1927
        %v1935 = vsel %vm1444, %v1927, %v1931
        %v1936 = vmul.f32 %v1935, %v1452
        %v1937 = vmul.f32 %v1932, %v1456
        %1938 = vrot.lane.b32.xlu0 %v1922, 16
        %v1939 = vpop.permute.xlu0 %1938
        %1941 = vrot.lane.b32.xlu0 %v1921, 16
        %v1942 = vpop.permute.xlu0 %1941
        %v1943 = vsel %vm1464, %v1942, %v1939
        %v1946 = vsel %vm1464, %v1939, %v1942
        %v1947 = vmul.f32 %v1946, %v1472
        %v1948 = vmul.f32 %v1943, %v1476
        %1949 = vrot.lane.b32.xlu0 %v1922, 15
        %v1950 = vpop.permute.xlu0 %1949
        %1952 = vrot.lane.b32.xlu0 %v1921, 15
        %v1953 = vpop.permute.xlu0 %1952
        %v1954 = vsel %vm1484, %v1953, %v1950
        %v1957 = vsel %vm1484, %v1950, %v1953
        %v1958 = vmul.f32 %v1957, %v1492
        %v1959 = vmul.f32 %v1954, %v1496
        %1960 = vrot.lane.b32.xlu0 %v1922, 1
        %v1961 = vpop.permute.xlu0 %1960
        %1963 = vrot.lane.b32.xlu0 %v1921, 1
        %v1964 = vpop.permute.xlu0 %1963
        %v1965 = vsel %vm1504, %v1964, %v1961
        %v1968 = vsel %vm1504, %v1961, %v1964
        %v1969 = vmul.f32 %v1968, %v1512
        %v1970 = vmul.f32 %v1965, %v1516
        %v1971 = vmul.f32 %v1921, %v1522
        %v1972 = vmul.f32 %v1922, %v1526
        %1973 = vrot.lane.b32.xlu0 %v1921, 127
        %v1974 = vpop.permute.xlu0 %1973
        %1975 = vrot.lane.b32.xlu0 %v1922, 127
        %v1976 = vpop.permute.xlu0 %1975
        %v1977 = vsel %vm1533, %v1974, %v1976
        %v1981 = vsel %vm1533, %v1976, %v1974
        %v1982 = vmul.f32 %v1977, %v1542
        %v1983 = vmul.f32 %v1981, %v1546
        %1984 = vrot.lane.b32.xlu0 %v1921, 113
        %v1985 = vpop.permute.xlu0 %1984
        %1986 = vrot.lane.b32.xlu0 %v1922, 113
        %v1987 = vpop.permute.xlu0 %1986
        %v1988 = vsel %vm1553, %v1985, %v1987
        %v1992 = vsel %vm1553, %v1987, %v1985
        %v1993 = vmul.f32 %v1988, %v1562
        %v1994 = vmul.f32 %v1992, %v1566
        %1995 = vrot.lane.b32.xlu0 %v1921, 112
        %v1996 = vpop.permute.xlu0 %1995
        %1997 = vrot.lane.b32.xlu0 %v1922, 112
        %v1998 = vpop.permute.xlu0 %1997
        %v1999 = vsel %vm1573, %v1996, %v1998
        %v2003 = vsel %vm1573, %v1998, %v1996
        %v2004 = vmul.f32 %v1999, %v1582
        %v2005 = vmul.f32 %v2003, %v1586
        %2006 = vrot.lane.b32.xlu0 %v1921, 111
        %v2007 = vpop.permute.xlu0 %2006
        %2008 = vrot.lane.b32.xlu0 %v1922, 111
        %v2009 = vpop.permute.xlu0 %2008
        %v2010 = vsel %vm1593, %v2007, %v2009
        %v2014 = vsel %vm1593, %v2009, %v2007
        %v2015 = vmul.f32 %v2010, %v1602
        %v2016 = vmul.f32 %v2014, %v1606
        %2018 = vset.pattern.permute.xlu0 0
        %2019 = vperm.xlu0 %2018, %v1924
        %v2020 = vpop.permute.xlu0 %2019
        %v2023 = vsel %vm1846, %v1923, 0
        %2025 = vmatprep.subr.mxu0 %v1937
        %2026 = vmatpush1.msra.mxu0 %v1936
        %2027 = vmatprep.subr.mxu0 %v1948
        %2028 = vmatpush1.msra.mxu0 %v1947
        %2029 = vmatprep.subr.mxu0 %v1959
        %2030 = vmatpush1.msra.mxu0 %v1958
        %2031 = vmatprep.subr.mxu0 %v1970
        %2032 = vmatpush1.msra.mxu0 %v1969
        %2033 = vmatprep.subr.mxu0 %v1972
        %2034 = vmatpush1.msra.mxu0 %v1971
        %2035 = vmatprep.subr.mxu0 %v1983
        %2036 = vmatpush1.msra.mxu0 %v1982
        %2037 = vmatprep.subr.mxu0 %v1994
        %2038 = vmatpush1.msra.mxu0 %v1993
        %2039 = vmatprep.subr.mxu0 %v2005
        %2040 = vmatpush1.msra.mxu0 %v2004
        %2041 = vmatprep.subr.mxu0 %v2016
        %2042 = vmatpush1.msra.mxu0 %v2015
        %2043 = vmatprep.subr.mxu0 0.0
        %2044 = vmatpush1.msra.mxu0 0.0
        %2045 = vmatprep.subr.mxu0 0.0
        %2046 = vmatpush1.msra.mxu0 0.0
        %2047 = vmatprep.subr.mxu0 0.0
        %2048 = vmatpush1.msra.mxu0 0.0
        %2049 = vmatprep.subr.mxu0 0.0
        %2050 = vmatpush1.msra.mxu0 0.0
        %2051 = vmatprep.subr.mxu0 0.0
        %2052 = vmatpush1.msra.mxu0 0.0
        %2053 = vmatprep.subr.mxu0 0.0
        %2054 = vmatpush1.msra.mxu0 0.0
        %2055 = vmatprep.subr.mxu0 0.0
        %2056 = vmatpush1.msra.mxu0 0.0
        %2057 = vmatprep.subr.mxu0 0.0
        %2058 = vmatpush1.msra.mxu0 0.0
        %2059 = vmatprep.subr.mxu0 0.0
        %2060 = vmatpush1.msra.mxu0 0.0
        %2061 = vmatprep.subr.mxu0 0.0
        %2062 = vmatpush1.msra.mxu0 0.0
        %2063 = vmatprep.subr.mxu0 0.0
        %2064 = vmatpush1.msra.mxu0 0.0
        %2065 = vmatprep.subr.mxu0 0.0
        %2066 = vmatpush1.msra.mxu0 0.0
        %2067 = vmatprep.subr.mxu0 0.0
        %2068 = vmatpush1.msra.mxu0 0.0
        %2069 = vmatprep.subr.mxu0 0.0
        %2070 = vmatpush1.msra.mxu0 0.0
        %2071 = vmatprep.subr.mxu0 0.0
        %2072 = vmatpush1.msra.mxu0 0.0
        %2073 = vmatprep.subr.mxu0 0.0
        %2074 = vmatpush1.msra.mxu0 0.0
        %2075 = vmatprep.subr.mxu0 0.0
        %2076 = vmatpush1.msra.mxu0 0.0
        %2077 = vmatprep.subr.mxu0 0.0
        %2078 = vmatpush1.msra.mxu0 0.0
        %2079 = vmatprep.subr.mxu0 0.0
        %2080 = vmatpush1.msra.mxu0 0.0
        %2081 = vmatprep.subr.mxu0 0.0
        %2082 = vmatpush1.msra.mxu0 0.0
        %2083 = vmatprep.subr.mxu0 0.0
        %2084 = vmatpush1.msra.mxu0 0.0
        %2085 = vmatprep.subr.mxu0 0.0
        %2086 = vmatpush1.msra.mxu0 0.0
        %2087 = vmatprep.subr.mxu0 0.0
        %2088 = vmatpush1.msra.mxu0 0.0
        %2089 = vmatprep.mubr.f32.mxu0 0.0
        %2090 = vmatmul.mubr.f32.gmra.mrb[0].mxu0 %v2023
        %v2091 = vpop.f32.mrb[0].mxu0
        %v2092 = vadd.f32 %v2020, %v2091
        %v2093 = vpop.f32.mrb[0].mxu0
        %v2094 = vadd.f32 %v2020, %v2093
        %2095 = vdwg.mxu0
        %v2096 = vsub.f32 %v1404, %v2092
        %v2097 = vsub.f32 %v1411, %v2094
        %v2098 = vstv %s737
        %v2099 = vmul.f32 %v2098, %v2096
        %v2100 = vmul.f32 %v2098, %v2097
        %v2101 = vadd.f32 %v1404, %v2099
        %v2102 = vadd.f32 %v1411, %v2100
        %v2103 = vsub.f32 %v1424, %v2092
        %v2104 = vsub.f32 %v1431, %v2094
        %v2105 = vmul.f32 %v2098, %v2103
        %v2106 = vmul.f32 %v2098, %v2104
        %v2107 = vadd.f32 %v1424, %v2105
        %v2108 = vadd.f32 %v1431, %v2106
        %v2109 = vmul.f32 %v2101, %v2101
        %v2110 = vmul.f32 %v2102, %v2102
        %v2111 = vmul.f32 %v2107, %v2107
        %v2112 = vmul.f32 %v2108, %v2108
        %v2115 = vrot.slane %v2111, 1
        %v2116 = vrot.slane %v2112, 1
        %v2119 = vadd.f32 %v2109, %v2115
        %v2120 = vadd.f32 %v2110, %v2116
        %v2121 = vsel %vm1432, %v2119, 0.0
        %v2122 = vsel %vm1432, %v2120, 0.0
        %v2123 = vadd.f32 %v2121, %v2122
        %2124 = vadd.xlane.f32.xlu0 %v2123
        %v2125 = vpop.xlane.xlu0 %2124
        %v2126 = vrot.slane %v2125, 4
        %v2127 = vadd.f32 %v2125, %v2126
        %v2128 = vrot.slane %v2127, 2
        %v2129 = vadd.f32 %v2127, %v2128
        %v2130 = vrot.slane %v2129, 1
        %v2131 = vadd.f32 %v2129, %v2130
        %s2132 = vtos %v2131
        %v2133 = vstv %s2132
        loop: start=0, step=1, limit=10
        $region113: #{_forward.1} parent=99 // loop_pre_header
          _
        $region114: #{_forward.1} parent=99 // loop_header
          %s2135 = sphi 0, %s2139
          %p2136 = scmp.ge.s32.totalorder %s2135, 10
          %v2140 = vphi 0.0, %v2715
          %v2141 = vphi 0.0, %v2716
          %v2142 = vphi 0.0, %v2719
          %v2143 = vphi 0.0, %v2720
          %v2144 = vphi %v2101, %v2723
          %v2145 = vphi %v2102, %v2724
          %v2146 = vphi %v2107, %v2727
          %v2147 = vphi %v2108, %v2728
          %v2148 = vphi %v2101, %v2759
          %v2149 = vphi %v2102, %v2760
          %v2150 = vphi %v2107, %v2763
          %v2151 = vphi %v2108, %v2764
          %v2152 = vphi %v2133, %v2753
        $region115: #{_forward.1} parent=99 // loop_header_branch
          %2138 = sbr.rel (%p2136) target = $region119
        $region116: #{_forward.1} parent=99 // loop_body
          %v2153 = vlaneseq
          %v2154 = vshrl.u32 %v2153, 7
          %v2155 = vsub.s32 0, %v2154
          %v2156 = vrot.slane %v2148, %v2155
          %v2157 = vlaneseq
          %v2158 = vshrl.u32 %v2157, 7
          %v2159 = vsub.s32 0, %v2158
          %v2160 = vrot.slane %v2149, %v2159
          %v2163 = vcombine.low %v2156, %v2160
          %v2165 = vmul.f32 %v749, %v2163
          %v2166 = vlaneseq
          %v2167 = vshrl.u32 %v2166, 7
          %v2168 = vsub.s32 1, %v2167
          %v2169 = vrot.slane %v2150, %v2168
          %v2170 = vlaneseq
          %v2171 = vshrl.u32 %v2170, 7
          %v2172 = vsub.s32 1, %v2171
          %v2173 = vrot.slane %v2151, %v2172
          %v2176 = vcombine.low %v2169, %v2173
          %v2178 = vmul.f32 %v750, %v2176
          %v2179 = vsub.f32 %v2165, %v2178
          %v2180 = vmul.f32 %v749, %v2176
          %v2181 = vmul.f32 %v750, %v2163
          %v2182 = vadd.f32 %v2180, %v2181
          %v2184 = vcombine.high %v2179, %v2179
          %2186 = vmatprep.subr.mxu0 %v752
          %2187 = vmatpush1.msra.mxu0 %v751
          %2188 = vmatprep.subr.mxu0 %v754
          %2189 = vmatpush1.msra.mxu0 %v753
          %2190 = vmatprep.subr.mxu0 %v756
          %2191 = vmatpush1.msra.mxu0 %v755
          %2192 = vmatprep.subr.mxu0 %v758
          %2193 = vmatpush1.msra.mxu0 %v757
          %2194 = vmatprep.subr.mxu0 %v760
          %2195 = vmatpush1.msra.mxu0 %v759
          %2196 = vmatprep.subr.mxu0 %v762
          %2197 = vmatpush1.msra.mxu0 %v761
          %2198 = vmatprep.subr.mxu0 %v764
          %2199 = vmatpush1.msra.mxu0 %v763
          %2200 = vmatprep.subr.mxu0 %v766
          %2201 = vmatpush1.msra.mxu0 %v765
          %2202 = vmatprep.subr.mxu0 %v768
          %2203 = vmatpush1.msra.mxu0 %v767
          %2204 = vmatprep.subr.mxu0 %v770
          %2205 = vmatpush1.msra.mxu0 %v769
          %2206 = vmatprep.subr.mxu0 %v772
          %2207 = vmatpush1.msra.mxu0 %v771
          %2208 = vmatprep.subr.mxu0 %v774
          %2209 = vmatpush1.msra.mxu0 %v773
          %2210 = vmatprep.subr.mxu0 %v776
          %2211 = vmatpush1.msra.mxu0 %v775
          %2212 = vmatprep.subr.mxu0 %v778
          %2213 = vmatpush1.msra.mxu0 %v777
          %2214 = vmatprep.subr.mxu0 %v780
          %2215 = vmatpush1.msra.mxu0 %v779
          %2216 = vmatprep.subr.mxu0 %v782
          %2217 = vmatpush1.msra.mxu0 %v781
          %2218 = vmatprep.subr.mxu0 %v784
          %2219 = vmatpush1.msra.mxu0 %v783
          %2220 = vmatprep.subr.mxu0 %v786
          %2221 = vmatpush1.msra.mxu0 %v785
          %2222 = vmatprep.subr.mxu0 %v788
          %2223 = vmatpush1.msra.mxu0 %v787
          %2224 = vmatprep.subr.mxu0 %v790
          %2225 = vmatpush1.msra.mxu0 %v789
          %2226 = vmatprep.subr.mxu0 %v792
          %2227 = vmatpush1.msra.mxu0 %v791
          %2228 = vmatprep.subr.mxu0 %v794
          %2229 = vmatpush1.msra.mxu0 %v793
          %2230 = vmatprep.subr.mxu0 %v796
          %2231 = vmatpush1.msra.mxu0 %v795
          %2232 = vmatprep.subr.mxu0 %v798
          %2233 = vmatpush1.msra.mxu0 %v797
          %2234 = vmatprep.subr.mxu0 %v800
          %2235 = vmatpush1.msra.mxu0 %v799
          %2236 = vmatprep.subr.mxu0 %v802
          %2237 = vmatpush1.msra.mxu0 %v801
          %2238 = vmatprep.subr.mxu0 %v804
          %2239 = vmatpush1.msra.mxu0 %v803
          %2240 = vmatprep.subr.mxu0 %v806
          %2241 = vmatpush1.msra.mxu0 %v805
          %2242 = vmatprep.subr.mxu0 %v808
          %2243 = vmatpush1.msra.mxu0 %v807
          %2244 = vmatprep.subr.mxu0 %v810
          %2245 = vmatpush1.msra.mxu0 %v809
          %2246 = vmatprep.subr.mxu0 %v812
          %2247 = vmatpush1.msra.mxu0 %v811
          %2248 = vmatprep.subr.mxu0 %v814
          %2249 = vmatpush1.msra.mxu0 %v813
          %2250 = vmatprep.mubr.f32.mxu0 %v2184
          %2251 = vmatmul.mubr.f32.gmra.mrb[0].mxu0 %v2179
          %v2252 = vpop.f32.mrb[0].mxu0
          %v2253 = vadd.f32 0.0, %v2252
          %v2254 = vpop.f32.mrb[0].mxu0
          %v2255 = vadd.f32 0.0, %v2254
          %2256 = vdwg.mxu0
          %v2258 = vcombine.high %v2182, %v2182
          %2260 = vmatprep.subr.mxu0 %v816
          %2261 = vmatpush1.msra.mxu0 %v815
          %2262 = vmatprep.subr.mxu0 %v818
          %2263 = vmatpush1.msra.mxu0 %v817
          %2264 = vmatprep.subr.mxu0 %v820
          %2265 = vmatpush1.msra.mxu0 %v819
          %2266 = vmatprep.subr.mxu0 %v822
          %2267 = vmatpush1.msra.mxu0 %v821
          %2268 = vmatprep.subr.mxu0 %v824
          %2269 = vmatpush1.msra.mxu0 %v823
          %2270 = vmatprep.subr.mxu0 %v826
          %2271 = vmatpush1.msra.mxu0 %v825
          %2272 = vmatprep.subr.mxu0 %v828
          %2273 = vmatpush1.msra.mxu0 %v827
          %2274 = vmatprep.subr.mxu0 %v830
          %2275 = vmatpush1.msra.mxu0 %v829
          %2276 = vmatprep.subr.mxu0 %v832
          %2277 = vmatpush1.msra.mxu0 %v831
          %2278 = vmatprep.subr.mxu0 %v834
          %2279 = vmatpush1.msra.mxu0 %v833
          %2280 = vmatprep.subr.mxu0 %v836
          %2281 = vmatpush1.msra.mxu0 %v835
          %2282 = vmatprep.subr.mxu0 %v838
          %2283 = vmatpush1.msra.mxu0 %v837
          %2284 = vmatprep.subr.mxu0 %v840
          %2285 = vmatpush1.msra.mxu0 %v839
          %2286 = vmatprep.subr.mxu0 %v842
          %2287 = vmatpush1.msra.mxu0 %v841
          %2288 = vmatprep.subr.mxu0 %v844
          %2289 = vmatpush1.msra.mxu0 %v843
          %2290 = vmatprep.subr.mxu0 %v846
          %2291 = vmatpush1.msra.mxu0 %v845
          %2292 = vmatprep.subr.mxu0 %v848
          %2293 = vmatpush1.msra.mxu0 %v847
          %2294 = vmatprep.subr.mxu0 %v850
          %2295 = vmatpush1.msra.mxu0 %v849
          %2296 = vmatprep.subr.mxu0 %v852
          %2297 = vmatpush1.msra.mxu0 %v851
          %2298 = vmatprep.subr.mxu0 %v854
          %2299 = vmatpush1.msra.mxu0 %v853
          %2300 = vmatprep.subr.mxu0 %v856
          %2301 = vmatpush1.msra.mxu0 %v855
          %2302 = vmatprep.subr.mxu0 %v858
          %2303 = vmatpush1.msra.mxu0 %v857
          %2304 = vmatprep.subr.mxu0 %v860
          %2305 = vmatpush1.msra.mxu0 %v859
          %2306 = vmatprep.subr.mxu0 %v862
          %2307 = vmatpush1.msra.mxu0 %v861
          %2308 = vmatprep.subr.mxu0 %v864
          %2309 = vmatpush1.msra.mxu0 %v863
          %2310 = vmatprep.subr.mxu0 %v866
          %2311 = vmatpush1.msra.mxu0 %v865
          %2312 = vmatprep.subr.mxu0 %v868
          %2313 = vmatpush1.msra.mxu0 %v867
          %2314 = vmatprep.subr.mxu0 %v870
          %2315 = vmatpush1.msra.mxu0 %v869
          %2316 = vmatprep.subr.mxu0 %v872
          %2317 = vmatpush1.msra.mxu0 %v871
          %2318 = vmatprep.subr.mxu0 %v874
          %2319 = vmatpush1.msra.mxu0 %v873
          %2320 = vmatprep.subr.mxu0 %v876
          %2321 = vmatpush1.msra.mxu0 %v875
          %2322 = vmatprep.subr.mxu0 %v878
          %2323 = vmatpush1.msra.mxu0 %v877
          %2324 = vmatprep.mubr.f32.mxu0 %v2258
          %2325 = vmatmul.mubr.f32.gmra.mrb[0].mxu0 %v2182
          %v2326 = vpop.f32.mrb[0].mxu0
          %v2327 = vadd.f32 0.0, %v2326
          %v2328 = vpop.f32.mrb[0].mxu0
          %v2329 = vadd.f32 0.0, %v2328
          %2330 = vdwg.mxu0
          %v2331 = vadd.f32 %v2179, %v2182
          %v2333 = vcombine.high %v2331, %v2331
          %2335 = vmatprep.subr.mxu0 %v880
          %2336 = vmatpush1.msra.mxu0 %v879
          %2337 = vmatprep.subr.mxu0 %v882
          %2338 = vmatpush1.msra.mxu0 %v881
          %2339 = vmatprep.subr.mxu0 %v884
          %2340 = vmatpush1.msra.mxu0 %v883
          %2341 = vmatprep.subr.mxu0 %v886
          %2342 = vmatpush1.msra.mxu0 %v885
          %2343 = vmatprep.subr.mxu0 %v888
          %2344 = vmatpush1.msra.mxu0 %v887
          %2345 = vmatprep.subr.mxu0 %v890
          %2346 = vmatpush1.msra.mxu0 %v889
          %2347 = vmatprep.subr.mxu0 %v892
          %2348 = vmatpush1.msra.mxu0 %v891
          %2349 = vmatprep.subr.mxu0 %v894
          %2350 = vmatpush1.msra.mxu0 %v893
          %2351 = vmatprep.subr.mxu0 %v896
          %2352 = vmatpush1.msra.mxu0 %v895
          %2353 = vmatprep.subr.mxu0 %v898
          %2354 = vmatpush1.msra.mxu0 %v897
          %2355 = vmatprep.subr.mxu0 %v900
          %2356 = vmatpush1.msra.mxu0 %v899
          %2357 = vmatprep.subr.mxu0 %v902
          %2358 = vmatpush1.msra.mxu0 %v901
          %2359 = vmatprep.subr.mxu0 %v904
          %2360 = vmatpush1.msra.mxu0 %v903
          %2361 = vmatprep.subr.mxu0 %v906
          %2362 = vmatpush1.msra.mxu0 %v905
          %2363 = vmatprep.subr.mxu0 %v908
          %2364 = vmatpush1.msra.mxu0 %v907
          %2365 = vmatprep.subr.mxu0 %v910
          %2366 = vmatpush1.msra.mxu0 %v909
          %2367 = vmatprep.subr.mxu0 %v912
          %2368 = vmatpush1.msra.mxu0 %v911
          %2369 = vmatprep.subr.mxu0 %v914
          %2370 = vmatpush1.msra.mxu0 %v913
          %2371 = vmatprep.subr.mxu0 %v916
          %2372 = vmatpush1.msra.mxu0 %v915
          %2373 = vmatprep.subr.mxu0 %v918
          %2374 = vmatpush1.msra.mxu0 %v917
          %2375 = vmatprep.subr.mxu0 %v920
          %2376 = vmatpush1.msra.mxu0 %v919
          %2377 = vmatprep.subr.mxu0 %v922
          %2378 = vmatpush1.msra.mxu0 %v921
          %2379 = vmatprep.subr.mxu0 %v924
          %2380 = vmatpush1.msra.mxu0 %v923
          %2381 = vmatprep.subr.mxu0 %v926
          %2382 = vmatpush1.msra.mxu0 %v925
          %2383 = vmatprep.subr.mxu0 %v928
          %2384 = vmatpush1.msra.mxu0 %v927
          %2385 = vmatprep.subr.mxu0 %v930
          %2386 = vmatpush1.msra.mxu0 %v929
          %2387 = vmatprep.subr.mxu0 %v932
          %2388 = vmatpush1.msra.mxu0 %v931
          %2389 = vmatprep.subr.mxu0 %v934
          %2390 = vmatpush1.msra.mxu0 %v933
          %2391 = vmatprep.subr.mxu0 %v936
          %2392 = vmatpush1.msra.mxu0 %v935
          %2393 = vmatprep.subr.mxu0 %v938
          %2394 = vmatpush1.msra.mxu0 %v937
          %2395 = vmatprep.subr.mxu0 %v940
          %2396 = vmatpush1.msra.mxu0 %v939
          %2397 = vmatprep.subr.mxu0 %v942
          %2398 = vmatpush1.msra.mxu0 %v941
          %2399 = vmatprep.mubr.f32.mxu0 %v2333
          %2400 = vmatmul.mubr.f32.gmra.mrb[0].mxu0 %v2331
          %v2401 = vpop.f32.mrb[0].mxu0
          %v2402 = vadd.f32 0.0, %v2401
          %v2403 = vpop.f32.mrb[0].mxu0
          %v2404 = vadd.f32 0.0, %v2403
          %2405 = vdwg.mxu0
          %v2406 = vsub.f32 %v2253, %v2327
          %v2407 = vsub.f32 %v2255, %v2329
          %v2408 = vsub.f32 %v2402, %v2253
          %v2409 = vsub.f32 %v2404, %v2255
          %v2410 = vsub.f32 %v2408, %v2327
          %v2411 = vsub.f32 %v2409, %v2329
          %v2412 = vmul.f32 %v2406, %v1144
          %v2413 = vmul.f32 %v2407, %v1148
          %v2414 = vmul.f32 %v2410, %v1144
          %v2415 = vmul.f32 %v2411, %v1148
          %2416 = vmatprep.subr.mxu0 %v944
          %2417 = vmatpush1.msra.mxu0 %v943
          %2418 = vmatprep.subr.mxu0 %v946
          %2419 = vmatpush1.msra.mxu0 %v945
          %2420 = vmatprep.subr.mxu0 %v948
          %2421 = vmatpush1.msra.mxu0 %v947
          %2422 = vmatprep.subr.mxu0 %v950
          %2423 = vmatpush1.msra.mxu0 %v949
          %2424 = vmatprep.subr.mxu0 %v952
          %2425 = vmatpush1.msra.mxu0 %v951
          %2426 = vmatprep.subr.mxu0 %v954
          %2427 = vmatpush1.msra.mxu0 %v953
          %2428 = vmatprep.subr.mxu0 %v956
          %2429 = vmatpush1.msra.mxu0 %v955
          %2430 = vmatprep.subr.mxu0 %v958
          %2431 = vmatpush1.msra.mxu0 %v957
          %2432 = vmatprep.subr.mxu0 %v960
          %2433 = vmatpush1.msra.mxu0 %v959
          %2434 = vmatprep.subr.mxu0 %v962
          %2435 = vmatpush1.msra.mxu0 %v961
          %2436 = vmatprep.subr.mxu0 %v964
          %2437 = vmatpush1.msra.mxu0 %v963
          %2438 = vmatprep.subr.mxu0 %v966
          %2439 = vmatpush1.msra.mxu0 %v965
          %2440 = vmatprep.subr.mxu0 %v968
          %2441 = vmatpush1.msra.mxu0 %v967
          %2442 = vmatprep.subr.mxu0 %v970
          %2443 = vmatpush1.msra.mxu0 %v969
          %2444 = vmatprep.subr.mxu0 %v972
          %2445 = vmatpush1.msra.mxu0 %v971
          %2446 = vmatprep.subr.mxu0 %v974
          %2447 = vmatpush1.msra.mxu0 %v973
          %2448 = vmatprep.subr.mxu0 %v976
          %2449 = vmatpush1.msra.mxu0 %v975
          %2450 = vmatprep.subr.mxu0 %v978
          %2451 = vmatpush1.msra.mxu0 %v977
          %2452 = vmatprep.subr.mxu0 %v980
          %2453 = vmatpush1.msra.mxu0 %v979
          %2454 = vmatprep.subr.mxu0 %v982
          %2455 = vmatpush1.msra.mxu0 %v981
          %2456 = vmatprep.subr.mxu0 %v984
          %2457 = vmatpush1.msra.mxu0 %v983
          %2458 = vmatprep.subr.mxu0 %v986
          %2459 = vmatpush1.msra.mxu0 %v985
          %2460 = vmatprep.subr.mxu0 %v988
          %2461 = vmatpush1.msra.mxu0 %v987
          %2462 = vmatprep.subr.mxu0 %v990
          %2463 = vmatpush1.msra.mxu0 %v989
          %2464 = vmatprep.subr.mxu0 %v992
          %2465 = vmatpush1.msra.mxu0 %v991
          %2466 = vmatprep.subr.mxu0 %v994
          %2467 = vmatpush1.msra.mxu0 %v993
          %2468 = vmatprep.subr.mxu0 %v996
          %2469 = vmatpush1.msra.mxu0 %v995
          %2470 = vmatprep.subr.mxu0 %v998
          %2471 = vmatpush1.msra.mxu0 %v997
          %2472 = vmatprep.subr.mxu0 %v1000
          %2473 = vmatpush1.msra.mxu0 %v999
          %2474 = vmatprep.subr.mxu0 %v1002
          %2475 = vmatpush1.msra.mxu0 %v1001
          %2476 = vmatprep.subr.mxu0 %v1004
          %2477 = vmatpush1.msra.mxu0 %v1003
          %2478 = vmatprep.subr.mxu0 %v1006
          %2479 = vmatpush1.msra.mxu0 %v1005
          %2480 = vmatprep.mubr.f32.mxu0 %v2413
          %2481 = vmatmul.mubr.f32.gmra.mrb[0].mxu0 %v2412
          %v2482 = vpop.f32.mrb[0].mxu0
          %v2483 = vadd.f32 0.0, %v2482
          %v2484 = vpop.f32.mrb[0].mxu0
          %v2485 = vadd.f32 0.0, %v2484
          %2486 = vdwg.mxu0
          %2487 = vmatprep.subr.mxu0 %v1008
          %2488 = vmatpush1.msra.mxu0 %v1007
          %2489 = vmatprep.subr.mxu0 %v1010
          %2490 = vmatpush1.msra.mxu0 %v1009
          %2491 = vmatprep.subr.mxu0 %v1012
          %2492 = vmatpush1.msra.mxu0 %v1011
          %2493 = vmatprep.subr.mxu0 %v1014
          %2494 = vmatpush1.msra.mxu0 %v1013
          %2495 = vmatprep.subr.mxu0 %v1016
          %2496 = vmatpush1.msra.mxu0 %v1015
          %2497 = vmatprep.subr.mxu0 %v1018
          %2498 = vmatpush1.msra.mxu0 %v1017
          %2499 = vmatprep.subr.mxu0 %v1020
          %2500 = vmatpush1.msra.mxu0 %v1019
          %2501 = vmatprep.subr.mxu0 %v1022
          %2502 = vmatpush1.msra.mxu0 %v1021
          %2503 = vmatprep.subr.mxu0 %v1024
          %2504 = vmatpush1.msra.mxu0 %v1023
          %2505 = vmatprep.subr.mxu0 %v1026
          %2506 = vmatpush1.msra.mxu0 %v1025
          %2507 = vmatprep.subr.mxu0 %v1028
          %2508 = vmatpush1.msra.mxu0 %v1027
          %2509 = vmatprep.subr.mxu0 %v1030
          %2510 = vmatpush1.msra.mxu0 %v1029
          %2511 = vmatprep.subr.mxu0 %v1032
          %2512 = vmatpush1.msra.mxu0 %v1031
          %2513 = vmatprep.subr.mxu0 %v1034
          %2514 = vmatpush1.msra.mxu0 %v1033
          %2515 = vmatprep.subr.mxu0 %v1036
          %2516 = vmatpush1.msra.mxu0 %v1035
          %2517 = vmatprep.subr.mxu0 %v1038
          %2518 = vmatpush1.msra.mxu0 %v1037
          %2519 = vmatprep.subr.mxu0 %v1040
          %2520 = vmatpush1.msra.mxu0 %v1039
          %2521 = vmatprep.subr.mxu0 %v1042
          %2522 = vmatpush1.msra.mxu0 %v1041
          %2523 = vmatprep.subr.mxu0 %v1044
          %2524 = vmatpush1.msra.mxu0 %v1043
          %2525 = vmatprep.subr.mxu0 %v1046
          %2526 = vmatpush1.msra.mxu0 %v1045
          %2527 = vmatprep.subr.mxu0 %v1048
          %2528 = vmatpush1.msra.mxu0 %v1047
          %2529 = vmatprep.subr.mxu0 %v1050
          %2530 = vmatpush1.msra.mxu0 %v1049
          %2531 = vmatprep.subr.mxu0 %v1052
          %2532 = vmatpush1.msra.mxu0 %v1051
          %2533 = vmatprep.subr.mxu0 %v1054
          %2534 = vmatpush1.msra.mxu0 %v1053
          %2535 = vmatprep.subr.mxu0 %v1056
          %2536 = vmatpush1.msra.mxu0 %v1055
          %2537 = vmatprep.subr.mxu0 %v1058
          %2538 = vmatpush1.msra.mxu0 %v1057
          %2539 = vmatprep.subr.mxu0 %v1060
          %2540 = vmatpush1.msra.mxu0 %v1059
          %2541 = vmatprep.subr.mxu0 %v1062
          %2542 = vmatpush1.msra.mxu0 %v1061
          %2543 = vmatprep.subr.mxu0 %v1064
          %2544 = vmatpush1.msra.mxu0 %v1063
          %2545 = vmatprep.subr.mxu0 %v1066
          %2546 = vmatpush1.msra.mxu0 %v1065
          %2547 = vmatprep.subr.mxu0 %v1068
          %2548 = vmatpush1.msra.mxu0 %v1067
          %2549 = vmatprep.subr.mxu0 %v1070
          %2550 = vmatpush1.msra.mxu0 %v1069
          %2551 = vmatprep.mubr.f32.mxu0 %v2415
          %2552 = vmatmul.mubr.f32.gmra.mrb[0].mxu0 %v2414
          %v2553 = vpop.f32.mrb[0].mxu0
          %v2554 = vadd.f32 0.0, %v2553
          %v2555 = vpop.f32.mrb[0].mxu0
          %v2556 = vadd.f32 0.0, %v2555
          %2557 = vdwg.mxu0
          %v2558 = vadd.f32 %v2412, %v2414
          %v2559 = vadd.f32 %v2413, %v2415
          %2560 = vmatprep.subr.mxu0 %v1072
          %2561 = vmatpush1.msra.mxu0 %v1071
          %2562 = vmatprep.subr.mxu0 %v1074
          %2563 = vmatpush1.msra.mxu0 %v1073
          %2564 = vmatprep.subr.mxu0 %v1076
          %2565 = vmatpush1.msra.mxu0 %v1075
          %2566 = vmatprep.subr.mxu0 %v1078
          %2567 = vmatpush1.msra.mxu0 %v1077
          %2568 = vmatprep.subr.mxu0 %v1080
          %2569 = vmatpush1.msra.mxu0 %v1079
          %2570 = vmatprep.subr.mxu0 %v1082
          %2571 = vmatpush1.msra.mxu0 %v1081
          %2572 = vmatprep.subr.mxu0 %v1084
          %2573 = vmatpush1.msra.mxu0 %v1083
          %2574 = vmatprep.subr.mxu0 %v1086
          %2575 = vmatpush1.msra.mxu0 %v1085
          %2576 = vmatprep.subr.mxu0 %v1088
          %2577 = vmatpush1.msra.mxu0 %v1087
          %2578 = vmatprep.subr.mxu0 %v1090
          %2579 = vmatpush1.msra.mxu0 %v1089
          %2580 = vmatprep.subr.mxu0 %v1092
          %2581 = vmatpush1.msra.mxu0 %v1091
          %2582 = vmatprep.subr.mxu0 %v1094
          %2583 = vmatpush1.msra.mxu0 %v1093
          %2584 = vmatprep.subr.mxu0 %v1096
          %2585 = vmatpush1.msra.mxu0 %v1095
          %2586 = vmatprep.subr.mxu0 %v1098
          %2587 = vmatpush1.msra.mxu0 %v1097
          %2588 = vmatprep.subr.mxu0 %v1100
          %2589 = vmatpush1.msra.mxu0 %v1099
          %2590 = vmatprep.subr.mxu0 %v1102
          %2591 = vmatpush1.msra.mxu0 %v1101
          %2592 = vmatprep.subr.mxu0 %v1104
          %2593 = vmatpush1.msra.mxu0 %v1103
          %2594 = vmatprep.subr.mxu0 %v1106
          %2595 = vmatpush1.msra.mxu0 %v1105
          %2596 = vmatprep.subr.mxu0 %v1108
          %2597 = vmatpush1.msra.mxu0 %v1107
          %2598 = vmatprep.subr.mxu0 %v1110
          %2599 = vmatpush1.msra.mxu0 %v1109
          %2600 = vmatprep.subr.mxu0 %v1112
          %2601 = vmatpush1.msra.mxu0 %v1111
          %2602 = vmatprep.subr.mxu0 %v1114
          %2603 = vmatpush1.msra.mxu0 %v1113
          %2604 = vmatprep.subr.mxu0 %v1116
          %2605 = vmatpush1.msra.mxu0 %v1115
          %2606 = vmatprep.subr.mxu0 %v1118
          %2607 = vmatpush1.msra.mxu0 %v1117
          %2608 = vmatprep.subr.mxu0 %v1120
          %2609 = vmatpush1.msra.mxu0 %v1119
          %2610 = vmatprep.subr.mxu0 %v1122
          %2611 = vmatpush1.msra.mxu0 %v1121
          %2612 = vmatprep.subr.mxu0 %v1124
          %2613 = vmatpush1.msra.mxu0 %v1123
          %2614 = vmatprep.subr.mxu0 %v1126
          %2615 = vmatpush1.msra.mxu0 %v1125
          %2616 = vmatprep.subr.mxu0 %v1128
          %2617 = vmatpush1.msra.mxu0 %v1127
          %2618 = vmatprep.subr.mxu0 %v1130
          %2619 = vmatpush1.msra.mxu0 %v1129
          %2620 = vmatprep.subr.mxu0 %v1132
          %2621 = vmatpush1.msra.mxu0 %v1131
          %2622 = vmatprep.subr.mxu0 %v1134
          %2623 = vmatpush1.msra.mxu0 %v1133
          %2624 = vmatprep.mubr.f32.mxu0 %v2559
          %2625 = vmatmul.mubr.f32.gmra.mrb[0].mxu0 %v2558
          %v2626 = vpop.f32.mrb[0].mxu0
          %v2627 = vadd.f32 0.0, %v2626
          %v2628 = vpop.f32.mrb[0].mxu0
          %v2629 = vadd.f32 0.0, %v2628
          %2630 = vdwg.mxu0
          %v2631 = vsub.f32 %v2483, %v2554
          %v2632 = vsub.f32 %v2485, %v2556
          %v2633 = vsub.f32 %v2627, %v2483
          %v2634 = vsub.f32 %v2629, %v2485
          %v2635 = vsub.f32 %v2633, %v2554
          %v2636 = vsub.f32 %v2634, %v2556
          %v2637 = vmul.f32 %v2631, %v749
          %v2638 = vmul.f32 %v2632, %v1386
          %v2639 = vmul.f32 %v2635, %v750
          %v2640 = vmul.f32 %v2636, %v1391
          %v2641 = vadd.f32 %v2637, %v2639
          %v2642 = vadd.f32 %v2638, %v2640
          %v2643 = vsel %vm1397, %v2641, 0.0
          %v2644 = vrot.slane %v2643, 4
          %v2645 = vadd.f32 %v2643, %v2644
          %v2646 = vrot.slane %v2645, 2
          %v2647 = vadd.f32 %v2645, %v2646
          %v2648 = vrot.slane %v2647, 1
          %v2649 = vadd.f32 %v2647, %v2648
          %v2650 = vsel %vm1397, %v2642, 0.0
          %v2651 = vrot.slane %v2650, 4
          %v2652 = vadd.f32 %v2650, %v2651
          %v2653 = vrot.slane %v2652, 2
          %v2654 = vadd.f32 %v2652, %v2653
          %v2655 = vrot.slane %v2654, 1
          %v2656 = vadd.f32 %v2654, %v2655
          %v2657 = vmul.f32 %v2635, %v749
          %v2658 = vmul.f32 %v2636, %v1386
          %v2659 = vmul.f32 %v2631, %v750
          %v2660 = vmul.f32 %v2632, %v1391
          %v2661 = vsub.f32 %v2657, %v2659
          %v2662 = vsub.f32 %v2658, %v2660
          %v2663 = vsel %vm1397, %v2661, 0.0
          %v2664 = vrot.slane %v2663, 4
          %v2665 = vadd.f32 %v2663, %v2664
          %v2666 = vrot.slane %v2665, 2
          %v2667 = vadd.f32 %v2665, %v2666
          %v2668 = vrot.slane %v2667, 1
          %v2669 = vadd.f32 %v2667, %v2668
          %v2670 = vsel %vm1397, %v2662, 0.0
          %v2671 = vrot.slane %v2670, 4
          %v2672 = vadd.f32 %v2670, %v2671
          %v2673 = vrot.slane %v2672, 2
          %v2674 = vadd.f32 %v2672, %v2673
          %v2675 = vrot.slane %v2674, 1
          %v2676 = vadd.f32 %v2674, %v2675
          %v2677 = vmul.f32 %v2098, %v2148
          %v2678 = vmul.f32 %v2098, %v2149
          %v2679 = vadd.f32 %v2649, %v2677
          %v2680 = vadd.f32 %v2656, %v2678
          %v2681 = vmul.f32 %v2098, %v2150
          %v2682 = vmul.f32 %v2098, %v2151
          %v2683 = vadd.f32 %v2669, %v2681
          %v2684 = vadd.f32 %v2676, %v2682
          %v2685 = vmul.f32 %v2148, %v2679
          %v2686 = vmul.f32 %v2149, %v2680
          %v2687 = vmul.f32 %v2150, %v2683
          %v2688 = vmul.f32 %v2151, %v2684
          %v2691 = vrot.slane %v2687, 1
          %v2692 = vrot.slane %v2688, 1
          %v2695 = vadd.f32 %v2685, %v2691
          %v2696 = vadd.f32 %v2686, %v2692
          %v2697 = vsel %vm1432, %v2695, 0.0
          %v2698 = vsel %vm1432, %v2696, 0.0
          %v2699 = vadd.f32 %v2697, %v2698
          %2700 = vadd.xlane.f32.xlu0 %v2699
          %v2701 = vpop.xlane.xlu0 %2700
          %v2702 = vrot.slane %v2701, 4
          %v2703 = vadd.f32 %v2701, %v2702
          %v2704 = vrot.slane %v2703, 2
          %v2705 = vadd.f32 %v2703, %v2704
          %v2706 = vrot.slane %v2705, 1
          %v2707 = vadd.f32 %v2705, %v2706
          %s2708 = vtos %v2707
          %v2709 = vstv %s2708
          %v2710 = vadd.f32 %v2709, 1e-20
          %v2711 = vrcp.pop %v2710
          %v2712 = vmul.f32 %v2152, %v2711
          %v2713 = vmul.f32 %v2712, %v2148
          %v2714 = vmul.f32 %v2712, %v2149
          %v2715 = vadd.f32 %v2140, %v2713
          %v2716 = vadd.f32 %v2141, %v2714
          %v2717 = vmul.f32 %v2712, %v2150
          %v2718 = vmul.f32 %v2712, %v2151
          %v2719 = vadd.f32 %v2142, %v2717
          %v2720 = vadd.f32 %v2143, %v2718
          %v2721 = vmul.f32 %v2712, %v2679
          %v2722 = vmul.f32 %v2712, %v2680
          %v2723 = vsub.f32 %v2144, %v2721
          %v2724 = vsub.f32 %v2145, %v2722
          %v2725 = vmul.f32 %v2712, %v2683
          %v2726 = vmul.f32 %v2712, %v2684
          %v2727 = vsub.f32 %v2146, %v2725
          %v2728 = vsub.f32 %v2147, %v2726
          %v2729 = vmul.f32 %v2723, %v2723
          %v2730 = vmul.f32 %v2724, %v2724
          %v2731 = vmul.f32 %v2727, %v2727
          %v2732 = vmul.f32 %v2728, %v2728
          %v2735 = vrot.slane %v2731, 1
          %v2736 = vrot.slane %v2732, 1
          %v2739 = vadd.f32 %v2729, %v2735
          %v2740 = vadd.f32 %v2730, %v2736
          %v2741 = vsel %vm1432, %v2739, 0.0
          %v2742 = vsel %vm1432, %v2740, 0.0
          %v2743 = vadd.f32 %v2741, %v2742
          %2744 = vadd.xlane.f32.xlu0 %v2743
          %v2745 = vpop.xlane.xlu0 %2744
          %v2746 = vrot.slane %v2745, 4
          %v2747 = vadd.f32 %v2745, %v2746
          %v2748 = vrot.slane %v2747, 2
          %v2749 = vadd.f32 %v2747, %v2748
          %v2750 = vrot.slane %v2749, 1
          %v2751 = vadd.f32 %v2749, %v2750
          %s2752 = vtos %v2751
          %v2753 = vstv %s2752
          %v2754 = vadd.f32 %v2152, 1e-20
          %v2755 = vrcp.pop %v2754
          %v2756 = vmul.f32 %v2753, %v2755
          %v2757 = vmul.f32 %v2756, %v2148
          %v2758 = vmul.f32 %v2756, %v2149
          %v2759 = vadd.f32 %v2723, %v2757
          %v2760 = vadd.f32 %v2724, %v2758
          %v2761 = vmul.f32 %v2756, %v2150
          %v2762 = vmul.f32 %v2756, %v2151
          %v2763 = vadd.f32 %v2727, %v2761
          %v2764 = vadd.f32 %v2728, %v2762
        $region117: #{_forward.1} parent=99 // loop_footer
          %s2139 = sadd.s32 1, %s2135
        $region118: #{_forward.1} parent=99 // loop_footer_branch
          %2134 = sbr.rel target = $region114
        $region119: #{_forward.1} parent=99 // loop_exit
          _
        %v2765 = vsel %vm1432, %v2140, %v2142
        %v2766 = vsel %vm1432, %v2141, %v2143
        %v2769 = vcombine.low %v2765, %v2766
        %v2771 = vunpack.c.l.s4 1983009808
        %v2772 = vunpack.c.0.s8 %v2771
        %v2773 = vlaneseq
        %v2774 = vshrl.u32 %v2773, 7
        %v2775 = vsub.s32 %v2772, %v2774
        %v2776 = vrot.slane %v2769, %v2775
        %2778 = vst [vmem:[%s735] sm:$0xf] %v2776
        %p2779 = scmp.lt.s32.totalorder %s35, 1
        %s2780 = scalar_select %p2779, %s35, 1
        %s2781 = smul.addr %s2780, 2
        %s2782 = smul.addr %s2781, 2
        %s2783 = scalar_lea.vmem %s20, %s2782
        // Predicated region
        $region120: #{_forward.1} parent=99 // pred_check
          %p2784 = pneg %p493
        $region121: #{_forward.1} parent=99 // pred_check_branch
          %2786 = sbr.rel (%p2784) target = $region123
        $region122: #{_forward.1} parent=99 // pred_region
          _
        $region123: #{_forward.1} parent=99 // pred_fallthru
          _
      $region100: #{_forward.1} parent=5 // pred_fallthru
        _
      %p2787 = scmp.le.s32.totalorder 2, %s30
      // Predicated region
      $region124: #{_forward.1} parent=5 // pred_check
        %p2788 = pneg %p2787
      $region125: #{_forward.1} parent=5 // pred_check_branch
        %2790 = sbr.rel (%p2788) target = $region127
      $region126: #{_forward.1} parent=5 // pred_region
        %s2791 = ssub.s32 %s30, 2
        // Predicated region
        $region128: #{_forward.1} parent=126 // pred_check
          %p2792 = pneg %p499
        $region129: #{_forward.1} parent=126 // pred_check_branch
          %2794 = sbr.rel (%p2792) target = $region131
        $region130: #{_forward.1} parent=126 // pred_region
          %p2795 = scmp.lt.s32.totalorder %s36, 1
          %s2796 = scalar_select %p2795, %s36, 1
          %s2797 = smul.addr %s2796, 2
          %s2798 = smul.addr %s2797, 2
          %s2799 = scalar_lea.vmem %s20, %s2798
        $region131: #{_forward.1} parent=126 // pred_fallthru
          _
      $region127: #{_forward.1} parent=5 // pred_fallthru
        _
    $region6: #{_forward.1} parent=1 // loop_footer
      %s34 = sadd.s32 1, %s30
    $region7: #{_forward.1} parent=1 // loop_footer_branch
      %29 = sbr.rel target = $region3
    $region8: #{_forward.1} parent=1 // loop_exit
      _
    %2800 = vsyncpa [#allocation4], 1
    %s2801 = scalar_lea.sflag [#allocation4], 1
    %2802 = vsyncpa %s2801, 1
    %2803 = vsyncpa [#allocation6], 1

</llo_original>
